<compile_context>
chip_gen: v7x
topology: tpu7x:2x2x1
jax: 0.10.0
libtpu: 0.0.40
codegen_flags: <defaults>
</compile_context>

<pallas_src>
import functools

import jax
import jax.numpy as jnp
from jax.experimental import pallas as pl
from jax.experimental.pallas import tpu as pltpu

H, W = 6, 7                      # Connect-4 board
HP, WP = H + 2, W + 2            # board + 1-cell zero ring -> 8 x 9
CELLS = HP * WP                  # 72 rows per board in the flat layout
GUARD = 16                       # zero guard rows so 3x3 taps never read OOB
C = 128                          # residual tower channel width
EPS = 1e-5                       # PyTorch BatchNorm2d default eps

# 3x3 tap row offsets in the flat (n, 8, 9) layout; tap index k = kh*3 + kw.
TAP_OFFSETS = tuple((kh - 1) * WP + (kw - 1) for kh in range(3) for kw in range(3))
N_TOWER_STEPS = 1 + 2 * 19       # conv block + 19 residual blocks x 2 convs


# ----------------------------- fused tower kernel -----------------------------

def _tower_kernel(x0_ref, mask_ref, w_ref, bnp_ref, hw_ref, hbnp_ref,
                  head_ref, spad_ref, res_ref, *, m_ring, n_valid):
    t = pl.program_id(0)

    @pl.when(t == 0)
    def _init():
        spad_ref[...] = jnp.zeros_like(spad_ref)
        spad_ref[pl.ds(GUARD, m_ring), :] = x0_ref[...]
        res_ref[...] = jnp.zeros_like(res_ref)

    # First conv of each residual block (odd step): snapshot the block input.
    @pl.when((t & 1) == 1)
    def _save_residual():
        res_ref[...] = spad_ref[pl.ds(GUARD, m_ring), :]

    mask = mask_ref[...]                       # 1.0 on board cells, 0.0 on ring
    inv_cnt = jnp.float32(1.0 / n_valid)       # true N*6*7 element count

    # 3x3 conv as 9 row-shifted matmuls; zero ring + guard rows give the padding.
    acc = jnp.zeros((m_ring, C), jnp.float32)
    for k, d in enumerate(TAP_OFFSETS):
        shifted = spad_ref[pl.ds(GUARD + d, m_ring), :]
        acc = acc + jnp.dot(shifted.astype(jnp.bfloat16), w_ref[0, k],
                            preferred_element_type=jnp.float32)

    bnp = bnp_ref[0]                           # (3, 128): gamma / beta / conv bias
    gamma, beta, cbias = bnp[0:1, :], bnp[1:2, :], bnp[2:3, :]
    y = acc + cbias

    # Training-mode BatchNorm2d: biased batch stats over board cells only.
    mu = jnp.sum(y * mask, axis=0, keepdims=True) * inv_cnt
    diff = (y - mu) * mask
    var = jnp.sum(diff * diff, axis=0, keepdims=True) * inv_cnt
    y = (y - mu) * (gamma * jax.lax.rsqrt(var + EPS)) + beta

    # Residual add on the second conv of each block (even step >= 2).
    gate = jnp.where(jnp.logical_and(t >= 2, (t & 1) == 0),
                     jnp.float32(1.0), jnp.float32(0.0))
    y = y + gate * res_ref[...]
    y = jnp.maximum(y, 0.0) * mask             # ReLU; keep ring rows at zero
    spad_ref[pl.ds(GUARD, m_ring), :] = y

    # Fused OutputBlock 1x1 convs (value 128->3 | policy 128->32) + BN + ReLU.
    @pl.when(t == N_TOWER_STEPS - 1)
    def _heads():
        s_fin = spad_ref[pl.ds(GUARD, m_ring), :]
        hy = jnp.dot(s_fin.astype(jnp.bfloat16), hw_ref[...],
                     preferred_element_type=jnp.float32)
        hbnp = hbnp_ref[...]                   # (3, 128): gamma / beta / bias
        hy = hy + hbnp[2:3, :]
        hmu = jnp.sum(hy * mask, axis=0, keepdims=True) * inv_cnt
        hdiff = (hy - hmu) * mask
        hvar = jnp.sum(hdiff * hdiff, axis=0, keepdims=True) * inv_cnt
        hn = (hy - hmu) * (hbnp[0:1, :] * jax.lax.rsqrt(hvar + EPS)) + hbnp[1:2, :]
        head_ref[...] = jnp.maximum(hn, 0.0) * mask


def _tower_call(x0, mask, w_all, bnp, head_w, head_bnp, *, n):
    m_ring = n * CELLS
    kernel = functools.partial(_tower_kernel, m_ring=m_ring, n_valid=n * H * W)
    flops = int(2 * m_ring * C * C * (9 * N_TOWER_STEPS + 1))
    bytes_accessed = int(w_all.size * 2 + bnp.size * 4 + x0.size * 4 +
                         mask.size * 4 + head_w.size * 2 + head_bnp.size * 4 +
                         m_ring * C * 4)
    return pl.pallas_call(
        kernel,
        grid=(N_TOWER_STEPS,),
        in_specs=[
            pl.BlockSpec((m_ring, C), lambda t: (0, 0)),           # padded input (loaded once)
            pl.BlockSpec((m_ring, C), lambda t: (0, 0)),           # board/ring mask
            pl.BlockSpec((1, 9, C, C), lambda t: (t, 0, 0, 0)),    # streamed conv weights (bf16)
            pl.BlockSpec((1, 3, C), lambda t: (t, 0, 0)),          # gamma / beta / conv bias
            pl.BlockSpec((C, C), lambda t: (0, 0)),                # fused head 1x1 conv weights
            pl.BlockSpec((3, C), lambda t: (0, 0)),                # head gamma / beta / bias
        ],
        out_specs=pl.BlockSpec((m_ring, C), lambda t: (0, 0)),
        out_shape=jax.ShapeDtypeStruct((m_ring, C), jnp.float32),
        scratch_shapes=[
            pltpu.VMEM((GUARD + m_ring + GUARD, C), jnp.float32),  # guarded activation
            pltpu.VMEM((m_ring, C), jnp.float32),                  # residual snapshot
        ],
        compiler_params=pltpu.CompilerParams(dimension_semantics=("arbitrary",)),
        cost_estimate=pl.CostEstimate(flops=flops, transcendentals=0,
                                      bytes_accessed=bytes_accessed),
    )(x0, mask, w_all, bnp, head_w, head_bnp)


# ------------------------------- fused FC heads --------------------------------

def _head_kernel(v_ref, p_ref, w1_ref, b1_ref, w2_ref, b2_ref, wf_ref, bf_ref,
                 val_ref, pol_ref):
    # value head: relu(fc1) -> tanh(fc2)
    h = jnp.dot(v_ref[...], w1_ref[...], preferred_element_type=jnp.float32) + b1_ref[...]
    h = jnp.maximum(h, 0.0)
    val = jnp.sum(h * w2_ref[...], axis=1, keepdims=True) + b2_ref[...]
    val_ref[...] = jnp.tanh(val)
    # policy head: fc -> logsoftmax(dim=1).exp() == softmax(dim=1)
    logits = jnp.dot(p_ref[...], wf_ref[...], preferred_element_type=jnp.float32) + bf_ref[...]
    m = jnp.max(logits, axis=1, keepdims=True)
    e = jnp.exp(logits - m)
    pol_ref[...] = e / jnp.sum(e, axis=1, keepdims=True)


def _head_call(v_flat, p_flat, params):
    n = v_flat.shape[0]
    args = [v_flat, p_flat,
            params["fc1_w"], params["fc1_b"].reshape(1, -1),
            params["fc2_w"].reshape(1, -1), params["fc2_b"].reshape(1, 1),
            params["fc_w"], params["fc_b"].reshape(1, -1)]
    return pl.pallas_call(
        _head_kernel,
        grid=(1,),
        in_specs=[pl.BlockSpec(a.shape, lambda i: (0, 0)) for a in args],
        out_specs=(pl.BlockSpec((n, 1), lambda i: (0, 0)),
                   pl.BlockSpec((n, 7), lambda i: (0, 0))),
        out_shape=(jax.ShapeDtypeStruct((n, 1), jnp.float32),
                   jax.ShapeDtypeStruct((n, 7), jnp.float32)),
        compiler_params=pltpu.CompilerParams(dimension_semantics=("arbitrary",)),
    )(*args)


# ---------------------------------- wrapper ------------------------------------

def connect4_forward(params, x_nchw):
    n = x_nchw.shape[0]
    # s.view(-1, 3, 6, 7) -> channels-last with a 1-cell zero ring: (n,8,9,128)
    x = jnp.transpose(x_nchw.reshape(n, 3, H, W).astype(jnp.float32), (0, 2, 3, 1))
    x = jnp.pad(x, ((0, 0), (1, 1), (1, 1), (0, C - 3)))
    x0 = x.reshape(n * CELLS, C)

    mask = jnp.zeros((HP, WP), jnp.float32).at[1:1 + H, 1:1 + W].set(1.0)
    mask = jnp.broadcast_to(mask.reshape(1, HP, WP, 1),
                            (n, HP, WP, C)).reshape(n * CELLS, C)

    # One fused pallas_call: conv block + 19 residual blocks + OutputBlock convs.
    head_act = _tower_call(x0, mask, params["w_all"], params["bnp"],
                           params["head_w"], params["head_bnp"], n=n)

    # Strip ring rows; flatten in HWC order (fc weights stored to match).
    ha = head_act.reshape(n, HP, WP, C)[:, 1:1 + H, 1:1 + W, :]
    v_flat = ha[..., 0:3].reshape(n, 3 * H * W)      # value-conv channels
    p_flat = ha[..., 3:35].reshape(n, 32 * H * W)    # policy-conv channels

    value, policy = _head_call(v_flat, p_flat, params)
    # OutputBlockForward(tensor1=policy, tensor2=value)
    return policy, value


def init_params(key):
    keys = iter(jax.random.split(key, 32))

    def nrm(shape, fan_in):
        return jax.random.normal(next(keys), shape, jnp.float32) / jnp.sqrt(float(fan_in))

    # Stacked 3x3 conv weights (39, 9, Cin, Cout); slab k = kh*3+kw holds the
    # transpose of the PyTorch weight[:, :, kh, kw].  Step 0 uses only Cin 0..2.
    w_all = jnp.zeros((N_TOWER_STEPS, 9, C, C), jnp.float32)
    w_all = w_all.at[0, :, 0:3, :].set(nrm((9, 3, C), 27))
    w_all = w_all.at[1:].set(nrm((N_TOWER_STEPS - 1, 9, C, C), 9 * C))

    # Per-step BN params + conv bias (bias only on the initial conv block).
    bnp = jnp.zeros((N_TOWER_STEPS, 3, C), jnp.float32)
    bnp = bnp.at[:, 0, :].set(1.0)                       # gamma = 1
    bnp = bnp.at[0, 2, :].set(nrm((C,), 27))             # conv-block bias

    # OutputBlock 1x1 convs packed into one lane-dense 128x128 weight.
    head_w = jnp.zeros((C, C), jnp.float32)
    head_w = head_w.at[:, 0:3].set(nrm((C, 3), C))       # value conv 128->3
    head_w = head_w.at[:, 3:35].set(nrm((C, 32), C))     # policy conv 128->32
    head_bnp = jnp.zeros((3, C), jnp.float32)
    head_bnp = head_bnp.at[0, :].set(1.0)                # gamma
    head_bnp = head_bnp.at[2, 0:3].set(nrm((3,), C))     # value-conv bias
    head_bnp = head_bnp.at[2, 3:35].set(nrm((32,), C))   # policy-conv bias

    return {
        "w_all": w_all.astype(jnp.bfloat16),
        "bnp": bnp,
        "head_w": head_w.astype(jnp.bfloat16),
        "head_bnp": head_bnp,
        # fc weights with rows in HWC order (see TODO at top for CHW checkpoints)
        "fc1_w": nrm((3 * H * W, 32), 3 * H * W), "fc1_b": nrm((32,), 3 * H * W),
        "fc2_w": nrm((32,), 32), "fc2_b": nrm((1,), 32),
        "fc_w": nrm((32 * H * W, 7), 32 * H * W), "fc_b": nrm((7,), 32 * H * W),
    }


if __name__ == "__main__":
    key = jax.random.PRNGKey(0)
    pkey, xkey = jax.random.split(key)
    params = init_params(pkey)
    x = jax.random.normal(xkey, (2, 3, H, W), jnp.float32)  # batch=2 boards

    fwd = jax.jit(connect4_forward)
    policy, value = fwd(params, x)
    jax.block_until_ready((policy, value))

    assert policy.shape == (2, 7) and value.shape == (2, 1)
    assert bool(jnp.all(jnp.isfinite(policy))) and bool(jnp.all(jnp.isfinite(value)))
    assert bool(jnp.all(jnp.abs(jnp.sum(policy, axis=1) - 1.0) < 1e-3))
    assert bool(jnp.all(jnp.abs(value) <= 1.0))
    print("KERNEL_OK")
</pallas_src>

<mosaic_0001>
module attributes {stable_mosaic.version = 11 : i64} {
  func.func @_head_kernel(%arg0: i32, %arg1: memref<2x126xf32, #tpu.memory_space<vmem>>, %arg2: memref<2x1344xf32, #tpu.memory_space<vmem>>, %arg3: memref<126x32xf32, #tpu.memory_space<vmem>>, %arg4: memref<1x32xf32, #tpu.memory_space<vmem>>, %arg5: memref<1x32xf32, #tpu.memory_space<vmem>>, %arg6: memref<1x1xf32, #tpu.memory_space<vmem>>, %arg7: memref<1344x7xf32, #tpu.memory_space<vmem>>, %arg8: memref<1x7xf32, #tpu.memory_space<vmem>>, %arg9: memref<2x1xf32, #tpu.memory_space<vmem>>, %arg10: memref<2x7xf32, #tpu.memory_space<vmem>>) attributes {dimension_semantics = [#tpu.dimension_semantics<arbitrary>], iteration_bounds = array<i64: 1>, scalar_prefetch = 0 : i64, scratch_operands = 0 : i64, tpu.core_type = #tpu.core_type<tc>, window_params = [{pipeline_mode = #tpu.pipeline_mode<synchronous>, transform_indices = @transform_0, window_bounds = array<i64: 2, 126>}, {pipeline_mode = #tpu.pipeline_mode<synchronous>, transform_indices = @transform_1, window_bounds = array<i64: 2, 1344>}, {pipeline_mode = #tpu.pipeline_mode<synchronous>, transform_indices = @transform_2, window_bounds = array<i64: 126, 32>}, {pipeline_mode = #tpu.pipeline_mode<synchronous>, transform_indices = @transform_3, window_bounds = array<i64: 1, 32>}, {pipeline_mode = #tpu.pipeline_mode<synchronous>, transform_indices = @transform_4, window_bounds = array<i64: 1, 32>}, {pipeline_mode = #tpu.pipeline_mode<synchronous>, transform_indices = @transform_5, window_bounds = array<i64: 1, 1>}, {pipeline_mode = #tpu.pipeline_mode<synchronous>, transform_indices = @transform_6, window_bounds = array<i64: 1344, 7>}, {pipeline_mode = #tpu.pipeline_mode<synchronous>, transform_indices = @transform_7, window_bounds = array<i64: 1, 7>}, {pipeline_mode = #tpu.pipeline_mode<synchronous>, transform_indices = @transform_8, window_bounds = array<i64: 2, 1>}, {pipeline_mode = #tpu.pipeline_mode<synchronous>, transform_indices = @transform_9, window_bounds = array<i64: 2, 7>}]} {
    %c0 = arith.constant 0 : index
    %c0_0 = arith.constant 0 : index
    %0 = vector.load %arg1[%c0, %c0_0] : memref<2x126xf32, #tpu.memory_space<vmem>>, vector<2x126xf32>
    %c0_1 = arith.constant 0 : index
    %c0_2 = arith.constant 0 : index
    %1 = vector.load %arg3[%c0_1, %c0_2] : memref<126x32xf32, #tpu.memory_space<vmem>>, vector<126x32xf32>
    %cst = arith.constant dense<0.000000e+00> : vector<2x32xf32>
    %2 = tpu.matmul %0, %1, %cst {dimension_numbers = #tpu.dot_dimension_numbers<[1], [0], [0], [1], [0, 0, 1, 1], [], []>} : vector<2x126xf32>, vector<126x32xf32>, vector<2x32xf32> -> vector<2x32xf32>
    %c0_3 = arith.constant 0 : index
    %c0_4 = arith.constant 0 : index
    %3 = vector.load %arg4[%c0_3, %c0_4] : memref<1x32xf32, #tpu.memory_space<vmem>>, vector<1x32xf32>
    %4 = vector.broadcast %3 : vector<1x32xf32> to vector<2x32xf32>
    %5 = arith.addf %2, %4 : vector<2x32xf32>
    %cst_5 = arith.constant 0.000000e+00 : f32
    %6 = vector.broadcast %cst_5 : f32 to vector<2x32xf32>
    %7 = arith.maximumf %5, %6 : vector<2x32xf32>
    %c0_6 = arith.constant 0 : index
    %c0_7 = arith.constant 0 : index
    %8 = vector.load %arg5[%c0_6, %c0_7] : memref<1x32xf32, #tpu.memory_space<vmem>>, vector<1x32xf32>
    %9 = vector.broadcast %8 : vector<1x32xf32> to vector<2x32xf32>
    %10 = arith.mulf %7, %9 : vector<2x32xf32>
    %cst_8 = arith.constant dense<0.000000e+00> : vector<2xf32>
    %11 = vector.multi_reduction <add>, %10, %cst_8 [1] : vector<2x32xf32> to vector<2xf32>
    %12 = vector.shape_cast %11 : vector<2xf32> to vector<2x1xf32>
    %c0_9 = arith.constant 0 : index
    %c0_10 = arith.constant 0 : index
    %13 = vector.load %arg6[%c0_9, %c0_10] : memref<1x1xf32, #tpu.memory_space<vmem>>, vector<1x1xf32>
    %14 = vector.broadcast %13 : vector<1x1xf32> to vector<2x1xf32>
    %15 = arith.addf %12, %14 : vector<2x1xf32>
    %16 = math.tanh %15 : vector<2x1xf32>
    %c0_11 = arith.constant 0 : index
    %c0_12 = arith.constant 0 : index
    %17 = vector.load %arg9[%c0_11, %c0_12] : memref<2x1xf32, #tpu.memory_space<vmem>>, vector<2x1xf32>
    tpu.vector_store %arg9[%c0_11, %c0_12], %16 {strides = array<i32>} : memref<2x1xf32, #tpu.memory_space<vmem>>, vector<2x1xf32>,
    %c0_13 = arith.constant 0 : index
    %c0_14 = arith.constant 0 : index
    %18 = vector.load %arg2[%c0_13, %c0_14] : memref<2x1344xf32, #tpu.memory_space<vmem>>, vector<2x1344xf32>
    %c0_15 = arith.constant 0 : index
    %c0_16 = arith.constant 0 : index
    %19 = vector.load %arg7[%c0_15, %c0_16] : memref<1344x7xf32, #tpu.memory_space<vmem>>, vector<1344x7xf32>
    %cst_17 = arith.constant dense<0.000000e+00> : vector<2x7xf32>
    %20 = tpu.matmul %18, %19, %cst_17 {dimension_numbers = #tpu.dot_dimension_numbers<[1], [0], [0], [1], [0, 0, 1, 1], [], []>} : vector<2x1344xf32>, vector<1344x7xf32>, vector<2x7xf32> -> vector<2x7xf32>
    %c0_18 = arith.constant 0 : index
    %c0_19 = arith.constant 0 : index
    %21 = vector.load %arg8[%c0_18, %c0_19] : memref<1x7xf32, #tpu.memory_space<vmem>>, vector<1x7xf32>
    %22 = vector.broadcast %21 : vector<1x7xf32> to vector<2x7xf32>
    %23 = arith.addf %20, %22 : vector<2x7xf32>
    %cst_20 = arith.constant dense<0xFF800000> : vector<2xf32>
    %24 = vector.multi_reduction <maximumf>, %23, %cst_20 [1] : vector<2x7xf32> to vector<2xf32>
    %25 = vector.shape_cast %24 : vector<2xf32> to vector<2x1xf32>
    %26 = vector.broadcast %25 : vector<2x1xf32> to vector<2x7xf32>
    %27 = arith.subf %23, %26 : vector<2x7xf32>
    %28 = math.exp %27 : vector<2x7xf32>
    %cst_21 = arith.constant dense<0.000000e+00> : vector<2xf32>
    %29 = vector.multi_reduction <add>, %28, %cst_21 [1] : vector<2x7xf32> to vector<2xf32>
    %30 = vector.shape_cast %29 : vector<2xf32> to vector<2x1xf32>
    %31 = vector.broadcast %30 : vector<2x1xf32> to vector<2x7xf32>
    %32 = arith.divf %28, %31 : vector<2x7xf32>
    %c0_22 = arith.constant 0 : index
    %c0_23 = arith.constant 0 : index
    %33 = vector.load %arg10[%c0_22, %c0_23] : memref<2x7xf32, #tpu.memory_space<vmem>>, vector<2x7xf32>
    tpu.vector_store %arg10[%c0_22, %c0_23], %32 {strides = array<i32>} : memref<2x7xf32, #tpu.memory_space<vmem>>, vector<2x7xf32>,
    return
  }
  func.func @transform_0(%arg0: i32) -> (i32, i32) {
    %c0_i32 = arith.constant 0 : i32
    %c0_i32_0 = arith.constant 0 : i32
    %c0_i32_1 = arith.constant 0 : i32
    return %c0_i32, %c0_i32_0 : i32, i32
  }
  func.func @transform_1(%arg0: i32) -> (i32, i32) {
    %c0_i32 = arith.constant 0 : i32
    %c0_i32_0 = arith.constant 0 : i32
    %c0_i32_1 = arith.constant 0 : i32
    return %c0_i32, %c0_i32_0 : i32, i32
  }
  func.func @transform_2(%arg0: i32) -> (i32, i32) {
    %c0_i32 = arith.constant 0 : i32
    %c0_i32_0 = arith.constant 0 : i32
    %c0_i32_1 = arith.constant 0 : i32
    return %c0_i32, %c0_i32_0 : i32, i32
  }
  func.func @transform_3(%arg0: i32) -> (i32, i32) {
    %c0_i32 = arith.constant 0 : i32
    %c0_i32_0 = arith.constant 0 : i32
    %c0_i32_1 = arith.constant 0 : i32
    return %c0_i32, %c0_i32_0 : i32, i32
  }
  func.func @transform_4(%arg0: i32) -> (i32, i32) {
    %c0_i32 = arith.constant 0 : i32
    %c0_i32_0 = arith.constant 0 : i32
    %c0_i32_1 = arith.constant 0 : i32
    return %c0_i32, %c0_i32_0 : i32, i32
  }
  func.func @transform_5(%arg0: i32) -> (i32, i32) {
    %c0_i32 = arith.constant 0 : i32
    %c0_i32_0 = arith.constant 0 : i32
    %c0_i32_1 = arith.constant 0 : i32
    return %c0_i32, %c0_i32_0 : i32, i32
  }
  func.func @transform_6(%arg0: i32) -> (i32, i32) {
    %c0_i32 = arith.constant 0 : i32
    %c0_i32_0 = arith.constant 0 : i32
    %c0_i32_1 = arith.constant 0 : i32
    return %c0_i32, %c0_i32_0 : i32, i32
  }
  func.func @transform_7(%arg0: i32) -> (i32, i32) {
    %c0_i32 = arith.constant 0 : i32
    %c0_i32_0 = arith.constant 0 : i32
    %c0_i32_1 = arith.constant 0 : i32
    return %c0_i32, %c0_i32_0 : i32, i32
  }
  func.func @transform_8(%arg0: i32) -> (i32, i32) {
    %c0_i32 = arith.constant 0 : i32
    %c0_i32_0 = arith.constant 0 : i32
    %c0_i32_1 = arith.constant 0 : i32
    return %c0_i32, %c0_i32_0 : i32, i32
  }
  func.func @transform_9(%arg0: i32) -> (i32, i32) {
    %c0_i32 = arith.constant 0 : i32
    %c0_i32_0 = arith.constant 0 : i32
    %c0_i32_1 = arith.constant 0 : i32
    return %c0_i32, %c0_i32_0 : i32, i32
  }
}

module attributes {stable_mosaic.version = 11 : i64} {
  func.func @_tower_kernel(%arg0: i32, %arg1: memref<144x128xf32, #tpu.memory_space<vmem>>, %arg2: memref<144x128xf32, #tpu.memory_space<vmem>>, %arg3: memref<1x9x128x128xbf16, #tpu.memory_space<vmem>>, %arg4: memref<1x3x128xf32, #tpu.memory_space<vmem>>, %arg5: memref<128x128xbf16, #tpu.memory_space<vmem>>, %arg6: memref<3x128xf32, #tpu.memory_space<vmem>>, %arg7: memref<144x128xf32, #tpu.memory_space<vmem>>, %arg8: memref<176x128xf32, #tpu.memory_space<vmem>>, %arg9: memref<144x128xf32, #tpu.memory_space<vmem>>) attributes {dimension_semantics = [#tpu.dimension_semantics<arbitrary>], iteration_bounds = array<i64: 39>, scalar_prefetch = 0 : i64, scratch_operands = 2 : i64, tpu.core_type = #tpu.core_type<tc>, window_params = [{pipeline_mode = #tpu.pipeline_mode<synchronous>, transform_indices = @transform_0, window_bounds = array<i64: 144, 128>}, {pipeline_mode = #tpu.pipeline_mode<synchronous>, transform_indices = @transform_1, window_bounds = array<i64: 144, 128>}, {transform_indices = @transform_2, window_bounds = array<i64: 1, 9, 128, 128>}, {transform_indices = @transform_3, window_bounds = array<i64: 1, 3, 128>}, {pipeline_mode = #tpu.pipeline_mode<synchronous>, transform_indices = @transform_4, window_bounds = array<i64: 128, 128>}, {pipeline_mode = #tpu.pipeline_mode<synchronous>, transform_indices = @transform_5, window_bounds = array<i64: 3, 128>}, {pipeline_mode = #tpu.pipeline_mode<synchronous>, transform_indices = @transform_6, window_bounds = array<i64: 144, 128>}]} {
    %c0_i32 = arith.constant 0 : i32
    %0 = arith.cmpi eq, %arg0, %c0_i32 : i32
    %1 = arith.extui %0 : i1 to i32
    %c0_i32_0 = arith.constant 0 : i32
    %2 = arith.cmpi ne, %1, %c0_i32_0 : i32
    scf.if %2 {
      %cst_72 = arith.constant 0.000000e+00 : f32
      %109 = vector.broadcast %cst_72 : f32 to vector<176x128xf32>
      %c0_73 = arith.constant 0 : index
      %c0_74 = arith.constant 0 : index
      %110 = vector.load %arg8[%c0_73, %c0_74] : memref<176x128xf32, #tpu.memory_space<vmem>>, vector<176x128xf32>
      tpu.vector_store %arg8[%c0_73, %c0_74], %109 {strides = array<i32>} : memref<176x128xf32, #tpu.memory_space<vmem>>, vector<176x128xf32>,
      %c0_75 = arith.constant 0 : index
      %c0_76 = arith.constant 0 : index
      %111 = vector.load %arg1[%c0_75, %c0_76] : memref<144x128xf32, #tpu.memory_space<vmem>>, vector<144x128xf32>
      %c16_77 = arith.constant 16 : index
      %c0_78 = arith.constant 0 : index
      %112 = vector.load %arg8[%c16_77, %c0_78] : memref<176x128xf32, #tpu.memory_space<vmem>>, vector<144x128xf32>
      tpu.vector_store %arg8[%c16_77, %c0_78], %111 {strides = array<i32>} : memref<176x128xf32, #tpu.memory_space<vmem>>, vector<144x128xf32>,
      %cst_79 = arith.constant 0.000000e+00 : f32
      %113 = vector.broadcast %cst_79 : f32 to vector<144x128xf32>
      %c0_80 = arith.constant 0 : index
      %c0_81 = arith.constant 0 : index
      %114 = vector.load %arg9[%c0_80, %c0_81] : memref<144x128xf32, #tpu.memory_space<vmem>>, vector<144x128xf32>
      tpu.vector_store %arg9[%c0_80, %c0_81], %113 {strides = array<i32>} : memref<144x128xf32, #tpu.memory_space<vmem>>, vector<144x128xf32>,
    } else {
    }
    %c1_i32 = arith.constant 1 : i32
    %3 = arith.andi %arg0, %c1_i32 : i32
    %c1_i32_1 = arith.constant 1 : i32
    %4 = arith.cmpi eq, %3, %c1_i32_1 : i32
    %5 = arith.extui %4 : i1 to i32
    %c0_i32_2 = arith.constant 0 : i32
    %6 = arith.cmpi ne, %5, %c0_i32_2 : i32
    scf.if %6 {
      %c16_72 = arith.constant 16 : index
      %c0_73 = arith.constant 0 : index
      %109 = vector.load %arg8[%c16_72, %c0_73] : memref<176x128xf32, #tpu.memory_space<vmem>>, vector<144x128xf32>
      %c0_74 = arith.constant 0 : index
      %c0_75 = arith.constant 0 : index
      %110 = vector.load %arg9[%c0_74, %c0_75] : memref<144x128xf32, #tpu.memory_space<vmem>>, vector<144x128xf32>
      tpu.vector_store %arg9[%c0_74, %c0_75], %109 {strides = array<i32>} : memref<144x128xf32, #tpu.memory_space<vmem>>, vector<144x128xf32>,
    } else {
    }
    %c0 = arith.constant 0 : index
    %c0_3 = arith.constant 0 : index
    %7 = vector.load %arg2[%c0, %c0_3] : memref<144x128xf32, #tpu.memory_space<vmem>>, vector<144x128xf32>
    %cst = arith.constant 0.000000e+00 : f32
    %8 = vector.broadcast %cst : f32 to vector<144x128xf32>
    %c6 = arith.constant 6 : index
    %c0_4 = arith.constant 0 : index
    %9 = vector.load %arg8[%c6, %c0_4] : memref<176x128xf32, #tpu.memory_space<vmem>>, vector<144x128xf32>
    %10 = arith.truncf %9 : vector<144x128xf32> to vector<144x128xbf16>
    %c0_5 = arith.constant 0 : index
    %c0_6 = arith.constant 0 : index
    %c0_7 = arith.constant 0 : index
    %c0_8 = arith.constant 0 : index
    %11 = vector.load %arg3[%c0_5, %c0_6, %c0_7, %c0_8] : memref<1x9x128x128xbf16, #tpu.memory_space<vmem>>, vector<1x1x128x128xbf16>
    %12 = vector.shape_cast %11 : vector<1x1x128x128xbf16> to vector<128x128xbf16>
    %cst_9 = arith.constant dense<0.000000e+00> : vector<144x128xf32>
    %13 = tpu.matmul %10, %12, %cst_9 {dimension_numbers = #tpu.dot_dimension_numbers<[1], [0], [0], [1], [0, 0, 1, 1], [], []>} : vector<144x128xbf16>, vector<128x128xbf16>, vector<144x128xf32> -> vector<144x128xf32>
    %14 = arith.addf %8, %13 : vector<144x128xf32>
    %c7 = arith.constant 7 : index
    %c0_10 = arith.constant 0 : index
    %15 = vector.load %arg8[%c7, %c0_10] : memref<176x128xf32, #tpu.memory_space<vmem>>, vector<144x128xf32>
    %16 = arith.truncf %15 : vector<144x128xf32> to vector<144x128xbf16>
    %c0_11 = arith.constant 0 : index
    %c1 = arith.constant 1 : index
    %c0_12 = arith.constant 0 : index
    %c0_13 = arith.constant 0 : index
    %17 = vector.load %arg3[%c0_11, %c1, %c0_12, %c0_13] : memref<1x9x128x128xbf16, #tpu.memory_space<vmem>>, vector<1x1x128x128xbf16>
    %18 = vector.shape_cast %17 : vector<1x1x128x128xbf16> to vector<128x128xbf16>
    %cst_14 = arith.constant dense<0.000000e+00> : vector<144x128xf32>
    %19 = tpu.matmul %16, %18, %cst_14 {dimension_numbers = #tpu.dot_dimension_numbers<[1], [0], [0], [1], [0, 0, 1, 1], [], []>} : vector<144x128xbf16>, vector<128x128xbf16>, vector<144x128xf32> -> vector<144x128xf32>
    %20 = arith.addf %14, %19 : vector<144x128xf32>
    %c8 = arith.constant 8 : index
    %c0_15 = arith.constant 0 : index
    %21 = vector.load %arg8[%c8, %c0_15] : memref<176x128xf32, #tpu.memory_space<vmem>>, vector<144x128xf32>
    %22 = arith.truncf %21 : vector<144x128xf32> to vector<144x128xbf16>
    %c0_16 = arith.constant 0 : index
    %c2 = arith.constant 2 : index
    %c0_17 = arith.constant 0 : index
    %c0_18 = arith.constant 0 : index
    %23 = vector.load %arg3[%c0_16, %c2, %c0_17, %c0_18] : memref<1x9x128x128xbf16, #tpu.memory_space<vmem>>, vector<1x1x128x128xbf16>
    %24 = vector.shape_cast %23 : vector<1x1x128x128xbf16> to vector<128x128xbf16>
    %cst_19 = arith.constant dense<0.000000e+00> : vector<144x128xf32>
    %25 = tpu.matmul %22, %24, %cst_19 {dimension_numbers = #tpu.dot_dimension_numbers<[1], [0], [0], [1], [0, 0, 1, 1], [], []>} : vector<144x128xbf16>, vector<128x128xbf16>, vector<144x128xf32> -> vector<144x128xf32>
    %26 = arith.addf %20, %25 : vector<144x128xf32>
    %c15 = arith.constant 15 : index
    %c0_20 = arith.constant 0 : index
    %27 = vector.load %arg8[%c15, %c0_20] : memref<176x128xf32, #tpu.memory_space<vmem>>, vector<144x128xf32>
    %28 = arith.truncf %27 : vector<144x128xf32> to vector<144x128xbf16>
    %c0_21 = arith.constant 0 : index
    %c3 = arith.constant 3 : index
    %c0_22 = arith.constant 0 : index
    %c0_23 = arith.constant 0 : index
    %29 = vector.load %arg3[%c0_21, %c3, %c0_22, %c0_23] : memref<1x9x128x128xbf16, #tpu.memory_space<vmem>>, vector<1x1x128x128xbf16>
    %30 = vector.shape_cast %29 : vector<1x1x128x128xbf16> to vector<128x128xbf16>
    %cst_24 = arith.constant dense<0.000000e+00> : vector<144x128xf32>
    %31 = tpu.matmul %28, %30, %cst_24 {dimension_numbers = #tpu.dot_dimension_numbers<[1], [0], [0], [1], [0, 0, 1, 1], [], []>} : vector<144x128xbf16>, vector<128x128xbf16>, vector<144x128xf32> -> vector<144x128xf32>
    %32 = arith.addf %26, %31 : vector<144x128xf32>
    %c16 = arith.constant 16 : index
    %c0_25 = arith.constant 0 : index
    %33 = vector.load %arg8[%c16, %c0_25] : memref<176x128xf32, #tpu.memory_space<vmem>>, vector<144x128xf32>
    %34 = arith.truncf %33 : vector<144x128xf32> to vector<144x128xbf16>
    %c0_26 = arith.constant 0 : index
    %c4 = arith.constant 4 : index
    %c0_27 = arith.constant 0 : index
    %c0_28 = arith.constant 0 : index
    %35 = vector.load %arg3[%c0_26, %c4, %c0_27, %c0_28] : memref<1x9x128x128xbf16, #tpu.memory_space<vmem>>, vector<1x1x128x128xbf16>
    %36 = vector.shape_cast %35 : vector<1x1x128x128xbf16> to vector<128x128xbf16>
    %cst_29 = arith.constant dense<0.000000e+00> : vector<144x128xf32>
    %37 = tpu.matmul %34, %36, %cst_29 {dimension_numbers = #tpu.dot_dimension_numbers<[1], [0], [0], [1], [0, 0, 1, 1], [], []>} : vector<144x128xbf16>, vector<128x128xbf16>, vector<144x128xf32> -> vector<144x128xf32>
    %38 = arith.addf %32, %37 : vector<144x128xf32>
    %c17 = arith.constant 17 : index
    %c0_30 = arith.constant 0 : index
    %39 = vector.load %arg8[%c17, %c0_30] : memref<176x128xf32, #tpu.memory_space<vmem>>, vector<144x128xf32>
    %40 = arith.truncf %39 : vector<144x128xf32> to vector<144x128xbf16>
    %c0_31 = arith.constant 0 : index
    %c5 = arith.constant 5 : index
    %c0_32 = arith.constant 0 : index
    %c0_33 = arith.constant 0 : index
    %41 = vector.load %arg3[%c0_31, %c5, %c0_32, %c0_33] : memref<1x9x128x128xbf16, #tpu.memory_space<vmem>>, vector<1x1x128x128xbf16>
    %42 = vector.shape_cast %41 : vector<1x1x128x128xbf16> to vector<128x128xbf16>
    %cst_34 = arith.constant dense<0.000000e+00> : vector<144x128xf32>
    %43 = tpu.matmul %40, %42, %cst_34 {dimension_numbers = #tpu.dot_dimension_numbers<[1], [0], [0], [1], [0, 0, 1, 1], [], []>} : vector<144x128xbf16>, vector<128x128xbf16>, vector<144x128xf32> -> vector<144x128xf32>
    %44 = arith.addf %38, %43 : vector<144x128xf32>
    %c24 = arith.constant 24 : index
    %c0_35 = arith.constant 0 : index
    %45 = vector.load %arg8[%c24, %c0_35] : memref<176x128xf32, #tpu.memory_space<vmem>>, vector<144x128xf32>
    %46 = arith.truncf %45 : vector<144x128xf32> to vector<144x128xbf16>
    %c0_36 = arith.constant 0 : index
    %c6_37 = arith.constant 6 : index
    %c0_38 = arith.constant 0 : index
    %c0_39 = arith.constant 0 : index
    %47 = vector.load %arg3[%c0_36, %c6_37, %c0_38, %c0_39] : memref<1x9x128x128xbf16, #tpu.memory_space<vmem>>, vector<1x1x128x128xbf16>
    %48 = vector.shape_cast %47 : vector<1x1x128x128xbf16> to vector<128x128xbf16>
    %cst_40 = arith.constant dense<0.000000e+00> : vector<144x128xf32>
    %49 = tpu.matmul %46, %48, %cst_40 {dimension_numbers = #tpu.dot_dimension_numbers<[1], [0], [0], [1], [0, 0, 1, 1], [], []>} : vector<144x128xbf16>, vector<128x128xbf16>, vector<144x128xf32> -> vector<144x128xf32>
    %50 = arith.addf %44, %49 : vector<144x128xf32>
    %c25 = arith.constant 25 : index
    %c0_41 = arith.constant 0 : index
    %51 = vector.load %arg8[%c25, %c0_41] : memref<176x128xf32, #tpu.memory_space<vmem>>, vector<144x128xf32>
    %52 = arith.truncf %51 : vector<144x128xf32> to vector<144x128xbf16>
    %c0_42 = arith.constant 0 : index
    %c7_43 = arith.constant 7 : index
    %c0_44 = arith.constant 0 : index
    %c0_45 = arith.constant 0 : index
    %53 = vector.load %arg3[%c0_42, %c7_43, %c0_44, %c0_45] : memref<1x9x128x128xbf16, #tpu.memory_space<vmem>>, vector<1x1x128x128xbf16>
    %54 = vector.shape_cast %53 : vector<1x1x128x128xbf16> to vector<128x128xbf16>
    %cst_46 = arith.constant dense<0.000000e+00> : vector<144x128xf32>
    %55 = tpu.matmul %52, %54, %cst_46 {dimension_numbers = #tpu.dot_dimension_numbers<[1], [0], [0], [1], [0, 0, 1, 1], [], []>} : vector<144x128xbf16>, vector<128x128xbf16>, vector<144x128xf32> -> vector<144x128xf32>
    %56 = arith.addf %50, %55 : vector<144x128xf32>
    %c26 = arith.constant 26 : index
    %c0_47 = arith.constant 0 : index
    %57 = vector.load %arg8[%c26, %c0_47] : memref<176x128xf32, #tpu.memory_space<vmem>>, vector<144x128xf32>
    %58 = arith.truncf %57 : vector<144x128xf32> to vector<144x128xbf16>
    %c0_48 = arith.constant 0 : index
    %c8_49 = arith.constant 8 : index
    %c0_50 = arith.constant 0 : index
    %c0_51 = arith.constant 0 : index
    %59 = vector.load %arg3[%c0_48, %c8_49, %c0_50, %c0_51] : memref<1x9x128x128xbf16, #tpu.memory_space<vmem>>, vector<1x1x128x128xbf16>
    %60 = vector.shape_cast %59 : vector<1x1x128x128xbf16> to vector<128x128xbf16>
    %cst_52 = arith.constant dense<0.000000e+00> : vector<144x128xf32>
    %61 = tpu.matmul %58, %60, %cst_52 {dimension_numbers = #tpu.dot_dimension_numbers<[1], [0], [0], [1], [0, 0, 1, 1], [], []>} : vector<144x128xbf16>, vector<128x128xbf16>, vector<144x128xf32> -> vector<144x128xf32>
    %62 = arith.addf %56, %61 : vector<144x128xf32>
    %c0_53 = arith.constant 0 : index
    %c0_54 = arith.constant 0 : index
    %c0_55 = arith.constant 0 : index
    %63 = vector.load %arg4[%c0_53, %c0_54, %c0_55] : memref<1x3x128xf32, #tpu.memory_space<vmem>>, vector<1x3x128xf32>
    %64 = vector.shape_cast %63 : vector<1x3x128xf32> to vector<3x128xf32>
    %65 = vector.extract_strided_slice %64 {offsets = [0, 0], sizes = [1, 128], strides = [1, 1]} : vector<3x128xf32> to vector<1x128xf32>
    %66 = vector.extract_strided_slice %64 {offsets = [1, 0], sizes = [1, 128], strides = [1, 1]} : vector<3x128xf32> to vector<1x128xf32>
    %67 = vector.extract_strided_slice %64 {offsets = [2, 0], sizes = [1, 128], strides = [1, 1]} : vector<3x128xf32> to vector<1x128xf32>
    %68 = vector.broadcast %67 : vector<1x128xf32> to vector<144x128xf32>
    %69 = arith.addf %62, %68 : vector<144x128xf32>
    %70 = arith.mulf %69, %7 : vector<144x128xf32>
    %cst_56 = arith.constant dense<0.000000e+00> : vector<128xf32>
    %71 = vector.multi_reduction <add>, %70, %cst_56 [0] : vector<144x128xf32> to vector<128xf32>
    %72 = vector.shape_cast %71 : vector<128xf32> to vector<1x128xf32>
    %cst_57 = arith.constant 0.0119047621 : f32
    %73 = vector.broadcast %cst_57 : f32 to vector<1x128xf32>
    %74 = arith.mulf %72, %73 : vector<1x128xf32>
    %75 = vector.broadcast %74 : vector<1x128xf32> to vector<144x128xf32>
    %76 = arith.subf %69, %75 : vector<144x128xf32>
    %77 = arith.mulf %76, %7 : vector<144x128xf32>
    %78 = arith.mulf %77, %77 : vector<144x128xf32>
    %cst_58 = arith.constant dense<0.000000e+00> : vector<128xf32>
    %79 = vector.multi_reduction <add>, %78, %cst_58 [0] : vector<144x128xf32> to vector<128xf32>
    %80 = vector.shape_cast %79 : vector<128xf32> to vector<1x128xf32>
    %cst_59 = arith.constant 0.0119047621 : f32
    %81 = vector.broadcast %cst_59 : f32 to vector<1x128xf32>
    %82 = arith.mulf %80, %81 : vector<1x128xf32>
    %83 = vector.broadcast %74 : vector<1x128xf32> to vector<144x128xf32>
    %84 = arith.subf %69, %83 : vector<144x128xf32>
    %cst_60 = arith.constant 9.99999974E-6 : f32
    %85 = vector.broadcast %cst_60 : f32 to vector<1x128xf32>
    %86 = arith.addf %82, %85 : vector<1x128xf32>
    %87 = math.rsqrt %86 : vector<1x128xf32>
    %88 = arith.mulf %65, %87 : vector<1x128xf32>
    %89 = vector.broadcast %88 : vector<1x128xf32> to vector<144x128xf32>
    %90 = arith.mulf %84, %89 : vector<144x128xf32>
    %91 = vector.broadcast %66 : vector<1x128xf32> to vector<144x128xf32>
    %92 = arith.addf %90, %91 : vector<144x128xf32>
    %c2_i32 = arith.constant 2 : i32
    %93 = arith.cmpi sge, %arg0, %c2_i32 : i32
    %c1_i32_61 = arith.constant 1 : i32
    %94 = arith.andi %arg0, %c1_i32_61 : i32
    %c0_i32_62 = arith.constant 0 : i32
    %95 = arith.cmpi eq, %94, %c0_i32_62 : i32
    %96 = arith.andi %93, %95 : i1
    %cst_63 = arith.constant 1.000000e+00 : f32
    %cst_64 = arith.constant 0.000000e+00 : f32
    %97 = arith.select %96, %cst_63, %cst_64 : f32
    %c0_65 = arith.constant 0 : index
    %c0_66 = arith.constant 0 : index
    %98 = vector.load %arg9[%c0_65, %c0_66] : memref<144x128xf32, #tpu.memory_space<vmem>>, vector<144x128xf32>
    %99 = vector.broadcast %97 : f32 to vector<144x128xf32>
    %100 = arith.mulf %99, %98 : vector<144x128xf32>
    %101 = arith.addf %92, %100 : vector<144x128xf32>
    %cst_67 = arith.constant 0.000000e+00 : f32
    %102 = vector.broadcast %cst_67 : f32 to vector<144x128xf32>
    %103 = arith.maximumf %101, %102 : vector<144x128xf32>
    %104 = arith.mulf %103, %7 : vector<144x128xf32>
    %c16_68 = arith.constant 16 : index
    %c0_69 = arith.constant 0 : index
    %105 = vector.load %arg8[%c16_68, %c0_69] : memref<176x128xf32, #tpu.memory_space<vmem>>, vector<144x128xf32>
    tpu.vector_store %arg8[%c16_68, %c0_69], %104 {strides = array<i32>} : memref<176x128xf32, #tpu.memory_space<vmem>>, vector<144x128xf32>,
    %c38_i32 = arith.constant 38 : i32
    %106 = arith.cmpi eq, %arg0, %c38_i32 : i32
    %107 = arith.extui %106 : i1 to i32
    %cst_70 = arith.constant 0.0119047621 : f32
    %c0_i32_71 = arith.constant 0 : i32
    %108 = arith.cmpi ne, %107, %c0_i32_71 : i32
    scf.if %108 {
      %c16_72 = arith.constant 16 : index
      %c0_73 = arith.constant 0 : index
      %109 = vector.load %arg8[%c16_72, %c0_73] : memref<176x128xf32, #tpu.memory_space<vmem>>, vector<144x128xf32>
      %110 = arith.truncf %109 : vector<144x128xf32> to vector<144x128xbf16>
      %c0_74 = arith.constant 0 : index
      %c0_75 = arith.constant 0 : index
      %111 = vector.load %arg5[%c0_74, %c0_75] : memref<128x128xbf16, #tpu.memory_space<vmem>>, vector<128x128xbf16>
      %cst_76 = arith.constant dense<0.000000e+00> : vector<144x128xf32>
      %112 = tpu.matmul %110, %111, %cst_76 {dimension_numbers = #tpu.dot_dimension_numbers<[1], [0], [0], [1], [0, 0, 1, 1], [], []>} : vector<144x128xbf16>, vector<128x128xbf16>, vector<144x128xf32> -> vector<144x128xf32>
      %c0_77 = arith.constant 0 : index
      %c0_78 = arith.constant 0 : index
      %113 = vector.load %arg6[%c0_77, %c0_78] : memref<3x128xf32, #tpu.memory_space<vmem>>, vector<3x128xf32>
      %114 = vector.extract_strided_slice %113 {offsets = [2, 0], sizes = [1, 128], strides = [1, 1]} : vector<3x128xf32> to vector<1x128xf32>
      %115 = vector.broadcast %114 : vector<1x128xf32> to vector<144x128xf32>
      %116 = arith.addf %112, %115 : vector<144x128xf32>
      %117 = arith.mulf %116, %7 : vector<144x128xf32>
      %cst_79 = arith.constant dense<0.000000e+00> : vector<128xf32>
      %118 = vector.multi_reduction <add>, %117, %cst_79 [0] : vector<144x128xf32> to vector<128xf32>
      %119 = vector.shape_cast %118 : vector<128xf32> to vector<1x128xf32>
      %120 = vector.broadcast %cst_70 : f32 to vector<1x128xf32>
      %121 = arith.mulf %119, %120 : vector<1x128xf32>
      %122 = vector.broadcast %121 : vector<1x128xf32> to vector<144x128xf32>
      %123 = arith.subf %116, %122 : vector<144x128xf32>
      %124 = arith.mulf %123, %7 : vector<144x128xf32>
      %125 = arith.mulf %124, %124 : vector<144x128xf32>
      %cst_80 = arith.constant dense<0.000000e+00> : vector<128xf32>
      %126 = vector.multi_reduction <add>, %125, %cst_80 [0] : vector<144x128xf32> to vector<128xf32>
      %127 = vector.shape_cast %126 : vector<128xf32> to vector<1x128xf32>
      %128 = vector.broadcast %cst_70 : f32 to vector<1x128xf32>
      %129 = arith.mulf %127, %128 : vector<1x128xf32>
      %130 = vector.broadcast %121 : vector<1x128xf32> to vector<144x128xf32>
      %131 = arith.subf %116, %130 : vector<144x128xf32>
      %132 = vector.extract_strided_slice %113 {offsets = [0, 0], sizes = [1, 128], strides = [1, 1]} : vector<3x128xf32> to vector<1x128xf32>
      %cst_81 = arith.constant 9.99999974E-6 : f32
      %133 = vector.broadcast %cst_81 : f32 to vector<1x128xf32>
      %134 = arith.addf %129, %133 : vector<1x128xf32>
      %135 = math.rsqrt %134 : vector<1x128xf32>
      %136 = arith.mulf %132, %135 : vector<1x128xf32>
      %137 = vector.broadcast %136 : vector<1x128xf32> to vector<144x128xf32>
      %138 = arith.mulf %131, %137 : vector<144x128xf32>
      %139 = vector.extract_strided_slice %113 {offsets = [1, 0], sizes = [1, 128], strides = [1, 1]} : vector<3x128xf32> to vector<1x128xf32>
      %140 = vector.broadcast %139 : vector<1x128xf32> to vector<144x128xf32>
      %141 = arith.addf %138, %140 : vector<144x128xf32>
      %cst_82 = arith.constant 0.000000e+00 : f32
      %142 = vector.broadcast %cst_82 : f32 to vector<144x128xf32>
      %143 = arith.maximumf %141, %142 : vector<144x128xf32>
      %144 = arith.mulf %143, %7 : vector<144x128xf32>
      %c0_83 = arith.constant 0 : index
      %c0_84 = arith.constant 0 : index
      %145 = vector.load %arg7[%c0_83, %c0_84] : memref<144x128xf32, #tpu.memory_space<vmem>>, vector<144x128xf32>
      tpu.vector_store %arg7[%c0_83, %c0_84], %144 {strides = array<i32>} : memref<144x128xf32, #tpu.memory_space<vmem>>, vector<144x128xf32>,
    } else {
    }
    return
  }
  func.func @transform_0(%arg0: i32) -> (i32, i32) {
    %c0_i32 = arith.constant 0 : i32
    %c0_i32_0 = arith.constant 0 : i32
    %c0_i32_1 = arith.constant 0 : i32
    return %c0_i32, %c0_i32_0 : i32, i32
  }
  func.func @transform_1(%arg0: i32) -> (i32, i32) {
    %c0_i32 = arith.constant 0 : i32
    %c0_i32_0 = arith.constant 0 : i32
    %c0_i32_1 = arith.constant 0 : i32
    return %c0_i32, %c0_i32_0 : i32, i32
  }
  func.func @transform_2(%arg0: i32) -> (i32, i32, i32, i32) {
    %c0_i32 = arith.constant 0 : i32
    %c0_i32_0 = arith.constant 0 : i32
    %c0_i32_1 = arith.constant 0 : i32
    %c0_i32_2 = arith.constant 0 : i32
    return %arg0, %c0_i32, %c0_i32_0, %c0_i32_1 : i32, i32, i32, i32
  }
  func.func @transform_3(%arg0: i32) -> (i32, i32, i32) {
    %c0_i32 = arith.constant 0 : i32
    %c0_i32_0 = arith.constant 0 : i32
    %c0_i32_1 = arith.constant 0 : i32
    return %arg0, %c0_i32, %c0_i32_0 : i32, i32, i32
  }
  func.func @transform_4(%arg0: i32) -> (i32, i32) {
    %c0_i32 = arith.constant 0 : i32
    %c0_i32_0 = arith.constant 0 : i32
    %c0_i32_1 = arith.constant 0 : i32
    return %c0_i32, %c0_i32_0 : i32, i32
  }
  func.func @transform_5(%arg0: i32) -> (i32, i32) {
    %c0_i32 = arith.constant 0 : i32
    %c0_i32_0 = arith.constant 0 : i32
    %c0_i32_1 = arith.constant 0 : i32
    return %c0_i32, %c0_i32_0 : i32, i32
  }
  func.func @transform_6(%arg0: i32) -> (i32, i32) {
    %c0_i32 = arith.constant 0 : i32
    %c0_i32_0 = arith.constant 0 : i32
    %c0_i32_1 = arith.constant 0 : i32
    return %c0_i32, %c0_i32_0 : i32, i32
  }
}

</mosaic_0001>

<llo_original>
// kernel: connect4_forward.3
$region0: #{connect4_forward.3}
  #allocation0 [shape = 'u32[]', space=smem, size = 0x4, offset = 0x4, fixed_abs, tag = 'smem constant byte address 0x4 - core index']
  #allocation1 [shape = 'u32[144,128]{1,0:T(1,128)}', space=vmem, size = 0x12000, scoped, tag = 'internal scratch']
  #allocation2 [shape = 'f32[1,1]{1,0:T(1,128)S(1)}', space=vmem, size = 0x200, scoped, tag = 'scoped memory for connect4_forward.3']
  %s0 = inlined_call_operand.vmem [shape: f32[2,126], index: 0, kind: input, shape index: {}]
  %s1 = inlined_call_operand.vmem [shape: f32[2,1344], index: 1, kind: input, shape index: {}]
  %s2 = inlined_call_operand.vmem [shape: f32[126,32], index: 2, kind: input, shape index: {}]
  %s3 = inlined_call_operand.vmem [shape: f32[1,32], index: 3, kind: input, shape index: {}]
  %s4 = inlined_call_operand.vmem [shape: f32[1,32], index: 4, kind: input, shape index: {}]
  %s5 = inlined_call_operand.<no memory space> [shape: f32[1,1], index: 5, kind: input, shape index: {}]
  %s6 = inlined_call_operand.vmem [shape: f32[1344,7], index: 6, kind: input, shape index: {}]
  %s7 = inlined_call_operand.vmem [shape: f32[1,7], index: 7, kind: input, shape index: {}]
  %s8 = inlined_call_operand.vmem [shape: f32[2,1], index: 8, kind: output, shape index: {0}]
  %s9 = inlined_call_operand.hbm [shape: f32[2,7], index: 9, kind: output, shape index: {1}]
  %10 = xla_tuple %s8, %s9
  %s11 = sld [smem:[#allocation0]]
  $region50: #{connect4_forward.3} parent=0
    _
  %s13 = ssub.s32 1, %s11
  %s14 = scalar_select 0, %s13, %s11
  %v15 = vstv %s5
  %16 = vst [vmem:[#allocation2] sm:$0x1] %v15
  $region1: #{connect4_forward.3} parent=0
    #allocation3 [shape = 'u8[1024]{0}', space=vmem, size = 0x400, scoped, tag = 'output window, operand 1, single buffered']
    #allocation4 [shape = 's32[1]{0}', space=sflag, size = 0x4, scoped, tag = 'scoped memory for connect4_forward.3']
    %17 = vsyncpa [#allocation4], 0
    // Predicated region
    $region2: #{connect4_forward.3} parent=1 // pred_check
      _
    $region3: #{connect4_forward.3} parent=1 // pred_check_branch
      %19 = sbr.rel (0) target = $region5
    $region4: #{connect4_forward.3} parent=1 // pred_region
      _
    $region5: #{connect4_forward.3} parent=1 // pred_fallthru
      _
    // Predicated region
    $region6: #{connect4_forward.3} parent=1 // pred_check
      _
    $region7: #{connect4_forward.3} parent=1 // pred_check_branch
      %21 = sbr.rel (0) target = $region9
    $region8: #{connect4_forward.3} parent=1 // pred_region
      _
    $region9: #{connect4_forward.3} parent=1 // pred_fallthru
      _
    // Predicated region
    $region10: #{connect4_forward.3} parent=1 // pred_check
      _
    $region11: #{connect4_forward.3} parent=1 // pred_check_branch
      %23 = sbr.rel (0) target = $region13
    $region12: #{connect4_forward.3} parent=1 // pred_region
      _
    $region13: #{connect4_forward.3} parent=1 // pred_fallthru
      _
    // Predicated region
    $region14: #{connect4_forward.3} parent=1 // pred_check
      _
    $region15: #{connect4_forward.3} parent=1 // pred_check_branch
      %25 = sbr.rel (0) target = $region17
    $region16: #{connect4_forward.3} parent=1 // pred_region
      _
    $region17: #{connect4_forward.3} parent=1 // pred_fallthru
      _
    // Predicated region
    $region18: #{connect4_forward.3} parent=1 // pred_check
      _
    $region19: #{connect4_forward.3} parent=1 // pred_check_branch
      %27 = sbr.rel (0) target = $region21
    $region20: #{connect4_forward.3} parent=1 // pred_region
      _
    $region21: #{connect4_forward.3} parent=1 // pred_fallthru
      _
    // Predicated region
    $region22: #{connect4_forward.3} parent=1 // pred_check
      _
    $region23: #{connect4_forward.3} parent=1 // pred_check_branch
      %29 = sbr.rel (0) target = $region25
    $region24: #{connect4_forward.3} parent=1 // pred_region
      _
    $region25: #{connect4_forward.3} parent=1 // pred_fallthru
      _
    // Predicated region
    $region26: #{connect4_forward.3} parent=1 // pred_check
      _
    $region27: #{connect4_forward.3} parent=1 // pred_check_branch
      %31 = sbr.rel (0) target = $region29
    $region28: #{connect4_forward.3} parent=1 // pred_region
      _
    $region29: #{connect4_forward.3} parent=1 // pred_fallthru
      _
    // Predicated region
    $region30: #{connect4_forward.3} parent=1 // pred_check
      _
    $region31: #{connect4_forward.3} parent=1 // pred_check_branch
      %33 = sbr.rel (0) target = $region33
    $region32: #{connect4_forward.3} parent=1 // pred_region
      _
    $region33: #{connect4_forward.3} parent=1 // pred_fallthru
      _
    %v34 = vld [vmem:[%s0] sm:$0x3]
    %v35 = vld [vmem:[%s2] sm:$0xff]
    %v36 = vld [vmem:[%s2 + $0x8] sm:$0xff]
    %v37 = vld [vmem:[%s2 + $0x10] sm:$0xff]
    %v38 = vld [vmem:[%s2 + $0x18] sm:$0xff]
    %v39 = vld [vmem:[%s2 + $0x20] sm:$0xff]
    %v40 = vld [vmem:[%s2 + $0x28] sm:$0xff]
    %v41 = vld [vmem:[%s2 + $0x30] sm:$0xff]
    %v42 = vld [vmem:[%s2 + $0x38] sm:$0xff]
    %v43 = vld [vmem:[%s2 + $0x40] sm:$0xff]
    %v44 = vld [vmem:[%s2 + $0x48] sm:$0xff]
    %v45 = vld [vmem:[%s2 + $0x50] sm:$0xff]
    %v46 = vld [vmem:[%s2 + $0x58] sm:$0xff]
    %v47 = vld [vmem:[%s2 + $0x60] sm:$0xff]
    %v48 = vld [vmem:[%s2 + $0x68] sm:$0xff]
    %v49 = vld [vmem:[%s2 + $0x70] sm:$0xff]
    %v50 = vld [vmem:[%s2 + $0x78] sm:$0x3f]
    %v51 = vld [vmem:[%s3] sm:$0x1]
    %v53 = vlaneseq
    %v54 = vshrl.u32 %v53, 7
    %v55 = vsub.s32 0, %v54
    %v56 = vrot.slane %v51, %v55
    %vm58 = vcmask 1031168
    %v60 = vsel %vm58, %v34, 0
    %vm62 = vcmask 1045504
    %v64 = vsel %vm62, %v50, 0
    %66 = vmatprep.subr.mxu0 0.0
    %67 = vmatpush1.msra.mxu0 %v35
    %68 = vmatprep.subr.mxu0 0.0
    %69 = vmatpush1.msra.mxu0 %v36
    %70 = vmatprep.subr.mxu0 0.0
    %71 = vmatpush1.msra.mxu0 %v37
    %72 = vmatprep.subr.mxu0 0.0
    %73 = vmatpush1.msra.mxu0 %v38
    %74 = vmatprep.subr.mxu0 0.0
    %75 = vmatpush1.msra.mxu0 %v39
    %76 = vmatprep.subr.mxu0 0.0
    %77 = vmatpush1.msra.mxu0 %v40
    %78 = vmatprep.subr.mxu0 0.0
    %79 = vmatpush1.msra.mxu0 %v41
    %80 = vmatprep.subr.mxu0 0.0
    %81 = vmatpush1.msra.mxu0 %v42
    %82 = vmatprep.subr.mxu0 0.0
    %83 = vmatpush1.msra.mxu0 %v43
    %84 = vmatprep.subr.mxu0 0.0
    %85 = vmatpush1.msra.mxu0 %v44
    %86 = vmatprep.subr.mxu0 0.0
    %87 = vmatpush1.msra.mxu0 %v45
    %88 = vmatprep.subr.mxu0 0.0
    %89 = vmatpush1.msra.mxu0 %v46
    %90 = vmatprep.subr.mxu0 0.0
    %91 = vmatpush1.msra.mxu0 %v47
    %92 = vmatprep.subr.mxu0 0.0
    %93 = vmatpush1.msra.mxu0 %v48
    %94 = vmatprep.subr.mxu0 0.0
    %95 = vmatpush1.msra.mxu0 %v49
    %96 = vmatprep.subr.mxu0 0.0
    %97 = vmatpush1.msra.mxu0 %v64
    %98 = vmatprep.subr.mxu0 0.0
    %99 = vmatpush1.msra.mxu0 0.0
    %100 = vmatprep.subr.mxu0 0.0
    %101 = vmatpush1.msra.mxu0 0.0
    %102 = vmatprep.subr.mxu0 0.0
    %103 = vmatpush1.msra.mxu0 0.0
    %104 = vmatprep.subr.mxu0 0.0
    %105 = vmatpush1.msra.mxu0 0.0
    %106 = vmatprep.subr.mxu0 0.0
    %107 = vmatpush1.msra.mxu0 0.0
    %108 = vmatprep.subr.mxu0 0.0
    %109 = vmatpush1.msra.mxu0 0.0
    %110 = vmatprep.subr.mxu0 0.0
    %111 = vmatpush1.msra.mxu0 0.0
    %112 = vmatprep.subr.mxu0 0.0
    %113 = vmatpush1.msra.mxu0 0.0
    %114 = vmatprep.subr.mxu0 0.0
    %115 = vmatpush1.msra.mxu0 0.0
    %116 = vmatprep.subr.mxu0 0.0
    %117 = vmatpush1.msra.mxu0 0.0
    %118 = vmatprep.subr.mxu0 0.0
    %119 = vmatpush1.msra.mxu0 0.0
    %120 = vmatprep.subr.mxu0 0.0
    %121 = vmatpush1.msra.mxu0 0.0
    %122 = vmatprep.subr.mxu0 0.0
    %123 = vmatpush1.msra.mxu0 0.0
    %124 = vmatprep.subr.mxu0 0.0
    %125 = vmatpush1.msra.mxu0 0.0
    %126 = vmatprep.subr.mxu0 0.0
    %127 = vmatpush1.msra.mxu0 0.0
    %128 = vmatprep.subr.mxu0 0.0
    %129 = vmatpush1.msra.mxu0 0.0
    %130 = vmatprep.mubr.f32.mxu0 0.0
    %131 = vmatmul.mubr.f32.gmra.mrb[0].mxu0 %v60
    %v132 = vpop.f32.mrb[0].mxu0
    %v133 = vadd.f32 %v56, %v132
    %v134 = vpop.f32.mrb[0].mxu0
    %135 = vdwg.mxu0
    %v136 = vmax.f32 %v133, 0.0
    %v137 = vld [vmem:[%s4] sm:$0x1]
    %v139 = vlaneseq
    %v140 = vshrl.u32 %v139, 7
    %v141 = vsub.s32 0, %v140
    %v142 = vrot.slane %v137, %v141
    %v144 = vmul.f32 %v136, %v142
    %vm145 = vcmask 254976
    %v146 = vsel %vm145, %v144, 0.0
    %147 = vadd.xlane.f32.xlu0 %v146
    %v148 = vpop.xlane.xlu0 %147
    %v149 = vld [vmem:[#allocation2] sm:$0x1]
    %v151 = vlaneseq
    %v152 = vshrl.u32 %v151, 7
    %v153 = vsub.s32 0, %v152
    %v154 = vrot.slane %v149, %v153
    %v156 = vadd.f32 %v148, %v154
    %v157 = vtanh.pop %v156
    %vm158 = vcmask 1024
    %159 = vst.msk [vmem:[%s8] sm:$0x3] %vm158, %v157
    %v160 = vld [vmem:[%s1] sm:$0xff]
    %v161 = vld [vmem:[%s1 + $0x8] sm:$0xff]
    %v162 = vld [vmem:[%s1 + $0x10] sm:$0x3f]
    %v163 = vld [vmem:[%s6] sm:$0xff]
    %v164 = vld [vmem:[%s6 + $0x8] sm:$0xff]
    %v165 = vld [vmem:[%s6 + $0x10] sm:$0xff]
    %v166 = vld [vmem:[%s6 + $0x18] sm:$0xff]
    %v167 = vld [vmem:[%s6 + $0x20] sm:$0xff]
    %v168 = vld [vmem:[%s6 + $0x28] sm:$0xff]
    %v169 = vld [vmem:[%s6 + $0x30] sm:$0xff]
    %v170 = vld [vmem:[%s6 + $0x38] sm:$0xff]
    %v171 = vld [vmem:[%s6 + $0x40] sm:$0xff]
    %v172 = vld [vmem:[%s6 + $0x48] sm:$0xff]
    %v173 = vld [vmem:[%s6 + $0x50] sm:$0xff]
    %v174 = vld [vmem:[%s6 + $0x58] sm:$0xff]
    %v175 = vld [vmem:[%s6 + $0x60] sm:$0xff]
    %v176 = vld [vmem:[%s6 + $0x68] sm:$0xff]
    %v177 = vld [vmem:[%s6 + $0x70] sm:$0xff]
    %v178 = vld [vmem:[%s6 + $0x78] sm:$0xff]
    %v179 = vld [vmem:[%s6 + $0x80] sm:$0xff]
    %v180 = vld [vmem:[%s6 + $0x88] sm:$0xff]
    %v181 = vld [vmem:[%s6 + $0x90] sm:$0xff]
    %v182 = vld [vmem:[%s6 + $0x98] sm:$0xff]
    %v183 = vld [vmem:[%s6 + $0xa0] sm:$0xff]
    %v184 = vld [vmem:[%s6 + $0xa8] sm:$0xff]
    %v185 = vld [vmem:[%s6 + $0xb0] sm:$0xff]
    %v186 = vld [vmem:[%s6 + $0xb8] sm:$0xff]
    %v187 = vld [vmem:[%s6 + $0xc0] sm:$0xff]
    %v188 = vld [vmem:[%s6 + $0xc8] sm:$0xff]
    %v189 = vld [vmem:[%s6 + $0xd0] sm:$0xff]
    %v190 = vld [vmem:[%s6 + $0xd8] sm:$0xff]
    %v191 = vld [vmem:[%s6 + $0xe0] sm:$0xff]
    %v192 = vld [vmem:[%s6 + $0xe8] sm:$0xff]
    %v193 = vld [vmem:[%s6 + $0xf0] sm:$0xff]
    %v194 = vld [vmem:[%s6 + $0xf8] sm:$0xff]
    %v195 = vld [vmem:[%s6 + $0x100] sm:$0xff]
    %v196 = vld [vmem:[%s6 + $0x108] sm:$0xff]
    %v197 = vld [vmem:[%s6 + $0x110] sm:$0xff]
    %v198 = vld [vmem:[%s6 + $0x118] sm:$0xff]
    %v199 = vld [vmem:[%s6 + $0x120] sm:$0xff]
    %v200 = vld [vmem:[%s6 + $0x128] sm:$0xff]
    %v201 = vld [vmem:[%s6 + $0x130] sm:$0xff]
    %v202 = vld [vmem:[%s6 + $0x138] sm:$0xff]
    %v203 = vld [vmem:[%s6 + $0x140] sm:$0xff]
    %v204 = vld [vmem:[%s6 + $0x148] sm:$0xff]
    %v205 = vld [vmem:[%s6 + $0x150] sm:$0xff]
    %v206 = vld [vmem:[%s6 + $0x158] sm:$0xff]
    %v207 = vld [vmem:[%s6 + $0x160] sm:$0xff]
    %v208 = vld [vmem:[%s6 + $0x168] sm:$0xff]
    %v209 = vld [vmem:[%s6 + $0x170] sm:$0xff]
    %v210 = vld [vmem:[%s6 + $0x178] sm:$0xff]
    %v211 = vld [vmem:[%s6 + $0x180] sm:$0xff]
    %v212 = vld [vmem:[%s6 + $0x188] sm:$0xff]
    %v213 = vld [vmem:[%s6 + $0x190] sm:$0xff]
    %v214 = vld [vmem:[%s6 + $0x198] sm:$0xff]
    %v215 = vld [vmem:[%s6 + $0x1a0] sm:$0xff]
    %v216 = vld [vmem:[%s6 + $0x1a8] sm:$0xff]
    %v217 = vld [vmem:[%s6 + $0x1b0] sm:$0xff]
    %v218 = vld [vmem:[%s6 + $0x1b8] sm:$0xff]
    %v219 = vld [vmem:[%s6 + $0x1c0] sm:$0xff]
    %v220 = vld [vmem:[%s6 + $0x1c8] sm:$0xff]
    %v221 = vld [vmem:[%s6 + $0x1d0] sm:$0xff]
    %v222 = vld [vmem:[%s6 + $0x1d8] sm:$0xff]
    %v223 = vld [vmem:[%s6 + $0x1e0] sm:$0xff]
    %v224 = vld [vmem:[%s6 + $0x1e8] sm:$0xff]
    %v225 = vld [vmem:[%s6 + $0x1f0] sm:$0xff]
    %v226 = vld [vmem:[%s6 + $0x1f8] sm:$0xff]
    %v227 = vld [vmem:[%s6 + $0x200] sm:$0xff]
    %v228 = vld [vmem:[%s6 + $0x208] sm:$0xff]
    %v229 = vld [vmem:[%s6 + $0x210] sm:$0xff]
    %v230 = vld [vmem:[%s6 + $0x218] sm:$0xff]
    %v231 = vld [vmem:[%s6 + $0x220] sm:$0xff]
    %v232 = vld [vmem:[%s6 + $0x228] sm:$0xff]
    %v233 = vld [vmem:[%s6 + $0x230] sm:$0xff]
    %v234 = vld [vmem:[%s6 + $0x238] sm:$0xff]
    %v235 = vld [vmem:[%s6 + $0x240] sm:$0xff]
    %v236 = vld [vmem:[%s6 + $0x248] sm:$0xff]
    %v237 = vld [vmem:[%s6 + $0x250] sm:$0xff]
    %v238 = vld [vmem:[%s6 + $0x258] sm:$0xff]
    %v239 = vld [vmem:[%s6 + $0x260] sm:$0xff]
    %v240 = vld [vmem:[%s6 + $0x268] sm:$0xff]
    %v241 = vld [vmem:[%s6 + $0x270] sm:$0xff]
    %v242 = vld [vmem:[%s6 + $0x278] sm:$0xff]
    %v243 = vld [vmem:[%s6 + $0x280] sm:$0xff]
    %v244 = vld [vmem:[%s6 + $0x288] sm:$0xff]
    %v245 = vld [vmem:[%s6 + $0x290] sm:$0xff]
    %v246 = vld [vmem:[%s6 + $0x298] sm:$0xff]
    %v247 = vld [vmem:[%s6 + $0x2a0] sm:$0xff]
    %v248 = vld [vmem:[%s6 + $0x2a8] sm:$0xff]
    %v249 = vld [vmem:[%s6 + $0x2b0] sm:$0xff]
    %v250 = vld [vmem:[%s6 + $0x2b8] sm:$0xff]
    %v251 = vld [vmem:[%s6 + $0x2c0] sm:$0xff]
    %v252 = vld [vmem:[%s6 + $0x2c8] sm:$0xff]
    %v253 = vld [vmem:[%s6 + $0x2d0] sm:$0xff]
    %v254 = vld [vmem:[%s6 + $0x2d8] sm:$0xff]
    %v255 = vld [vmem:[%s6 + $0x2e0] sm:$0xff]
    %v256 = vld [vmem:[%s6 + $0x2e8] sm:$0xff]
    %v257 = vld [vmem:[%s6 + $0x2f0] sm:$0xff]
    %v258 = vld [vmem:[%s6 + $0x2f8] sm:$0xff]
    %v259 = vld [vmem:[%s6 + $0x300] sm:$0xff]
    %v260 = vld [vmem:[%s6 + $0x308] sm:$0xff]
    %v261 = vld [vmem:[%s6 + $0x310] sm:$0xff]
    %v262 = vld [vmem:[%s6 + $0x318] sm:$0xff]
    %v263 = vld [vmem:[%s6 + $0x320] sm:$0xff]
    %v264 = vld [vmem:[%s6 + $0x328] sm:$0xff]
    %v265 = vld [vmem:[%s6 + $0x330] sm:$0xff]
    %v266 = vld [vmem:[%s6 + $0x338] sm:$0xff]
    %v267 = vld [vmem:[%s6 + $0x340] sm:$0xff]
    %v268 = vld [vmem:[%s6 + $0x348] sm:$0xff]
    %v269 = vld [vmem:[%s6 + $0x350] sm:$0xff]
    %v270 = vld [vmem:[%s6 + $0x358] sm:$0xff]
    %v271 = vld [vmem:[%s6 + $0x360] sm:$0xff]
    %v272 = vld [vmem:[%s6 + $0x368] sm:$0xff]
    %v273 = vld [vmem:[%s6 + $0x370] sm:$0xff]
    %v274 = vld [vmem:[%s6 + $0x378] sm:$0xff]
    %v275 = vld [vmem:[%s6 + $0x380] sm:$0xff]
    %v276 = vld [vmem:[%s6 + $0x388] sm:$0xff]
    %v277 = vld [vmem:[%s6 + $0x390] sm:$0xff]
    %v278 = vld [vmem:[%s6 + $0x398] sm:$0xff]
    %v279 = vld [vmem:[%s6 + $0x3a0] sm:$0xff]
    %v280 = vld [vmem:[%s6 + $0x3a8] sm:$0xff]
    %v281 = vld [vmem:[%s6 + $0x3b0] sm:$0xff]
    %v282 = vld [vmem:[%s6 + $0x3b8] sm:$0xff]
    %v283 = vld [vmem:[%s6 + $0x3c0] sm:$0xff]
    %v284 = vld [vmem:[%s6 + $0x3c8] sm:$0xff]
    %v285 = vld [vmem:[%s6 + $0x3d0] sm:$0xff]
    %v286 = vld [vmem:[%s6 + $0x3d8] sm:$0xff]
    %v287 = vld [vmem:[%s6 + $0x3e0] sm:$0xff]
    %v288 = vld [vmem:[%s6 + $0x3e8] sm:$0xff]
    %v289 = vld [vmem:[%s6 + $0x3f0] sm:$0xff]
    %v290 = vld [vmem:[%s6 + $0x3f8] sm:$0xff]
    %v291 = vld [vmem:[%s6 + $0x400] sm:$0xff]
    %v292 = vld [vmem:[%s6 + $0x408] sm:$0xff]
    %v293 = vld [vmem:[%s6 + $0x410] sm:$0xff]
    %v294 = vld [vmem:[%s6 + $0x418] sm:$0xff]
    %v295 = vld [vmem:[%s6 + $0x420] sm:$0xff]
    %v296 = vld [vmem:[%s6 + $0x428] sm:$0xff]
    %v297 = vld [vmem:[%s6 + $0x430] sm:$0xff]
    %v298 = vld [vmem:[%s6 + $0x438] sm:$0xff]
    %v299 = vld [vmem:[%s6 + $0x440] sm:$0xff]
    %v300 = vld [vmem:[%s6 + $0x448] sm:$0xff]
    %v301 = vld [vmem:[%s6 + $0x450] sm:$0xff]
    %v302 = vld [vmem:[%s6 + $0x458] sm:$0xff]
    %v303 = vld [vmem:[%s6 + $0x460] sm:$0xff]
    %v304 = vld [vmem:[%s6 + $0x468] sm:$0xff]
    %v305 = vld [vmem:[%s6 + $0x470] sm:$0xff]
    %v306 = vld [vmem:[%s6 + $0x478] sm:$0xff]
    %v307 = vld [vmem:[%s6 + $0x480] sm:$0xff]
    %v308 = vld [vmem:[%s6 + $0x488] sm:$0xff]
    %v309 = vld [vmem:[%s6 + $0x490] sm:$0xff]
    %v310 = vld [vmem:[%s6 + $0x498] sm:$0xff]
    %v311 = vld [vmem:[%s6 + $0x4a0] sm:$0xff]
    %v312 = vld [vmem:[%s6 + $0x4a8] sm:$0xff]
    %v313 = vld [vmem:[%s6 + $0x4b0] sm:$0xff]
    %v314 = vld [vmem:[%s6 + $0x4b8] sm:$0xff]
    %v315 = vld [vmem:[%s6 + $0x4c0] sm:$0xff]
    %v316 = vld [vmem:[%s6 + $0x4c8] sm:$0xff]
    %v317 = vld [vmem:[%s6 + $0x4d0] sm:$0xff]
    %v318 = vld [vmem:[%s6 + $0x4d8] sm:$0xff]
    %v319 = vld [vmem:[%s6 + $0x4e0] sm:$0xff]
    %v320 = vld [vmem:[%s6 + $0x4e8] sm:$0xff]
    %v321 = vld [vmem:[%s6 + $0x4f0] sm:$0xff]
    %v322 = vld [vmem:[%s6 + $0x4f8] sm:$0xff]
    %v323 = vld [vmem:[%s6 + $0x500] sm:$0xff]
    %v324 = vld [vmem:[%s6 + $0x508] sm:$0xff]
    %v325 = vld [vmem:[%s6 + $0x510] sm:$0xff]
    %v326 = vld [vmem:[%s6 + $0x518] sm:$0xff]
    %v327 = vld [vmem:[%s6 + $0x520] sm:$0xff]
    %v328 = vld [vmem:[%s6 + $0x528] sm:$0xff]
    %v329 = vld [vmem:[%s6 + $0x530] sm:$0xff]
    %v330 = vld [vmem:[%s6 + $0x538] sm:$0xff]
    %v331 = vld [vmem:[%s7] sm:$0x1]
    %v333 = vlaneseq
    %v334 = vshrl.u32 %v333, 7
    %v335 = vsub.s32 0, %v334
    %v336 = vrot.slane %v331, %v335
    %v341 = vcombine.high %v160, %v160
    %v343 = vunpack.c.l.s4 1983009808
    %v344 = vunpack.c.0.s8 %v343
    %v345 = vlaneseq
    %v346 = vshrl.u32 %v345, 7
    %v347 = vsub.s32 %v344, %v346
    %v348 = vrot.slane %v160, %v347
    %v350 = vunpack.c.l.s4 1983009808
    %v351 = vunpack.c.0.s8 %v350
    %v352 = vlaneseq
    %v353 = vshrl.u32 %v352, 7
    %v354 = vsub.s32 %v351, %v353
    %v355 = vrot.slane %v341, %v354
    %v356 = vcombine.high %v348, %v348
    %v357 = vcombine.high %v355, %v355
    %v358 = vcombine.high %v161, %v161
    %v360 = vunpack.c.l.s4 1983009808
    %v361 = vunpack.c.0.s8 %v360
    %v362 = vlaneseq
    %v363 = vshrl.u32 %v362, 7
    %v364 = vsub.s32 %v361, %v363
    %v365 = vrot.slane %v161, %v364
    %v367 = vunpack.c.l.s4 1983009808
    %v368 = vunpack.c.0.s8 %v367
    %v369 = vlaneseq
    %v370 = vshrl.u32 %v369, 7
    %v371 = vsub.s32 %v368, %v370
    %v372 = vrot.slane %v358, %v371
    %v373 = vcombine.high %v365, %v365
    %v374 = vcombine.high %v372, %v372
    %v375 = vcombine.high %v162, %v162
    %v377 = vunpack.c.l.s4 1983009808
    %v378 = vunpack.c.0.s8 %v377
    %v379 = vlaneseq
    %v380 = vshrl.u32 %v379, 7
    %v381 = vsub.s32 %v378, %v380
    %v382 = vrot.slane %v162, %v381
    %v384 = vunpack.c.l.s4 1983009808
    %v385 = vunpack.c.0.s8 %v384
    %v386 = vlaneseq
    %v387 = vshrl.u32 %v386, 7
    %v388 = vsub.s32 %v385, %v387
    %v389 = vrot.slane %v375, %v388
    %v390 = vcombine.high %v382, %v382
    %vm401 = vcmask 523264
    %v402 = vsel %vm401, %v389, 0
    %404 = vmatprep.subr.mxu0 0.0
    %405 = vmatpush1.msra.mxu0 %v163
    %406 = vmatprep.subr.mxu0 0.0
    %407 = vmatpush1.msra.mxu0 %v164
    %408 = vmatprep.subr.mxu0 0.0
    %409 = vmatpush1.msra.mxu0 %v165
    %410 = vmatprep.subr.mxu0 0.0
    %411 = vmatpush1.msra.mxu0 %v166
    %412 = vmatprep.subr.mxu0 0.0
    %413 = vmatpush1.msra.mxu0 %v167
    %414 = vmatprep.subr.mxu0 0.0
    %415 = vmatpush1.msra.mxu0 %v168
    %416 = vmatprep.subr.mxu0 0.0
    %417 = vmatpush1.msra.mxu0 %v169
    %418 = vmatprep.subr.mxu0 0.0
    %419 = vmatpush1.msra.mxu0 %v170
    %420 = vmatprep.subr.mxu0 0.0
    %421 = vmatpush1.msra.mxu0 %v171
    %422 = vmatprep.subr.mxu0 0.0
    %423 = vmatpush1.msra.mxu0 %v172
    %424 = vmatprep.subr.mxu0 0.0
    %425 = vmatpush1.msra.mxu0 %v173
    %426 = vmatprep.subr.mxu0 0.0
    %427 = vmatpush1.msra.mxu0 %v174
    %428 = vmatprep.subr.mxu0 0.0
    %429 = vmatpush1.msra.mxu0 %v175
    %430 = vmatprep.subr.mxu0 0.0
    %431 = vmatpush1.msra.mxu0 %v176
    %432 = vmatprep.subr.mxu0 0.0
    %433 = vmatpush1.msra.mxu0 %v177
    %434 = vmatprep.subr.mxu0 0.0
    %435 = vmatpush1.msra.mxu0 %v178
    %436 = vmatprep.subr.mxu0 0.0
    %437 = vmatpush1.msra.mxu0 %v179
    %438 = vmatprep.subr.mxu0 0.0
    %439 = vmatpush1.msra.mxu0 %v180
    %440 = vmatprep.subr.mxu0 0.0
    %441 = vmatpush1.msra.mxu0 %v181
    %442 = vmatprep.subr.mxu0 0.0
    %443 = vmatpush1.msra.mxu0 %v182
    %444 = vmatprep.subr.mxu0 0.0
    %445 = vmatpush1.msra.mxu0 %v183
    %446 = vmatprep.subr.mxu0 0.0
    %447 = vmatpush1.msra.mxu0 %v184
    %448 = vmatprep.subr.mxu0 0.0
    %449 = vmatpush1.msra.mxu0 %v185
    %450 = vmatprep.subr.mxu0 0.0
    %451 = vmatpush1.msra.mxu0 %v186
    %452 = vmatprep.subr.mxu0 0.0
    %453 = vmatpush1.msra.mxu0 %v187
    %454 = vmatprep.subr.mxu0 0.0
    %455 = vmatpush1.msra.mxu0 %v188
    %456 = vmatprep.subr.mxu0 0.0
    %457 = vmatpush1.msra.mxu0 %v189
    %458 = vmatprep.subr.mxu0 0.0
    %459 = vmatpush1.msra.mxu0 %v190
    %460 = vmatprep.subr.mxu0 0.0
    %461 = vmatpush1.msra.mxu0 %v191
    %462 = vmatprep.subr.mxu0 0.0
    %463 = vmatpush1.msra.mxu0 %v192
    %464 = vmatprep.subr.mxu0 0.0
    %465 = vmatpush1.msra.mxu0 %v193
    %466 = vmatprep.subr.mxu0 0.0
    %467 = vmatpush1.msra.mxu0 %v194
    %468 = vmatprep.mubr.f32.mxu0 %v356
    %469 = vmatmul.mubr.f32.gmra.mrb[0].mxu0 %v348
    %v470 = vpop.f32.mrb[0].mxu0
    %v471 = vadd.f32 %v336, %v470
    %v472 = vpop.f32.mrb[0].mxu0
    %473 = vdwg.mxu0
    %474 = vmatprep.subr.mxu0 0.0
    %475 = vmatpush1.msra.mxu0 %v195
    %476 = vmatprep.subr.mxu0 0.0
    %477 = vmatpush1.msra.mxu0 %v196
    %478 = vmatprep.subr.mxu0 0.0
    %479 = vmatpush1.msra.mxu0 %v197
    %480 = vmatprep.subr.mxu0 0.0
    %481 = vmatpush1.msra.mxu0 %v198
    %482 = vmatprep.subr.mxu0 0.0
    %483 = vmatpush1.msra.mxu0 %v199
    %484 = vmatprep.subr.mxu0 0.0
    %485 = vmatpush1.msra.mxu0 %v200
    %486 = vmatprep.subr.mxu0 0.0
    %487 = vmatpush1.msra.mxu0 %v201
    %488 = vmatprep.subr.mxu0 0.0
    %489 = vmatpush1.msra.mxu0 %v202
    %490 = vmatprep.subr.mxu0 0.0
    %491 = vmatpush1.msra.mxu0 %v203
    %492 = vmatprep.subr.mxu0 0.0
    %493 = vmatpush1.msra.mxu0 %v204
    %494 = vmatprep.subr.mxu0 0.0
    %495 = vmatpush1.msra.mxu0 %v205
    %496 = vmatprep.subr.mxu0 0.0
    %497 = vmatpush1.msra.mxu0 %v206
    %498 = vmatprep.subr.mxu0 0.0
    %499 = vmatpush1.msra.mxu0 %v207
    %500 = vmatprep.subr.mxu0 0.0
    %501 = vmatpush1.msra.mxu0 %v208
    %502 = vmatprep.subr.mxu0 0.0
    %503 = vmatpush1.msra.mxu0 %v209
    %504 = vmatprep.subr.mxu0 0.0
    %505 = vmatpush1.msra.mxu0 %v210
    %506 = vmatprep.subr.mxu0 0.0
    %507 = vmatpush1.msra.mxu0 %v211
    %508 = vmatprep.subr.mxu0 0.0
    %509 = vmatpush1.msra.mxu0 %v212
    %510 = vmatprep.subr.mxu0 0.0
    %511 = vmatpush1.msra.mxu0 %v213
    %512 = vmatprep.subr.mxu0 0.0
    %513 = vmatpush1.msra.mxu0 %v214
    %514 = vmatprep.subr.mxu0 0.0
    %515 = vmatpush1.msra.mxu0 %v215
    %516 = vmatprep.subr.mxu0 0.0
    %517 = vmatpush1.msra.mxu0 %v216
    %518 = vmatprep.subr.mxu0 0.0
    %519 = vmatpush1.msra.mxu0 %v217
    %520 = vmatprep.subr.mxu0 0.0
    %521 = vmatpush1.msra.mxu0 %v218
    %522 = vmatprep.subr.mxu0 0.0
    %523 = vmatpush1.msra.mxu0 %v219
    %524 = vmatprep.subr.mxu0 0.0
    %525 = vmatpush1.msra.mxu0 %v220
    %526 = vmatprep.subr.mxu0 0.0
    %527 = vmatpush1.msra.mxu0 %v221
    %528 = vmatprep.subr.mxu0 0.0
    %529 = vmatpush1.msra.mxu0 %v222
    %530 = vmatprep.subr.mxu0 0.0
    %531 = vmatpush1.msra.mxu0 %v223
    %532 = vmatprep.subr.mxu0 0.0
    %533 = vmatpush1.msra.mxu0 %v224
    %534 = vmatprep.subr.mxu0 0.0
    %535 = vmatpush1.msra.mxu0 %v225
    %536 = vmatprep.subr.mxu0 0.0
    %537 = vmatpush1.msra.mxu0 %v226
    %538 = vmatprep.mubr.f32.mxu0 %v357
    %539 = vmatmul.mubr.f32.gmra.mrb[0].mxu0 %v355
    %v540 = vpop.f32.mrb[0].mxu0
    %v541 = vadd.f32 %v471, %v540
    %v542 = vpop.f32.mrb[0].mxu0
    %543 = vdwg.mxu0
    %544 = vmatprep.subr.mxu0 0.0
    %545 = vmatpush1.msra.mxu0 %v227
    %546 = vmatprep.subr.mxu0 0.0
    %547 = vmatpush1.msra.mxu0 %v228
    %548 = vmatprep.subr.mxu0 0.0
    %549 = vmatpush1.msra.mxu0 %v229
    %550 = vmatprep.subr.mxu0 0.0
    %551 = vmatpush1.msra.mxu0 %v230
    %552 = vmatprep.subr.mxu0 0.0
    %553 = vmatpush1.msra.mxu0 %v231
    %554 = vmatprep.subr.mxu0 0.0
    %555 = vmatpush1.msra.mxu0 %v232
    %556 = vmatprep.subr.mxu0 0.0
    %557 = vmatpush1.msra.mxu0 %v233
    %558 = vmatprep.subr.mxu0 0.0
    %559 = vmatpush1.msra.mxu0 %v234
    %560 = vmatprep.subr.mxu0 0.0
    %561 = vmatpush1.msra.mxu0 %v235
    %562 = vmatprep.subr.mxu0 0.0
    %563 = vmatpush1.msra.mxu0 %v236
    %564 = vmatprep.subr.mxu0 0.0
    %565 = vmatpush1.msra.mxu0 %v237
    %566 = vmatprep.subr.mxu0 0.0
    %567 = vmatpush1.msra.mxu0 %v238
    %568 = vmatprep.subr.mxu0 0.0
    %569 = vmatpush1.msra.mxu0 %v239
    %570 = vmatprep.subr.mxu0 0.0
    %571 = vmatpush1.msra.mxu0 %v240
    %572 = vmatprep.subr.mxu0 0.0
    %573 = vmatpush1.msra.mxu0 %v241
    %574 = vmatprep.subr.mxu0 0.0
    %575 = vmatpush1.msra.mxu0 %v242
    %576 = vmatprep.subr.mxu0 0.0
    %577 = vmatpush1.msra.mxu0 %v243
    %578 = vmatprep.subr.mxu0 0.0
    %579 = vmatpush1.msra.mxu0 %v244
    %580 = vmatprep.subr.mxu0 0.0
    %581 = vmatpush1.msra.mxu0 %v245
    %582 = vmatprep.subr.mxu0 0.0
    %583 = vmatpush1.msra.mxu0 %v246
    %584 = vmatprep.subr.mxu0 0.0
    %585 = vmatpush1.msra.mxu0 %v247
    %586 = vmatprep.subr.mxu0 0.0
    %587 = vmatpush1.msra.mxu0 %v248
    %588 = vmatprep.subr.mxu0 0.0
    %589 = vmatpush1.msra.mxu0 %v249
    %590 = vmatprep.subr.mxu0 0.0
    %591 = vmatpush1.msra.mxu0 %v250
    %592 = vmatprep.subr.mxu0 0.0
    %593 = vmatpush1.msra.mxu0 %v251
    %594 = vmatprep.subr.mxu0 0.0
    %595 = vmatpush1.msra.mxu0 %v252
    %596 = vmatprep.subr.mxu0 0.0
    %597 = vmatpush1.msra.mxu0 %v253
    %598 = vmatprep.subr.mxu0 0.0
    %599 = vmatpush1.msra.mxu0 %v254
    %600 = vmatprep.subr.mxu0 0.0
    %601 = vmatpush1.msra.mxu0 %v255
    %602 = vmatprep.subr.mxu0 0.0
    %603 = vmatpush1.msra.mxu0 %v256
    %604 = vmatprep.subr.mxu0 0.0
    %605 = vmatpush1.msra.mxu0 %v257
    %606 = vmatprep.subr.mxu0 0.0
    %607 = vmatpush1.msra.mxu0 %v258
    %608 = vmatprep.mubr.f32.mxu0 %v373
    %609 = vmatmul.mubr.f32.gmra.mrb[0].mxu0 %v365
    %v610 = vpop.f32.mrb[0].mxu0
    %v611 = vadd.f32 %v541, %v610
    %v612 = vpop.f32.mrb[0].mxu0
    %613 = vdwg.mxu0
    %614 = vmatprep.subr.mxu0 0.0
    %615 = vmatpush1.msra.mxu0 %v259
    %616 = vmatprep.subr.mxu0 0.0
    %617 = vmatpush1.msra.mxu0 %v260
    %618 = vmatprep.subr.mxu0 0.0
    %619 = vmatpush1.msra.mxu0 %v261
    %620 = vmatprep.subr.mxu0 0.0
    %621 = vmatpush1.msra.mxu0 %v262
    %622 = vmatprep.subr.mxu0 0.0
    %623 = vmatpush1.msra.mxu0 %v263
    %624 = vmatprep.subr.mxu0 0.0
    %625 = vmatpush1.msra.mxu0 %v264
    %626 = vmatprep.subr.mxu0 0.0
    %627 = vmatpush1.msra.mxu0 %v265
    %628 = vmatprep.subr.mxu0 0.0
    %629 = vmatpush1.msra.mxu0 %v266
    %630 = vmatprep.subr.mxu0 0.0
    %631 = vmatpush1.msra.mxu0 %v267
    %632 = vmatprep.subr.mxu0 0.0
    %633 = vmatpush1.msra.mxu0 %v268
    %634 = vmatprep.subr.mxu0 0.0
    %635 = vmatpush1.msra.mxu0 %v269
    %636 = vmatprep.subr.mxu0 0.0
    %637 = vmatpush1.msra.mxu0 %v270
    %638 = vmatprep.subr.mxu0 0.0
    %639 = vmatpush1.msra.mxu0 %v271
    %640 = vmatprep.subr.mxu0 0.0
    %641 = vmatpush1.msra.mxu0 %v272
    %642 = vmatprep.subr.mxu0 0.0
    %643 = vmatpush1.msra.mxu0 %v273
    %644 = vmatprep.subr.mxu0 0.0
    %645 = vmatpush1.msra.mxu0 %v274
    %646 = vmatprep.subr.mxu0 0.0
    %647 = vmatpush1.msra.mxu0 %v275
    %648 = vmatprep.subr.mxu0 0.0
    %649 = vmatpush1.msra.mxu0 %v276
    %650 = vmatprep.subr.mxu0 0.0
    %651 = vmatpush1.msra.mxu0 %v277
    %652 = vmatprep.subr.mxu0 0.0
    %653 = vmatpush1.msra.mxu0 %v278
    %654 = vmatprep.subr.mxu0 0.0
    %655 = vmatpush1.msra.mxu0 %v279
    %656 = vmatprep.subr.mxu0 0.0
    %657 = vmatpush1.msra.mxu0 %v280
    %658 = vmatprep.subr.mxu0 0.0
    %659 = vmatpush1.msra.mxu0 %v281
    %660 = vmatprep.subr.mxu0 0.0
    %661 = vmatpush1.msra.mxu0 %v282
    %662 = vmatprep.subr.mxu0 0.0
    %663 = vmatpush1.msra.mxu0 %v283
    %664 = vmatprep.subr.mxu0 0.0
    %665 = vmatpush1.msra.mxu0 %v284
    %666 = vmatprep.subr.mxu0 0.0
    %667 = vmatpush1.msra.mxu0 %v285
    %668 = vmatprep.subr.mxu0 0.0
    %669 = vmatpush1.msra.mxu0 %v286
    %670 = vmatprep.subr.mxu0 0.0
    %671 = vmatpush1.msra.mxu0 %v287
    %672 = vmatprep.subr.mxu0 0.0
    %673 = vmatpush1.msra.mxu0 %v288
    %674 = vmatprep.subr.mxu0 0.0
    %675 = vmatpush1.msra.mxu0 %v289
    %676 = vmatprep.subr.mxu0 0.0
    %677 = vmatpush1.msra.mxu0 %v290
    %678 = vmatprep.mubr.f32.mxu0 %v374
    %679 = vmatmul.mubr.f32.gmra.mrb[0].mxu0 %v372
    %v680 = vpop.f32.mrb[0].mxu0
    %v681 = vadd.f32 %v611, %v680
    %v682 = vpop.f32.mrb[0].mxu0
    %683 = vdwg.mxu0
    %684 = vmatprep.subr.mxu0 0.0
    %685 = vmatpush1.msra.mxu0 %v291
    %686 = vmatprep.subr.mxu0 0.0
    %687 = vmatpush1.msra.mxu0 %v292
    %688 = vmatprep.subr.mxu0 0.0
    %689 = vmatpush1.msra.mxu0 %v293
    %690 = vmatprep.subr.mxu0 0.0
    %691 = vmatpush1.msra.mxu0 %v294
    %692 = vmatprep.subr.mxu0 0.0
    %693 = vmatpush1.msra.mxu0 %v295
    %694 = vmatprep.subr.mxu0 0.0
    %695 = vmatpush1.msra.mxu0 %v296
    %696 = vmatprep.subr.mxu0 0.0
    %697 = vmatpush1.msra.mxu0 %v297
    %698 = vmatprep.subr.mxu0 0.0
    %699 = vmatpush1.msra.mxu0 %v298
    %700 = vmatprep.subr.mxu0 0.0
    %701 = vmatpush1.msra.mxu0 %v299
    %702 = vmatprep.subr.mxu0 0.0
    %703 = vmatpush1.msra.mxu0 %v300
    %704 = vmatprep.subr.mxu0 0.0
    %705 = vmatpush1.msra.mxu0 %v301
    %706 = vmatprep.subr.mxu0 0.0
    %707 = vmatpush1.msra.mxu0 %v302
    %708 = vmatprep.subr.mxu0 0.0
    %709 = vmatpush1.msra.mxu0 %v303
    %710 = vmatprep.subr.mxu0 0.0
    %711 = vmatpush1.msra.mxu0 %v304
    %712 = vmatprep.subr.mxu0 0.0
    %713 = vmatpush1.msra.mxu0 %v305
    %714 = vmatprep.subr.mxu0 0.0
    %715 = vmatpush1.msra.mxu0 %v306
    %716 = vmatprep.subr.mxu0 0.0
    %717 = vmatpush1.msra.mxu0 %v307
    %718 = vmatprep.subr.mxu0 0.0
    %719 = vmatpush1.msra.mxu0 %v308
    %720 = vmatprep.subr.mxu0 0.0
    %721 = vmatpush1.msra.mxu0 %v309
    %722 = vmatprep.subr.mxu0 0.0
    %723 = vmatpush1.msra.mxu0 %v310
    %724 = vmatprep.subr.mxu0 0.0
    %725 = vmatpush1.msra.mxu0 %v311
    %726 = vmatprep.subr.mxu0 0.0
    %727 = vmatpush1.msra.mxu0 %v312
    %728 = vmatprep.subr.mxu0 0.0
    %729 = vmatpush1.msra.mxu0 %v313
    %730 = vmatprep.subr.mxu0 0.0
    %731 = vmatpush1.msra.mxu0 %v314
    %732 = vmatprep.subr.mxu0 0.0
    %733 = vmatpush1.msra.mxu0 %v315
    %734 = vmatprep.subr.mxu0 0.0
    %735 = vmatpush1.msra.mxu0 %v316
    %736 = vmatprep.subr.mxu0 0.0
    %737 = vmatpush1.msra.mxu0 %v317
    %738 = vmatprep.subr.mxu0 0.0
    %739 = vmatpush1.msra.mxu0 %v318
    %740 = vmatprep.subr.mxu0 0.0
    %741 = vmatpush1.msra.mxu0 %v319
    %742 = vmatprep.subr.mxu0 0.0
    %743 = vmatpush1.msra.mxu0 %v320
    %744 = vmatprep.subr.mxu0 0.0
    %745 = vmatpush1.msra.mxu0 %v321
    %746 = vmatprep.subr.mxu0 0.0
    %747 = vmatpush1.msra.mxu0 %v322
    %748 = vmatprep.mubr.f32.mxu0 %v390
    %749 = vmatmul.mubr.f32.gmra.mrb[0].mxu0 %v382
    %v750 = vpop.f32.mrb[0].mxu0
    %v751 = vadd.f32 %v681, %v750
    %v752 = vpop.f32.mrb[0].mxu0
    %753 = vdwg.mxu0
    %754 = vmatprep.subr.mxu0 0.0
    %755 = vmatpush1.msra.mxu0 %v323
    %756 = vmatprep.subr.mxu0 0.0
    %757 = vmatpush1.msra.mxu0 %v324
    %758 = vmatprep.subr.mxu0 0.0
    %759 = vmatpush1.msra.mxu0 %v325
    %760 = vmatprep.subr.mxu0 0.0
    %761 = vmatpush1.msra.mxu0 %v326
    %762 = vmatprep.subr.mxu0 0.0
    %763 = vmatpush1.msra.mxu0 %v327
    %764 = vmatprep.subr.mxu0 0.0
    %765 = vmatpush1.msra.mxu0 %v328
    %766 = vmatprep.subr.mxu0 0.0
    %767 = vmatpush1.msra.mxu0 %v329
    %768 = vmatprep.subr.mxu0 0.0
    %769 = vmatpush1.msra.mxu0 %v330
    %770 = vmatprep.subr.mxu0 0.0
    %771 = vmatpush1.msra.mxu0 0.0
    %772 = vmatprep.subr.mxu0 0.0
    %773 = vmatpush1.msra.mxu0 0.0
    %774 = vmatprep.subr.mxu0 0.0
    %775 = vmatpush1.msra.mxu0 0.0
    %776 = vmatprep.subr.mxu0 0.0
    %777 = vmatpush1.msra.mxu0 0.0
    %778 = vmatprep.subr.mxu0 0.0
    %779 = vmatpush1.msra.mxu0 0.0
    %780 = vmatprep.subr.mxu0 0.0
    %781 = vmatpush1.msra.mxu0 0.0
    %782 = vmatprep.subr.mxu0 0.0
    %783 = vmatpush1.msra.mxu0 0.0
    %784 = vmatprep.subr.mxu0 0.0
    %785 = vmatpush1.msra.mxu0 0.0
    %786 = vmatprep.subr.mxu0 0.0
    %787 = vmatpush1.msra.mxu0 0.0
    %788 = vmatprep.subr.mxu0 0.0
    %789 = vmatpush1.msra.mxu0 0.0
    %790 = vmatprep.subr.mxu0 0.0
    %791 = vmatpush1.msra.mxu0 0.0
    %792 = vmatprep.subr.mxu0 0.0
    %793 = vmatpush1.msra.mxu0 0.0
    %794 = vmatprep.subr.mxu0 0.0
    %795 = vmatpush1.msra.mxu0 0.0
    %796 = vmatprep.subr.mxu0 0.0
    %797 = vmatpush1.msra.mxu0 0.0
    %798 = vmatprep.subr.mxu0 0.0
    %799 = vmatpush1.msra.mxu0 0.0
    %800 = vmatprep.subr.mxu0 0.0
    %801 = vmatpush1.msra.mxu0 0.0
    %802 = vmatprep.subr.mxu0 0.0
    %803 = vmatpush1.msra.mxu0 0.0
    %804 = vmatprep.subr.mxu0 0.0
    %805 = vmatpush1.msra.mxu0 0.0
    %806 = vmatprep.subr.mxu0 0.0
    %807 = vmatpush1.msra.mxu0 0.0
    %808 = vmatprep.subr.mxu0 0.0
    %809 = vmatpush1.msra.mxu0 0.0
    %810 = vmatprep.subr.mxu0 0.0
    %811 = vmatpush1.msra.mxu0 0.0
    %812 = vmatprep.subr.mxu0 0.0
    %813 = vmatpush1.msra.mxu0 0.0
    %814 = vmatprep.subr.mxu0 0.0
    %815 = vmatpush1.msra.mxu0 0.0
    %816 = vmatprep.subr.mxu0 0.0
    %817 = vmatpush1.msra.mxu0 0.0
    %818 = vmatprep.mubr.f32.mxu0 0.0
    %819 = vmatmul.mubr.f32.gmra.mrb[0].mxu0 %v402
    %v820 = vpop.f32.mrb[0].mxu0
    %v821 = vadd.f32 %v751, %v820
    %v822 = vpop.f32.mrb[0].mxu0
    %823 = vdwg.mxu0
    %vm824 = vcmask 50176
    %v825 = vsel %vm824, %v821, -inf
    %826 = vmax.xlane.f32.xlu0 %v825
    %v827 = vpop.xlane.xlu0 %826
    %v828 = vsub.f32 %v821, %v827
    %v829 = vmul.f32 %v828, 1.442695
    %v830 = vpow.pop %v829
    %v831 = vsel %vm824, %v830, 0.0
    %832 = vadd.xlane.f32.xlu0 %v831
    %v833 = vpop.xlane.xlu0 %832
    %v834 = vrcp.pop %v833
    %v835 = vmul.f32 %v830, %v834
    %836 = vst.msk [vmem:[#allocation3] sm:$0x3] %vm824, %v835
    // Predicated region
    $region34: #{connect4_forward.3} parent=1 // pred_check
      _
    $region35: #{connect4_forward.3} parent=1 // pred_check_branch
      %838 = sbr.rel (0) target = $region37
    $region36: #{connect4_forward.3} parent=1 // pred_region
      _
    $region37: #{connect4_forward.3} parent=1 // pred_fallthru
      _
    // Predicated region
    $region38: #{connect4_forward.3} parent=1 // pred_check
      _
    $region39: #{connect4_forward.3} parent=1 // pred_check_branch
      %840 = sbr.rel (0) target = $region41
    $region40: #{connect4_forward.3} parent=1 // pred_region
      %s842 = ssub.s32 32, 32
      %843 = vsyncadd [#allocation4], %s842
      %s845 = sshll.u32 [#allocation3], 4
      %s846 = int_to_ptr.vmem [resolvable:$true] %s845
      %848 = dma.vmem_to_hbm [thread:$0]  %s846, 32, %s9, [#allocation4]
    $region41: #{connect4_forward.3} parent=1 // pred_fallthru
      _
    // Predicated region
    $region42: #{connect4_forward.3} parent=1 // pred_check
      _
    $region43: #{connect4_forward.3} parent=1 // pred_check_branch
      %850 = sbr.rel (0) target = $region45
    $region44: #{connect4_forward.3} parent=1 // pred_region
      _
    $region45: #{connect4_forward.3} parent=1 // pred_fallthru
      _
    // Predicated region
    $region46: #{connect4_forward.3} parent=1 // pred_check
      _
    $region47: #{connect4_forward.3} parent=1 // pred_check_branch
      %852 = sbr.rel (0) target = $region49
    $region48: #{connect4_forward.3} parent=1 // pred_region
      %853 = dma.done [#allocation4], 32
    $region49: #{connect4_forward.3} parent=1 // pred_fallthru
      _
    %854 = vsyncpa [#allocation4], 1

// kernel: connect4_forward.2
$region0: #{connect4_forward.2}
  #allocation0 [shape = 'u32[]', space=smem, size = 0x4, offset = 0x4, fixed_abs, tag = 'smem constant byte address 0x4 - core index']
  #allocation1 [shape = 'u32[144,128]{1,0:T(1,128)}', space=vmem, size = 0x12000, scoped, tag = 'internal scratch']
  #allocation2 [shape = 'f32[176,128]{1,0:T(8,128)}', space=vmem, size = 0x16000, scoped, tag = 'scratch operand']
  #allocation3 [shape = 'f32[144,128]{1,0:T(8,128)}', space=vmem, size = 0x12000, scoped, tag = 'scratch operand']
  %s0 = inlined_call_operand.vmem [shape: f32[144,128], index: 0, kind: input, shape index: {}]
  %s1 = inlined_call_operand.vmem [shape: f32[144,128], index: 1, kind: input, shape index: {}]
  %s2 = inlined_call_operand.hbm [shape: bf16[39,9,128,128], index: 2, kind: input, shape index: {}]
  %s3 = inlined_call_operand.vmem [shape: f32[39,3,128], index: 3, kind: input, shape index: {}]
  %s4 = inlined_call_operand.hbm [shape: bf16[128,128], index: 4, kind: input, shape index: {}]
  %s5 = inlined_call_operand.hbm [shape: f32[3,128], index: 5, kind: input, shape index: {}]
  %s6 = inlined_call_operand.vmem [shape: f32[144,128], index: 6, kind: output, shape index: {}]
  %s7 = sld [smem:[#allocation0]]
  $region81: #{connect4_forward.2} parent=0
    _
  %s9 = ssub.s32 1, %s7
  %s10 = scalar_select 0, %s9, %s7
  $region1: #{connect4_forward.2} parent=0
    #allocation4 [shape = 'u8[589824]{0}', space=vmem, size = 0x90000, scoped, tag = 'input window, operand 2']
    #allocation5 [shape = 's32[2]{0}', space=sflag, size = 0x8, scoped, tag = 'scoped memory for connect4_forward.2']
    #allocation6 [shape = 'u8[32768]{0}', space=vmem, size = 0x8000, scoped, tag = 'input window, operand 4, single buffered']
    #allocation7 [shape = 's32[1]{0}', space=sflag, size = 0x4, scoped, tag = 'scoped memory for connect4_forward.2']
    #allocation8 [shape = 'u8[2048]{0}', space=vmem, size = 0x800, scoped, tag = 'input window, operand 5, single buffered']
    %11 = vsyncpa [#allocation5], 0
    %s12 = scalar_lea.sflag [#allocation5], 1
    %13 = vsyncpa %s12, 0
    %14 = vsyncpa [#allocation7], 0
    loop: start=0, step=1, limit=41
    $region2: #{connect4_forward.2} parent=1 // loop_pre_header
      _
    $region3: #{connect4_forward.2} parent=1 // loop_header
      %s16 = sphi 0, %s20
      %p17 = scmp.ge.s32.totalorder %s16, 41
      %s24 = sphi 0, %s24
      %s26 = sphi 0, %s24
      %s27 = sphi 0, %s26
      %s41 = sphi 0, %s27
      %s45 = sphi 0, %s45
      %s47 = sphi 0, %s45
      %s48 = sphi 0, %s47
      %s62 = sphi 0, %s48
      %s68 = sphi 0, %s70
      %s71 = sphi 0, %s68
      %s72 = sphi 0, %s71
      %s88 = sphi 0, %s72
      %s94 = sphi 0, %s96
      %s97 = sphi 0, %s94
      %s98 = sphi 0, %s97
      %s114 = sphi 0, %s98
      %s118 = sphi 0, %s118
      %s120 = sphi 0, %s118
      %s121 = sphi 0, %s120
      %s135 = sphi 0, %s121
      %s139 = sphi 0, %s139
      %s141 = sphi 0, %s139
      %s142 = sphi 0, %s141
      %s156 = sphi 0, %s142
      %s160 = sphi 0, %s160
      %s162 = sphi 0, %s160
      %s163 = sphi 0, %s162
      %s177 = sphi 0, %s163
    $region4: #{connect4_forward.2} parent=1 // loop_header_branch
      %19 = sbr.rel (%p17) target = $region8
    $region5: #{connect4_forward.2} parent=1 // loop_body
      %s21 = ssub.s32 %s16, 1
      %s22 = ssub.s32 %s16, 2
      %s23 = sadd.s32 %s16, 1
      %s25 = sadd.s32 %s24, 1
      %p28 = scmp.eq.s32.totalorder %s16, 38
      %p29 = scmp.ne.s32.totalorder %s24, %s26
      %p30 = scmp.eq.s32.totalorder %s16, 0
      %p31 = por %p29, %p30
      %p32 = scmp.ne.s32.totalorder %s24, %s26
      %p33 = scmp.eq.s32.totalorder %s21, 38
      %p34 = por %p32, %p33
      %p35 = scmp.ne.s32.totalorder %s26, %s27
      %p36 = scmp.eq.s32.totalorder %s21, 0
      %p37 = por %p35, %p36
      %p38 = scmp.ne.s32.totalorder %s26, %s27
      %p39 = scmp.eq.s32.totalorder %s22, 38
      %p40 = por %p38, %p39
      %p42 = scmp.ne.s32.totalorder %s27, %s41
      %p43 = scmp.eq.s32.totalorder %s22, 0
      %p44 = por %p42, %p43
      %s46 = sadd.s32 %s45, 1
      %p49 = scmp.eq.s32.totalorder %s16, 38
      %p50 = scmp.ne.s32.totalorder %s45, %s47
      %p51 = scmp.eq.s32.totalorder %s16, 0
      %p52 = por %p50, %p51
      %p53 = scmp.ne.s32.totalorder %s45, %s47
      %p54 = scmp.eq.s32.totalorder %s21, 38
      %p55 = por %p53, %p54
      %p56 = scmp.ne.s32.totalorder %s47, %s48
      %p57 = scmp.eq.s32.totalorder %s21, 0
      %p58 = por %p56, %p57
      %p59 = scmp.ne.s32.totalorder %s47, %s48
      %p60 = scmp.eq.s32.totalorder %s22, 38
      %p61 = por %p59, %p60
      %p63 = scmp.ne.s32.totalorder %s48, %s62
      %p64 = scmp.eq.s32.totalorder %s22, 0
      %p65 = por %p63, %p64
      %s66 = ssub.s32 %s16, %s23
      %p67 = scmp.eq.s32.totalorder %s66, 0
      %s69 = sadd.s32 %s68, 1
      %s70 = scalar_select %p67, %s68, %s69
      %p73 = pneg %p67
      %p74 = scmp.eq.s32.totalorder %s16, 38
      %p75 = por %p73, %p74
      %p76 = scmp.ne.s32.totalorder %s68, %s71
      %p77 = scmp.eq.s32.totalorder %s16, 0
      %p78 = por %p76, %p77
      %p79 = scmp.ne.s32.totalorder %s68, %s71
      %p80 = scmp.eq.s32.totalorder %s21, 38
      %p81 = por %p79, %p80
      %p82 = scmp.ne.s32.totalorder %s71, %s72
      %p83 = scmp.eq.s32.totalorder %s21, 0
      %p84 = por %p82, %p83
      %p85 = scmp.ne.s32.totalorder %s71, %s72
      %p86 = scmp.eq.s32.totalorder %s22, 38
      %p87 = por %p85, %p86
      %p89 = scmp.ne.s32.totalorder %s72, %s88
      %p90 = scmp.eq.s32.totalorder %s22, 0
      %p91 = por %p89, %p90
      %s92 = ssub.s32 %s16, %s23
      %p93 = scmp.eq.s32.totalorder %s92, 0
      %s95 = sadd.s32 %s94, 1
      %s96 = scalar_select %p93, %s94, %s95
      %p99 = pneg %p93
      %p100 = scmp.eq.s32.totalorder %s16, 38
      %p101 = por %p99, %p100
      %p102 = scmp.ne.s32.totalorder %s94, %s97
      %p103 = scmp.eq.s32.totalorder %s16, 0
      %p104 = por %p102, %p103
      %p105 = scmp.ne.s32.totalorder %s94, %s97
      %p106 = scmp.eq.s32.totalorder %s21, 38
      %p107 = por %p105, %p106
      %p108 = scmp.ne.s32.totalorder %s97, %s98
      %p109 = scmp.eq.s32.totalorder %s21, 0
      %p110 = por %p108, %p109
      %p111 = scmp.ne.s32.totalorder %s97, %s98
      %p112 = scmp.eq.s32.totalorder %s22, 38
      %p113 = por %p111, %p112
      %p115 = scmp.ne.s32.totalorder %s98, %s114
      %p116 = scmp.eq.s32.totalorder %s22, 0
      %p117 = por %p115, %p116
      %s119 = sadd.s32 %s118, 1
      %p122 = scmp.eq.s32.totalorder %s16, 38
      %p123 = scmp.ne.s32.totalorder %s118, %s120
      %p124 = scmp.eq.s32.totalorder %s16, 0
      %p125 = por %p123, %p124
      %p126 = scmp.ne.s32.totalorder %s118, %s120
      %p127 = scmp.eq.s32.totalorder %s21, 38
      %p128 = por %p126, %p127
      %p129 = scmp.ne.s32.totalorder %s120, %s121
      %p130 = scmp.eq.s32.totalorder %s21, 0
      %p131 = por %p129, %p130
      %p132 = scmp.ne.s32.totalorder %s120, %s121
      %p133 = scmp.eq.s32.totalorder %s22, 38
      %p134 = por %p132, %p133
      %p136 = scmp.ne.s32.totalorder %s121, %s135
      %p137 = scmp.eq.s32.totalorder %s22, 0
      %p138 = por %p136, %p137
      %s140 = sadd.s32 %s139, 1
      %p143 = scmp.eq.s32.totalorder %s16, 38
      %p144 = scmp.ne.s32.totalorder %s139, %s141
      %p145 = scmp.eq.s32.totalorder %s16, 0
      %p146 = por %p144, %p145
      %p147 = scmp.ne.s32.totalorder %s139, %s141
      %p148 = scmp.eq.s32.totalorder %s21, 38
      %p149 = por %p147, %p148
      %p150 = scmp.ne.s32.totalorder %s141, %s142
      %p151 = scmp.eq.s32.totalorder %s21, 0
      %p152 = por %p150, %p151
      %p153 = scmp.ne.s32.totalorder %s141, %s142
      %p154 = scmp.eq.s32.totalorder %s22, 38
      %p155 = por %p153, %p154
      %p157 = scmp.ne.s32.totalorder %s142, %s156
      %p158 = scmp.eq.s32.totalorder %s22, 0
      %p159 = por %p157, %p158
      %s161 = sadd.s32 %s160, 1
      %p164 = scmp.eq.s32.totalorder %s16, 38
      %p165 = scmp.ne.s32.totalorder %s160, %s162
      %p166 = scmp.eq.s32.totalorder %s16, 0
      %p167 = por %p165, %p166
      %p168 = scmp.ne.s32.totalorder %s160, %s162
      %p169 = scmp.eq.s32.totalorder %s21, 38
      %p170 = por %p168, %p169
      %p171 = scmp.ne.s32.totalorder %s162, %s163
      %p172 = scmp.eq.s32.totalorder %s21, 0
      %p173 = por %p171, %p172
      %p174 = scmp.ne.s32.totalorder %s162, %s163
      %p175 = scmp.eq.s32.totalorder %s22, 38
      %p176 = por %p174, %p175
      %p178 = scmp.ne.s32.totalorder %s163, %s177
      %p179 = scmp.eq.s32.totalorder %s22, 0
      %p180 = por %p178, %p179
      %p181 = scmp.le.s32.totalorder 1, %s16
      %p182 = scmp.lt.s32.totalorder %s16, 40
      %p183 = pnand %p181, %p182
      %p184 = pneg %p183
      // Predicated region
      $region9: #{connect4_forward.2} parent=5 // pred_check
        _
      $region10: #{connect4_forward.2} parent=5 // pred_check_branch
        %186 = sbr.rel (%p183) target = $region12
      $region11: #{connect4_forward.2} parent=5 // pred_region
        %s187 = ssub.s32 %s16, 1
        // Predicated region
        $region13: #{connect4_forward.2} parent=11 // pred_check
          %p188 = pneg %p37
        $region14: #{connect4_forward.2} parent=11 // pred_check_branch
          %190 = sbr.rel (%p188) target = $region16
        $region15: #{connect4_forward.2} parent=11 // pred_region
          _
        $region16: #{connect4_forward.2} parent=11 // pred_fallthru
          _
        // Predicated region
        $region17: #{connect4_forward.2} parent=11 // pred_check
          %p191 = pneg %p58
        $region18: #{connect4_forward.2} parent=11 // pred_check_branch
          %193 = sbr.rel (%p191) target = $region20
        $region19: #{connect4_forward.2} parent=11 // pred_region
          _
        $region20: #{connect4_forward.2} parent=11 // pred_fallthru
          _
        // Predicated region
        $region21: #{connect4_forward.2} parent=11 // pred_check
          %p194 = pneg %p131
        $region22: #{connect4_forward.2} parent=11 // pred_check_branch
          %196 = sbr.rel (%p194) target = $region24
        $region23: #{connect4_forward.2} parent=11 // pred_region
          %s198 = ssub.s32 1024, 1024
          %199 = vsyncadd [#allocation7], %s198
          %s200 = sshll.u32 [#allocation6], 4
          %s201 = int_to_ptr.vmem [resolvable:$true] %s200
          %206 = dma.hbm_to_vmem [thread:$0]  %s4, 1024, %s201, [#allocation7], 64, 64, 4
        $region24: #{connect4_forward.2} parent=11 // pred_fallthru
          _
        // Predicated region
        $region25: #{connect4_forward.2} parent=11 // pred_check
          %p207 = pneg %p152
        $region26: #{connect4_forward.2} parent=11 // pred_check_branch
          %209 = sbr.rel (%p207) target = $region28
        $region27: #{connect4_forward.2} parent=11 // pred_region
          %s211 = ssub.s32 64, 64
          %212 = vsyncadd [#allocation7], %s211
          %s214 = sshll.u32 [#allocation8], 4
          %s215 = int_to_ptr.vmem [resolvable:$true] %s214
          %217 = dma.hbm_to_vmem [thread:$0]  %s5, 64, %s215, [#allocation7]
        $region28: #{connect4_forward.2} parent=11 // pred_fallthru
          _
      $region12: #{connect4_forward.2} parent=5 // pred_fallthru
        _
      %p218 = scmp.lt.s32.totalorder %s16, 39
      // Predicated region
      $region29: #{connect4_forward.2} parent=5 // pred_check
        %p219 = pneg %p218
      $region30: #{connect4_forward.2} parent=5 // pred_check_branch
        %221 = sbr.rel (%p219) target = $region32
      $region31: #{connect4_forward.2} parent=5 // pred_region
        // Predicated region
        $region33: #{connect4_forward.2} parent=31 // pred_check
          %p222 = pneg %p78
        $region34: #{connect4_forward.2} parent=31 // pred_check_branch
          %224 = sbr.rel (%p222) target = $region36
        $region35: #{connect4_forward.2} parent=31 // pred_region
          %s225 = sand.u32 %s68, 1
          %s226 = scalar_lea.sflag [#allocation5], %s225
          %s227 = sand.u32 %s68, 1
          %s228 = smul.addr %s227, 576
          %s229 = scalar_lea.vmem [#allocation4], %s228
          %s231 = ssub.s32 9216, 9216
          %232 = vsyncadd %s226, %s231
          %s233 = smul.addr %s16, 144
          %s234 = smul.addr %s233, 64
          %s235 = scalar_lea.hbm %s2, %s234
          %s236 = sshll.u32 %s229, 4
          %s237 = int_to_ptr.vmem [resolvable:$true] %s236
          %242 = dma.hbm_to_vmem [thread:$0]  %s235, 9216, %s237, %s226, 64, 64, 4
        $region36: #{connect4_forward.2} parent=31 // pred_fallthru
          _
        // Predicated region
        $region37: #{connect4_forward.2} parent=31 // pred_check
          %p243 = pneg %p104
        $region38: #{connect4_forward.2} parent=31 // pred_check_branch
          %245 = sbr.rel (%p243) target = $region40
        $region39: #{connect4_forward.2} parent=31 // pred_region
          %p246 = scmp.lt.s32.totalorder %s16, 38
          %s247 = scalar_select %p246, %s16, 38
          %s248 = smul.addr %s247, 4
          %s249 = scalar_lea.vmem %s3, %s248
        $region40: #{connect4_forward.2} parent=31 // pred_fallthru
          _
      $region32: #{connect4_forward.2} parent=5 // pred_fallthru
        _
      %p250 = scmp.le.s32.totalorder 1, %s16
      %p251 = scmp.lt.s32.totalorder %s16, 40
      %p252 = pnand %p250, %p251
      %p253 = pneg %p252
      // Predicated region
      $region41: #{connect4_forward.2} parent=5 // pred_check
        _
      $region42: #{connect4_forward.2} parent=5 // pred_check_branch
        %255 = sbr.rel (%p252) target = $region44
      $region43: #{connect4_forward.2} parent=5 // pred_region
        %s256 = ssub.s32 %s16, 1
        %s257 = sand.u32 %s71, 1
        %s258 = scalar_lea.sflag [#allocation5], %s257
        %s259 = sand.u32 %s71, 1
        %s260 = smul.addr %s259, 576
        %s261 = scalar_lea.vmem [#allocation4], %s260
        // Predicated region
        $region45: #{connect4_forward.2} parent=43 // pred_check
          %p262 = pneg %p84
        $region46: #{connect4_forward.2} parent=43 // pred_check_branch
          %264 = sbr.rel (%p262) target = $region48
        $region47: #{connect4_forward.2} parent=43 // pred_region
          %265 = dma.done %s258, 9216
        $region48: #{connect4_forward.2} parent=43 // pred_fallthru
          _
        // Predicated region
        $region49: #{connect4_forward.2} parent=43 // pred_check
          %p266 = pneg %p131
        $region50: #{connect4_forward.2} parent=43 // pred_check_branch
          %268 = sbr.rel (%p266) target = $region52
        $region51: #{connect4_forward.2} parent=43 // pred_region
          %269 = dma.done [#allocation7], 1024
        $region52: #{connect4_forward.2} parent=43 // pred_fallthru
          _
        // Predicated region
        $region53: #{connect4_forward.2} parent=43 // pred_check
          %p270 = pneg %p152
        $region54: #{connect4_forward.2} parent=43 // pred_check_branch
          %272 = sbr.rel (%p270) target = $region56
        $region55: #{connect4_forward.2} parent=43 // pred_region
          %273 = dma.done [#allocation7], 64
        $region56: #{connect4_forward.2} parent=43 // pred_fallthru
          _
        %p274 = pneg %p37
        %p275 = pneg %p34
        %p276 = pneg %p58
        %p277 = pneg %p55
        %s278 = sand.u32 %s71, 1
        %s279 = scalar_lea.sflag [#allocation5], %s278
        %s280 = sand.u32 %s71, 1
        %s281 = smul.addr %s280, 576
        %s282 = scalar_lea.vmem [#allocation4], %s281
        %p283 = pneg %p84
        %p284 = pneg %p81
        %p285 = scmp.lt.s32.totalorder %s21, 38
        %s286 = scalar_select %p285, %s21, 38
        %s287 = smul.addr %s286, 4
        %s288 = scalar_lea.vmem %s3, %s287
        %p289 = pneg %p110
        %p290 = pneg %p107
        %p291 = pneg %p131
        %p292 = pneg %p128
        %p293 = pneg %p152
        %p294 = pneg %p149
        %p295 = pneg %p173
        %p296 = pneg %p170
        %p297 = scmp.lt.s32.totalorder %s21, 38
        %s298 = scalar_select %p297, %s21, 38
        %s299 = smul.addr %s298, 4
        %s300 = scalar_lea.vmem %s3, %s299
        %p302 = scmp.eq.s32.totalorder %s21, 0
        // Predicated region
        $region57: #{connect4_forward.2} parent=43 // pred_check
          %p303 = pneg %p302
        $region58: #{connect4_forward.2} parent=43 // pred_check_branch
          %305 = sbr.rel (%p303) target = $region60
        $region59: #{connect4_forward.2} parent=43 // pred_region
          %306 = vst [vmem:[#allocation2] sm:$0xff] 0.0
          %307 = vst [vmem:[#allocation2 + $0x8] sm:$0xff] 0.0
          %308 = vst [vmem:[#allocation2 + $0x10] sm:$0xff] 0.0
          %309 = vst [vmem:[#allocation2 + $0x18] sm:$0xff] 0.0
          %310 = vst [vmem:[#allocation2 + $0x20] sm:$0xff] 0.0
          %311 = vst [vmem:[#allocation2 + $0x28] sm:$0xff] 0.0
          %312 = vst [vmem:[#allocation2 + $0x30] sm:$0xff] 0.0
          %313 = vst [vmem:[#allocation2 + $0x38] sm:$0xff] 0.0
          %314 = vst [vmem:[#allocation2 + $0x40] sm:$0xff] 0.0
          %315 = vst [vmem:[#allocation2 + $0x48] sm:$0xff] 0.0
          %316 = vst [vmem:[#allocation2 + $0x50] sm:$0xff] 0.0
          %317 = vst [vmem:[#allocation2 + $0x58] sm:$0xff] 0.0
          %318 = vst [vmem:[#allocation2 + $0x60] sm:$0xff] 0.0
          %319 = vst [vmem:[#allocation2 + $0x68] sm:$0xff] 0.0
          %320 = vst [vmem:[#allocation2 + $0x70] sm:$0xff] 0.0
          %321 = vst [vmem:[#allocation2 + $0x78] sm:$0xff] 0.0
          %322 = vst [vmem:[#allocation2 + $0x80] sm:$0xff] 0.0
          %323 = vst [vmem:[#allocation2 + $0x88] sm:$0xff] 0.0
          %324 = vst [vmem:[#allocation2 + $0x90] sm:$0xff] 0.0
          %325 = vst [vmem:[#allocation2 + $0x98] sm:$0xff] 0.0
          %326 = vst [vmem:[#allocation2 + $0xa0] sm:$0xff] 0.0
          %327 = vst [vmem:[#allocation2 + $0xa8] sm:$0xff] 0.0
          %v328 = vld [vmem:[%s0] sm:$0xff]
          %v329 = vld [vmem:[%s0 + $0x8] sm:$0xff]
          %v330 = vld [vmem:[%s0 + $0x10] sm:$0xff]
          %v331 = vld [vmem:[%s0 + $0x18] sm:$0xff]
          %v332 = vld [vmem:[%s0 + $0x20] sm:$0xff]
          %v333 = vld [vmem:[%s0 + $0x28] sm:$0xff]
          %v334 = vld [vmem:[%s0 + $0x30] sm:$0xff]
          %v335 = vld [vmem:[%s0 + $0x38] sm:$0xff]
          %v336 = vld [vmem:[%s0 + $0x40] sm:$0xff]
          %v337 = vld [vmem:[%s0 + $0x48] sm:$0xff]
          %v338 = vld [vmem:[%s0 + $0x50] sm:$0xff]
          %v339 = vld [vmem:[%s0 + $0x58] sm:$0xff]
          %v340 = vld [vmem:[%s0 + $0x60] sm:$0xff]
          %v341 = vld [vmem:[%s0 + $0x68] sm:$0xff]
          %v342 = vld [vmem:[%s0 + $0x70] sm:$0xff]
          %v343 = vld [vmem:[%s0 + $0x78] sm:$0xff]
          %v344 = vld [vmem:[%s0 + $0x80] sm:$0xff]
          %v345 = vld [vmem:[%s0 + $0x88] sm:$0xff]
          %346 = vst [vmem:[#allocation2 + $0x10] sm:$0xff] %v328
          %347 = vst [vmem:[#allocation2 + $0x18] sm:$0xff] %v329
          %348 = vst [vmem:[#allocation2 + $0x20] sm:$0xff] %v330
          %349 = vst [vmem:[#allocation2 + $0x28] sm:$0xff] %v331
          %350 = vst [vmem:[#allocation2 + $0x30] sm:$0xff] %v332
          %351 = vst [vmem:[#allocation2 + $0x38] sm:$0xff] %v333
          %352 = vst [vmem:[#allocation2 + $0x40] sm:$0xff] %v334
          %353 = vst [vmem:[#allocation2 + $0x48] sm:$0xff] %v335
          %354 = vst [vmem:[#allocation2 + $0x50] sm:$0xff] %v336
          %355 = vst [vmem:[#allocation2 + $0x58] sm:$0xff] %v337
          %356 = vst [vmem:[#allocation2 + $0x60] sm:$0xff] %v338
          %357 = vst [vmem:[#allocation2 + $0x68] sm:$0xff] %v339
          %358 = vst [vmem:[#allocation2 + $0x70] sm:$0xff] %v340
          %359 = vst [vmem:[#allocation2 + $0x78] sm:$0xff] %v341
          %360 = vst [vmem:[#allocation2 + $0x80] sm:$0xff] %v342
          %361 = vst [vmem:[#allocation2 + $0x88] sm:$0xff] %v343
          %362 = vst [vmem:[#allocation2 + $0x90] sm:$0xff] %v344
          %363 = vst [vmem:[#allocation2 + $0x98] sm:$0xff] %v345
          %364 = vst [vmem:[#allocation3] sm:$0xff] 0.0
          %365 = vst [vmem:[#allocation3 + $0x8] sm:$0xff] 0.0
          %366 = vst [vmem:[#allocation3 + $0x10] sm:$0xff] 0.0
          %367 = vst [vmem:[#allocation3 + $0x18] sm:$0xff] 0.0
          %368 = vst [vmem:[#allocation3 + $0x20] sm:$0xff] 0.0
          %369 = vst [vmem:[#allocation3 + $0x28] sm:$0xff] 0.0
          %370 = vst [vmem:[#allocation3 + $0x30] sm:$0xff] 0.0
          %371 = vst [vmem:[#allocation3 + $0x38] sm:$0xff] 0.0
          %372 = vst [vmem:[#allocation3 + $0x40] sm:$0xff] 0.0
          %373 = vst [vmem:[#allocation3 + $0x48] sm:$0xff] 0.0
          %374 = vst [vmem:[#allocation3 + $0x50] sm:$0xff] 0.0
          %375 = vst [vmem:[#allocation3 + $0x58] sm:$0xff] 0.0
          %376 = vst [vmem:[#allocation3 + $0x60] sm:$0xff] 0.0
          %377 = vst [vmem:[#allocation3 + $0x68] sm:$0xff] 0.0
          %378 = vst [vmem:[#allocation3 + $0x70] sm:$0xff] 0.0
          %379 = vst [vmem:[#allocation3 + $0x78] sm:$0xff] 0.0
          %380 = vst [vmem:[#allocation3 + $0x80] sm:$0xff] 0.0
          %381 = vst [vmem:[#allocation3 + $0x88] sm:$0xff] 0.0
        $region60: #{connect4_forward.2} parent=43 // pred_fallthru
          _
        %s382 = sand.u32 %s21, 1
        %p383 = scmp.eq.s32.totalorder %s382, 1
        // Predicated region
        $region61: #{connect4_forward.2} parent=43 // pred_check
          %p384 = pneg %p383
        $region62: #{connect4_forward.2} parent=43 // pred_check_branch
          %386 = sbr.rel (%p384) target = $region64
        $region63: #{connect4_forward.2} parent=43 // pred_region
          %v387 = vld [vmem:[#allocation2 + $0x10] sm:$0xff]
          %v388 = vld [vmem:[#allocation2 + $0x18] sm:$0xff]
          %v389 = vld [vmem:[#allocation2 + $0x20] sm:$0xff]
          %v390 = vld [vmem:[#allocation2 + $0x28] sm:$0xff]
          %v391 = vld [vmem:[#allocation2 + $0x30] sm:$0xff]
          %v392 = vld [vmem:[#allocation2 + $0x38] sm:$0xff]
          %v393 = vld [vmem:[#allocation2 + $0x40] sm:$0xff]
          %v394 = vld [vmem:[#allocation2 + $0x48] sm:$0xff]
          %v395 = vld [vmem:[#allocation2 + $0x50] sm:$0xff]
          %v396 = vld [vmem:[#allocation2 + $0x58] sm:$0xff]
          %v397 = vld [vmem:[#allocation2 + $0x60] sm:$0xff]
          %v398 = vld [vmem:[#allocation2 + $0x68] sm:$0xff]
          %v399 = vld [vmem:[#allocation2 + $0x70] sm:$0xff]
          %v400 = vld [vmem:[#allocation2 + $0x78] sm:$0xff]
          %v401 = vld [vmem:[#allocation2 + $0x80] sm:$0xff]
          %v402 = vld [vmem:[#allocation2 + $0x88] sm:$0xff]
          %v403 = vld [vmem:[#allocation2 + $0x90] sm:$0xff]
          %v404 = vld [vmem:[#allocation2 + $0x98] sm:$0xff]
          %405 = vst [vmem:[#allocation3] sm:$0xff] %v387
          %406 = vst [vmem:[#allocation3 + $0x8] sm:$0xff] %v388
          %407 = vst [vmem:[#allocation3 + $0x10] sm:$0xff] %v389
          %408 = vst [vmem:[#allocation3 + $0x18] sm:$0xff] %v390
          %409 = vst [vmem:[#allocation3 + $0x20] sm:$0xff] %v391
          %410 = vst [vmem:[#allocation3 + $0x28] sm:$0xff] %v392
          %411 = vst [vmem:[#allocation3 + $0x30] sm:$0xff] %v393
          %412 = vst [vmem:[#allocation3 + $0x38] sm:$0xff] %v394
          %413 = vst [vmem:[#allocation3 + $0x40] sm:$0xff] %v395
          %414 = vst [vmem:[#allocation3 + $0x48] sm:$0xff] %v396
          %415 = vst [vmem:[#allocation3 + $0x50] sm:$0xff] %v397
          %416 = vst [vmem:[#allocation3 + $0x58] sm:$0xff] %v398
          %417 = vst [vmem:[#allocation3 + $0x60] sm:$0xff] %v399
          %418 = vst [vmem:[#allocation3 + $0x68] sm:$0xff] %v400
          %419 = vst [vmem:[#allocation3 + $0x70] sm:$0xff] %v401
          %420 = vst [vmem:[#allocation3 + $0x78] sm:$0xff] %v402
          %421 = vst [vmem:[#allocation3 + $0x80] sm:$0xff] %v403
          %422 = vst [vmem:[#allocation3 + $0x88] sm:$0xff] %v404
        $region64: #{connect4_forward.2} parent=43 // pred_fallthru
          _
        %v423 = vld [vmem:[%s1] sm:$0xff]
        %v424 = vld [vmem:[%s1 + $0x8] sm:$0xff]
        %v425 = vld [vmem:[%s1 + $0x10] sm:$0xff]
        %v426 = vld [vmem:[%s1 + $0x18] sm:$0xff]
        %v427 = vld [vmem:[%s1 + $0x20] sm:$0xff]
        %v428 = vld [vmem:[%s1 + $0x28] sm:$0xff]
        %v429 = vld [vmem:[%s1 + $0x30] sm:$0xff]
        %v430 = vld [vmem:[%s1 + $0x38] sm:$0xff]
        %v431 = vld [vmem:[%s1 + $0x40] sm:$0xff]
        %v432 = vld [vmem:[%s1 + $0x48] sm:$0xff]
        %v433 = vld [vmem:[%s1 + $0x50] sm:$0xff]
        %v434 = vld [vmem:[%s1 + $0x58] sm:$0xff]
        %v435 = vld [vmem:[%s1 + $0x60] sm:$0xff]
        %v436 = vld [vmem:[%s1 + $0x68] sm:$0xff]
        %v437 = vld [vmem:[%s1 + $0x70] sm:$0xff]
        %v438 = vld [vmem:[%s1 + $0x78] sm:$0xff]
        %v439 = vld [vmem:[%s1 + $0x80] sm:$0xff]
        %v440 = vld [vmem:[%s1 + $0x88] sm:$0xff]
        %v441 = vld [vmem:[#allocation2 + $0x6] sm:$0xff]
        %v442 = vld [vmem:[#allocation2 + $0xe] sm:$0xff]
        %v443 = vld [vmem:[#allocation2 + $0x16] sm:$0xff]
        %v444 = vld [vmem:[#allocation2 + $0x1e] sm:$0xff]
        %v445 = vld [vmem:[#allocation2 + $0x26] sm:$0xff]
        %v446 = vld [vmem:[#allocation2 + $0x2e] sm:$0xff]
        %v447 = vld [vmem:[#allocation2 + $0x36] sm:$0xff]
        %v448 = vld [vmem:[#allocation2 + $0x3e] sm:$0xff]
        %v449 = vld [vmem:[#allocation2 + $0x46] sm:$0xff]
        %v450 = vld [vmem:[#allocation2 + $0x4e] sm:$0xff]
        %v451 = vld [vmem:[#allocation2 + $0x56] sm:$0xff]
        %v452 = vld [vmem:[#allocation2 + $0x5e] sm:$0xff]
        %v453 = vld [vmem:[#allocation2 + $0x66] sm:$0xff]
        %v454 = vld [vmem:[#allocation2 + $0x6e] sm:$0xff]
        %v455 = vld [vmem:[#allocation2 + $0x76] sm:$0xff]
        %v456 = vld [vmem:[#allocation2 + $0x7e] sm:$0xff]
        %v457 = vld [vmem:[#allocation2 + $0x86] sm:$0xff]
        %v458 = vld [vmem:[#allocation2 + $0x8e] sm:$0xff]
        %v459 = vpack.c.bf16 %v442, %v441
        %v460 = vpack.c.bf16 %v444, %v443
        %v461 = vpack.c.bf16 %v446, %v445
        %v462 = vpack.c.bf16 %v448, %v447
        %v463 = vpack.c.bf16 %v450, %v449
        %v464 = vpack.c.bf16 %v452, %v451
        %v465 = vpack.c.bf16 %v454, %v453
        %v466 = vpack.c.bf16 %v456, %v455
        %v467 = vpack.c.bf16 %v458, %v457
        %v468 = vld [vmem:[%s261] sm:$0xf]
        %v469 = vld [vmem:[%s261 + $0x4] sm:$0xf]
        %v470 = vld [vmem:[%s261 + $0x8] sm:$0xf]
        %v471 = vld [vmem:[%s261 + $0xc] sm:$0xf]
        %v472 = vld [vmem:[%s261 + $0x10] sm:$0xf]
        %v473 = vld [vmem:[%s261 + $0x14] sm:$0xf]
        %v474 = vld [vmem:[%s261 + $0x18] sm:$0xf]
        %v475 = vld [vmem:[%s261 + $0x1c] sm:$0xf]
        %v476 = vld [vmem:[%s261 + $0x20] sm:$0xf]
        %v477 = vld [vmem:[%s261 + $0x24] sm:$0xf]
        %v478 = vld [vmem:[%s261 + $0x28] sm:$0xf]
        %v479 = vld [vmem:[%s261 + $0x2c] sm:$0xf]
        %v480 = vld [vmem:[%s261 + $0x30] sm:$0xf]
        %v481 = vld [vmem:[%s261 + $0x34] sm:$0xf]
        %v482 = vld [vmem:[%s261 + $0x38] sm:$0xf]
        %v483 = vld [vmem:[%s261 + $0x3c] sm:$0xf]
        %v484 = vld [vmem:[#allocation2 + $0x7] sm:$0xff]
        %v485 = vld [vmem:[#allocation2 + $0xf] sm:$0xff]
        %v486 = vld [vmem:[#allocation2 + $0x17] sm:$0xff]
        %v487 = vld [vmem:[#allocation2 + $0x1f] sm:$0xff]
        %v488 = vld [vmem:[#allocation2 + $0x27] sm:$0xff]
        %v489 = vld [vmem:[#allocation2 + $0x2f] sm:$0xff]
        %v490 = vld [vmem:[#allocation2 + $0x37] sm:$0xff]
        %v491 = vld [vmem:[#allocation2 + $0x3f] sm:$0xff]
        %v492 = vld [vmem:[#allocation2 + $0x47] sm:$0xff]
        %v493 = vld [vmem:[#allocation2 + $0x4f] sm:$0xff]
        %v494 = vld [vmem:[#allocation2 + $0x57] sm:$0xff]
        %v495 = vld [vmem:[#allocation2 + $0x5f] sm:$0xff]
        %v496 = vld [vmem:[#allocation2 + $0x67] sm:$0xff]
        %v497 = vld [vmem:[#allocation2 + $0x6f] sm:$0xff]
        %v498 = vld [vmem:[#allocation2 + $0x77] sm:$0xff]
        %v499 = vld [vmem:[#allocation2 + $0x7f] sm:$0xff]
        %v500 = vld [vmem:[#allocation2 + $0x87] sm:$0xff]
        %v501 = vld [vmem:[#allocation2 + $0x8f] sm:$0xff]
        %v502 = vpack.c.bf16 %v485, %v484
        %v503 = vpack.c.bf16 %v487, %v486
        %v504 = vpack.c.bf16 %v489, %v488
        %v505 = vpack.c.bf16 %v491, %v490
        %v506 = vpack.c.bf16 %v493, %v492
        %v507 = vpack.c.bf16 %v495, %v494
        %v508 = vpack.c.bf16 %v497, %v496
        %v509 = vpack.c.bf16 %v499, %v498
        %v510 = vpack.c.bf16 %v501, %v500
        %s511 = scalar_lea.vmem %s261, 64 [#allocation4]
        %v512 = vld [vmem:[%s511] sm:$0xf]
        %v513 = vld [vmem:[%s511 + $0x4] sm:$0xf]
        %v514 = vld [vmem:[%s511 + $0x8] sm:$0xf]
        %v515 = vld [vmem:[%s511 + $0xc] sm:$0xf]
        %v516 = vld [vmem:[%s511 + $0x10] sm:$0xf]
        %v517 = vld [vmem:[%s511 + $0x14] sm:$0xf]
        %v518 = vld [vmem:[%s511 + $0x18] sm:$0xf]
        %v519 = vld [vmem:[%s511 + $0x1c] sm:$0xf]
        %v520 = vld [vmem:[%s511 + $0x20] sm:$0xf]
        %v521 = vld [vmem:[%s511 + $0x24] sm:$0xf]
        %v522 = vld [vmem:[%s511 + $0x28] sm:$0xf]
        %v523 = vld [vmem:[%s511 + $0x2c] sm:$0xf]
        %v524 = vld [vmem:[%s511 + $0x30] sm:$0xf]
        %v525 = vld [vmem:[%s511 + $0x34] sm:$0xf]
        %v526 = vld [vmem:[%s511 + $0x38] sm:$0xf]
        %v527 = vld [vmem:[%s511 + $0x3c] sm:$0xf]
        %v544 = vunpack.c.l.b16 %v512
        %v545 = vunpack.c.l.b16 %v513
        %v546 = vunpack.c.l.b16 %v514
        %v547 = vunpack.c.l.b16 %v515
        %v548 = vunpack.c.l.b16 %v516
        %v549 = vunpack.c.l.b16 %v517
        %v550 = vunpack.c.l.b16 %v518
        %v551 = vunpack.c.l.b16 %v519
        %v552 = vunpack.c.l.b16 %v520
        %v553 = vunpack.c.l.b16 %v521
        %v554 = vunpack.c.l.b16 %v522
        %v555 = vunpack.c.l.b16 %v523
        %v556 = vunpack.c.l.b16 %v524
        %v557 = vunpack.c.l.b16 %v525
        %v558 = vunpack.c.l.b16 %v526
        %v559 = vunpack.c.l.b16 %v527
        %v560 = vpack.c.b16 %v545, %v544
        %v561 = vpack.c.b16 %v547, %v546
        %v562 = vpack.c.b16 %v549, %v548
        %v563 = vpack.c.b16 %v551, %v550
        %v564 = vpack.c.b16 %v553, %v552
        %v565 = vpack.c.b16 %v555, %v554
        %v566 = vpack.c.b16 %v557, %v556
        %v567 = vpack.c.b16 %v559, %v558
        %576 = vmatprep.subr.bf16.mxu0 0
        %577 = vmatpush1.bf16.msra.mxu0 %v560
        %578 = vmatprep.subr.bf16.mxu0 0
        %579 = vmatpush1.bf16.msra.mxu0 %v561
        %580 = vmatprep.subr.bf16.mxu0 0
        %581 = vmatpush1.bf16.msra.mxu0 %v562
        %582 = vmatprep.subr.bf16.mxu0 0
        %583 = vmatpush1.bf16.msra.mxu0 %v563
        %584 = vmatprep.subr.bf16.mxu0 0
        %585 = vmatpush1.bf16.msra.mxu0 %v564
        %586 = vmatprep.subr.bf16.mxu0 0
        %587 = vmatpush1.bf16.msra.mxu0 %v565
        %588 = vmatprep.subr.bf16.mxu0 0
        %589 = vmatpush1.bf16.msra.mxu0 %v566
        %590 = vmatprep.subr.bf16.mxu0 0
        %591 = vmatpush1.bf16.msra.mxu0 %v567
        %592 = vmatprep.subr.bf16.mxu0 0
        %593 = vmatpush1.bf16.msra.mxu0 0
        %594 = vmatprep.subr.bf16.mxu0 0
        %595 = vmatpush1.bf16.msra.mxu0 0
        %596 = vmatprep.subr.bf16.mxu0 0
        %597 = vmatpush1.bf16.msra.mxu0 0
        %598 = vmatprep.subr.bf16.mxu0 0
        %599 = vmatpush1.bf16.msra.mxu0 0
        %600 = vmatprep.subr.bf16.mxu0 0
        %601 = vmatpush1.bf16.msra.mxu0 0
        %602 = vmatprep.subr.bf16.mxu0 0
        %603 = vmatpush1.bf16.msra.mxu0 0
        %604 = vmatprep.subr.bf16.mxu0 0
        %605 = vmatpush1.bf16.msra.mxu0 0
        %606 = vmatprep.subr.bf16.mxu0 0
        %607 = vmatpush1.bf16.msra.mxu0 0
        %608 = vmatprep.mubr.bf16.mxu0 0
        %609 = vmatmul.mubr.bf16.gmra.mrb[0].mxu0 %v502
        %v610 = vpop.f32.mrb[0].mxu0
        %v611 = vadd.f32 0.0, %v610
        %v612 = vpop.f32.mrb[0].mxu0
        %v613 = vpop.f32.mrb[0].mxu0
        %v614 = vadd.f32 0.0, %v613
        %v615 = vpop.f32.mrb[0].mxu0
        %616 = vmatprep.mubr.bf16.mxu0 0
        %617 = vmatmul.mubr.bf16.gmra.mrb[0].mxu0 %v503
        %v618 = vpop.f32.mrb[0].mxu0
        %v619 = vadd.f32 0.0, %v618
        %v620 = vpop.f32.mrb[0].mxu0
        %v621 = vpop.f32.mrb[0].mxu0
        %v622 = vadd.f32 0.0, %v621
        %v623 = vpop.f32.mrb[0].mxu0
        %624 = vmatprep.mubr.bf16.mxu0 0
        %625 = vmatmul.mubr.bf16.gmra.mrb[0].mxu0 %v504
        %v626 = vpop.f32.mrb[0].mxu0
        %v627 = vadd.f32 0.0, %v626
        %v628 = vpop.f32.mrb[0].mxu0
        %v629 = vpop.f32.mrb[0].mxu0
        %v630 = vadd.f32 0.0, %v629
        %v631 = vpop.f32.mrb[0].mxu0
        %632 = vmatprep.mubr.bf16.mxu0 0
        %633 = vmatmul.mubr.bf16.gmra.mrb[0].mxu0 %v505
        %v634 = vpop.f32.mrb[0].mxu0
        %v635 = vadd.f32 0.0, %v634
        %v636 = vpop.f32.mrb[0].mxu0
        %v637 = vpop.f32.mrb[0].mxu0
        %v638 = vadd.f32 0.0, %v637
        %v639 = vpop.f32.mrb[0].mxu0
        %640 = vmatprep.mubr.bf16.mxu0 0
        %641 = vmatmul.mubr.bf16.gmra.mrb[0].mxu0 %v506
        %v642 = vpop.f32.mrb[0].mxu0
        %v643 = vadd.f32 0.0, %v642
        %v644 = vpop.f32.mrb[0].mxu0
        %v645 = vpop.f32.mrb[0].mxu0
        %v646 = vadd.f32 0.0, %v645
        %v647 = vpop.f32.mrb[0].mxu0
        %648 = vmatprep.mubr.bf16.mxu0 0
        %649 = vmatmul.mubr.bf16.gmra.mrb[0].mxu0 %v507
        %v650 = vpop.f32.mrb[0].mxu0
        %v651 = vadd.f32 0.0, %v650
        %v652 = vpop.f32.mrb[0].mxu0
        %v653 = vpop.f32.mrb[0].mxu0
        %v654 = vadd.f32 0.0, %v653
        %v655 = vpop.f32.mrb[0].mxu0
        %656 = vmatprep.mubr.bf16.mxu0 0
        %657 = vmatmul.mubr.bf16.gmra.mrb[0].mxu0 %v508
        %v658 = vpop.f32.mrb[0].mxu0
        %v659 = vadd.f32 0.0, %v658
        %v660 = vpop.f32.mrb[0].mxu0
        %v661 = vpop.f32.mrb[0].mxu0
        %v662 = vadd.f32 0.0, %v661
        %v663 = vpop.f32.mrb[0].mxu0
        %664 = vmatprep.mubr.bf16.mxu0 0
        %665 = vmatmul.mubr.bf16.gmra.mrb[0].mxu0 %v509
        %v666 = vpop.f32.mrb[0].mxu0
        %v667 = vadd.f32 0.0, %v666
        %v668 = vpop.f32.mrb[0].mxu0
        %v669 = vpop.f32.mrb[0].mxu0
        %v670 = vadd.f32 0.0, %v669
        %v671 = vpop.f32.mrb[0].mxu0
        %672 = vmatprep.mubr.bf16.mxu0 0
        %673 = vmatmul.mubr.bf16.gmra.mrb[0].mxu0 %v510
        %v674 = vpop.f32.mrb[0].mxu0
        %v675 = vadd.f32 0.0, %v674
        %v676 = vpop.f32.mrb[0].mxu0
        %v677 = vpop.f32.mrb[0].mxu0
        %v678 = vadd.f32 0.0, %v677
        %v679 = vpop.f32.mrb[0].mxu0
        %680 = vdwg.mxu0
        %v697 = vunpack.c.l.b16 %v468
        %v698 = vunpack.c.l.b16 %v469
        %v699 = vunpack.c.l.b16 %v470
        %v700 = vunpack.c.l.b16 %v471
        %v701 = vunpack.c.l.b16 %v472
        %v702 = vunpack.c.l.b16 %v473
        %v703 = vunpack.c.l.b16 %v474
        %v704 = vunpack.c.l.b16 %v475
        %v705 = vunpack.c.l.b16 %v476
        %v706 = vunpack.c.l.b16 %v477
        %v707 = vunpack.c.l.b16 %v478
        %v708 = vunpack.c.l.b16 %v479
        %v709 = vunpack.c.l.b16 %v480
        %v710 = vunpack.c.l.b16 %v481
        %v711 = vunpack.c.l.b16 %v482
        %v712 = vunpack.c.l.b16 %v483
        %v713 = vpack.c.b16 %v698, %v697
        %v714 = vpack.c.b16 %v700, %v699
        %v715 = vpack.c.b16 %v702, %v701
        %v716 = vpack.c.b16 %v704, %v703
        %v717 = vpack.c.b16 %v706, %v705
        %v718 = vpack.c.b16 %v708, %v707
        %v719 = vpack.c.b16 %v710, %v709
        %v720 = vpack.c.b16 %v712, %v711
        %729 = vmatprep.subr.bf16.mxu0 0
        %730 = vmatpush1.bf16.msra.mxu0 %v713
        %731 = vmatprep.subr.bf16.mxu0 0
        %732 = vmatpush1.bf16.msra.mxu0 %v714
        %733 = vmatprep.subr.bf16.mxu0 0
        %734 = vmatpush1.bf16.msra.mxu0 %v715
        %735 = vmatprep.subr.bf16.mxu0 0
        %736 = vmatpush1.bf16.msra.mxu0 %v716
        %737 = vmatprep.subr.bf16.mxu0 0
        %738 = vmatpush1.bf16.msra.mxu0 %v717
        %739 = vmatprep.subr.bf16.mxu0 0
        %740 = vmatpush1.bf16.msra.mxu0 %v718
        %741 = vmatprep.subr.bf16.mxu0 0
        %742 = vmatpush1.bf16.msra.mxu0 %v719
        %743 = vmatprep.subr.bf16.mxu0 0
        %744 = vmatpush1.bf16.msra.mxu0 %v720
        %745 = vmatprep.subr.bf16.mxu0 0
        %746 = vmatpush1.bf16.msra.mxu0 0
        %747 = vmatprep.subr.bf16.mxu0 0
        %748 = vmatpush1.bf16.msra.mxu0 0
        %749 = vmatprep.subr.bf16.mxu0 0
        %750 = vmatpush1.bf16.msra.mxu0 0
        %751 = vmatprep.subr.bf16.mxu0 0
        %752 = vmatpush1.bf16.msra.mxu0 0
        %753 = vmatprep.subr.bf16.mxu0 0
        %754 = vmatpush1.bf16.msra.mxu0 0
        %755 = vmatprep.subr.bf16.mxu0 0
        %756 = vmatpush1.bf16.msra.mxu0 0
        %757 = vmatprep.subr.bf16.mxu0 0
        %758 = vmatpush1.bf16.msra.mxu0 0
        %759 = vmatprep.subr.bf16.mxu0 0
        %760 = vmatpush1.bf16.msra.mxu0 0
        %761 = vmatprep.mubr.bf16.mxu0 0
        %762 = vmatmul.mubr.bf16.gmra.mrb[0].mxu0 %v459
        %v763 = vpop.f32.mrb[0].mxu0
        %v764 = vadd.f32 %v611, %v763
        %v765 = vpop.f32.mrb[0].mxu0
        %v766 = vpop.f32.mrb[0].mxu0
        %v767 = vadd.f32 %v614, %v766
        %v768 = vpop.f32.mrb[0].mxu0
        %769 = vmatprep.mubr.bf16.mxu0 0
        %770 = vmatmul.mubr.bf16.gmra.mrb[0].mxu0 %v460
        %v771 = vpop.f32.mrb[0].mxu0
        %v772 = vadd.f32 %v619, %v771
        %v773 = vpop.f32.mrb[0].mxu0
        %v774 = vpop.f32.mrb[0].mxu0
        %v775 = vadd.f32 %v622, %v774
        %v776 = vpop.f32.mrb[0].mxu0
        %777 = vmatprep.mubr.bf16.mxu0 0
        %778 = vmatmul.mubr.bf16.gmra.mrb[0].mxu0 %v461
        %v779 = vpop.f32.mrb[0].mxu0
        %v780 = vadd.f32 %v627, %v779
        %v781 = vpop.f32.mrb[0].mxu0
        %v782 = vpop.f32.mrb[0].mxu0
        %v783 = vadd.f32 %v630, %v782
        %v784 = vpop.f32.mrb[0].mxu0
        %785 = vmatprep.mubr.bf16.mxu0 0
        %786 = vmatmul.mubr.bf16.gmra.mrb[0].mxu0 %v462
        %v787 = vpop.f32.mrb[0].mxu0
        %v788 = vadd.f32 %v635, %v787
        %v789 = vpop.f32.mrb[0].mxu0
        %v790 = vpop.f32.mrb[0].mxu0
        %v791 = vadd.f32 %v638, %v790
        %v792 = vpop.f32.mrb[0].mxu0
        %793 = vmatprep.mubr.bf16.mxu0 0
        %794 = vmatmul.mubr.bf16.gmra.mrb[0].mxu0 %v463
        %v795 = vpop.f32.mrb[0].mxu0
        %v796 = vadd.f32 %v643, %v795
        %v797 = vpop.f32.mrb[0].mxu0
        %v798 = vpop.f32.mrb[0].mxu0
        %v799 = vadd.f32 %v646, %v798
        %v800 = vpop.f32.mrb[0].mxu0
        %801 = vmatprep.mubr.bf16.mxu0 0
        %802 = vmatmul.mubr.bf16.gmra.mrb[0].mxu0 %v464
        %v803 = vpop.f32.mrb[0].mxu0
        %v804 = vadd.f32 %v651, %v803
        %v805 = vpop.f32.mrb[0].mxu0
        %v806 = vpop.f32.mrb[0].mxu0
        %v807 = vadd.f32 %v654, %v806
        %v808 = vpop.f32.mrb[0].mxu0
        %809 = vmatprep.mubr.bf16.mxu0 0
        %810 = vmatmul.mubr.bf16.gmra.mrb[0].mxu0 %v465
        %v811 = vpop.f32.mrb[0].mxu0
        %v812 = vadd.f32 %v659, %v811
        %v813 = vpop.f32.mrb[0].mxu0
        %v814 = vpop.f32.mrb[0].mxu0
        %v815 = vadd.f32 %v662, %v814
        %v816 = vpop.f32.mrb[0].mxu0
        %817 = vmatprep.mubr.bf16.mxu0 0
        %818 = vmatmul.mubr.bf16.gmra.mrb[0].mxu0 %v466
        %v819 = vpop.f32.mrb[0].mxu0
        %v820 = vadd.f32 %v667, %v819
        %v821 = vpop.f32.mrb[0].mxu0
        %v822 = vpop.f32.mrb[0].mxu0
        %v823 = vadd.f32 %v670, %v822
        %v824 = vpop.f32.mrb[0].mxu0
        %825 = vmatprep.mubr.bf16.mxu0 0
        %826 = vmatmul.mubr.bf16.gmra.mrb[0].mxu0 %v467
        %v827 = vpop.f32.mrb[0].mxu0
        %v828 = vadd.f32 %v675, %v827
        %v829 = vpop.f32.mrb[0].mxu0
        %v830 = vpop.f32.mrb[0].mxu0
        %v831 = vadd.f32 %v678, %v830
        %v832 = vpop.f32.mrb[0].mxu0
        %833 = vdwg.mxu0
        %v834 = vld [vmem:[#allocation2 + $0x8] sm:$0xff]
        %v835 = vld [vmem:[#allocation2 + $0x10] sm:$0xff]
        %v836 = vld [vmem:[#allocation2 + $0x18] sm:$0xff]
        %v837 = vld [vmem:[#allocation2 + $0x20] sm:$0xff]
        %v838 = vld [vmem:[#allocation2 + $0x28] sm:$0xff]
        %v839 = vld [vmem:[#allocation2 + $0x30] sm:$0xff]
        %v840 = vld [vmem:[#allocation2 + $0x38] sm:$0xff]
        %v841 = vld [vmem:[#allocation2 + $0x40] sm:$0xff]
        %v842 = vld [vmem:[#allocation2 + $0x48] sm:$0xff]
        %v843 = vld [vmem:[#allocation2 + $0x50] sm:$0xff]
        %v844 = vld [vmem:[#allocation2 + $0x58] sm:$0xff]
        %v845 = vld [vmem:[#allocation2 + $0x60] sm:$0xff]
        %v846 = vld [vmem:[#allocation2 + $0x68] sm:$0xff]
        %v847 = vld [vmem:[#allocation2 + $0x70] sm:$0xff]
        %v848 = vld [vmem:[#allocation2 + $0x78] sm:$0xff]
        %v849 = vld [vmem:[#allocation2 + $0x80] sm:$0xff]
        %v850 = vld [vmem:[#allocation2 + $0x88] sm:$0xff]
        %v851 = vld [vmem:[#allocation2 + $0x90] sm:$0xff]
        %v852 = vpack.c.bf16 %v835, %v834
        %v853 = vpack.c.bf16 %v837, %v836
        %v854 = vpack.c.bf16 %v839, %v838
        %v855 = vpack.c.bf16 %v841, %v840
        %v856 = vpack.c.bf16 %v843, %v842
        %v857 = vpack.c.bf16 %v845, %v844
        %v858 = vpack.c.bf16 %v847, %v846
        %v859 = vpack.c.bf16 %v849, %v848
        %v860 = vpack.c.bf16 %v851, %v850
        %s861 = scalar_lea.vmem %s261, 128 [#allocation4]
        %v862 = vld [vmem:[%s861] sm:$0xf]
        %v863 = vld [vmem:[%s861 + $0x4] sm:$0xf]
        %v864 = vld [vmem:[%s861 + $0x8] sm:$0xf]
        %v865 = vld [vmem:[%s861 + $0xc] sm:$0xf]
        %v866 = vld [vmem:[%s861 + $0x10] sm:$0xf]
        %v867 = vld [vmem:[%s861 + $0x14] sm:$0xf]
        %v868 = vld [vmem:[%s861 + $0x18] sm:$0xf]
        %v869 = vld [vmem:[%s861 + $0x1c] sm:$0xf]
        %v870 = vld [vmem:[%s861 + $0x20] sm:$0xf]
        %v871 = vld [vmem:[%s861 + $0x24] sm:$0xf]
        %v872 = vld [vmem:[%s861 + $0x28] sm:$0xf]
        %v873 = vld [vmem:[%s861 + $0x2c] sm:$0xf]
        %v874 = vld [vmem:[%s861 + $0x30] sm:$0xf]
        %v875 = vld [vmem:[%s861 + $0x34] sm:$0xf]
        %v876 = vld [vmem:[%s861 + $0x38] sm:$0xf]
        %v877 = vld [vmem:[%s861 + $0x3c] sm:$0xf]
        %v894 = vunpack.c.l.b16 %v862
        %v895 = vunpack.c.l.b16 %v863
        %v896 = vunpack.c.l.b16 %v864
        %v897 = vunpack.c.l.b16 %v865
        %v898 = vunpack.c.l.b16 %v866
        %v899 = vunpack.c.l.b16 %v867
        %v900 = vunpack.c.l.b16 %v868
        %v901 = vunpack.c.l.b16 %v869
        %v902 = vunpack.c.l.b16 %v870
        %v903 = vunpack.c.l.b16 %v871
        %v904 = vunpack.c.l.b16 %v872
        %v905 = vunpack.c.l.b16 %v873
        %v906 = vunpack.c.l.b16 %v874
        %v907 = vunpack.c.l.b16 %v875
        %v908 = vunpack.c.l.b16 %v876
        %v909 = vunpack.c.l.b16 %v877
        %v910 = vpack.c.b16 %v895, %v894
        %v911 = vpack.c.b16 %v897, %v896
        %v912 = vpack.c.b16 %v899, %v898
        %v913 = vpack.c.b16 %v901, %v900
        %v914 = vpack.c.b16 %v903, %v902
        %v915 = vpack.c.b16 %v905, %v904
        %v916 = vpack.c.b16 %v907, %v906
        %v917 = vpack.c.b16 %v909, %v908
        %926 = vmatprep.subr.bf16.mxu0 0
        %927 = vmatpush1.bf16.msra.mxu0 %v910
        %928 = vmatprep.subr.bf16.mxu0 0
        %929 = vmatpush1.bf16.msra.mxu0 %v911
        %930 = vmatprep.subr.bf16.mxu0 0
        %931 = vmatpush1.bf16.msra.mxu0 %v912
        %932 = vmatprep.subr.bf16.mxu0 0
        %933 = vmatpush1.bf16.msra.mxu0 %v913
        %934 = vmatprep.subr.bf16.mxu0 0
        %935 = vmatpush1.bf16.msra.mxu0 %v914
        %936 = vmatprep.subr.bf16.mxu0 0
        %937 = vmatpush1.bf16.msra.mxu0 %v915
        %938 = vmatprep.subr.bf16.mxu0 0
        %939 = vmatpush1.bf16.msra.mxu0 %v916
        %940 = vmatprep.subr.bf16.mxu0 0
        %941 = vmatpush1.bf16.msra.mxu0 %v917
        %942 = vmatprep.subr.bf16.mxu0 0
        %943 = vmatpush1.bf16.msra.mxu0 0
        %944 = vmatprep.subr.bf16.mxu0 0
        %945 = vmatpush1.bf16.msra.mxu0 0
        %946 = vmatprep.subr.bf16.mxu0 0
        %947 = vmatpush1.bf16.msra.mxu0 0
        %948 = vmatprep.subr.bf16.mxu0 0
        %949 = vmatpush1.bf16.msra.mxu0 0
        %950 = vmatprep.subr.bf16.mxu0 0
        %951 = vmatpush1.bf16.msra.mxu0 0
        %952 = vmatprep.subr.bf16.mxu0 0
        %953 = vmatpush1.bf16.msra.mxu0 0
        %954 = vmatprep.subr.bf16.mxu0 0
        %955 = vmatpush1.bf16.msra.mxu0 0
        %956 = vmatprep.subr.bf16.mxu0 0
        %957 = vmatpush1.bf16.msra.mxu0 0
        %958 = vmatprep.mubr.bf16.mxu0 0
        %959 = vmatmul.mubr.bf16.gmra.mrb[0].mxu0 %v852
        %v960 = vpop.f32.mrb[0].mxu0
        %v961 = vadd.f32 0.0, %v960
        %v962 = vpop.f32.mrb[0].mxu0
        %v963 = vpop.f32.mrb[0].mxu0
        %v964 = vadd.f32 0.0, %v963
        %v965 = vpop.f32.mrb[0].mxu0
        %966 = vmatprep.mubr.bf16.mxu0 0
        %967 = vmatmul.mubr.bf16.gmra.mrb[0].mxu0 %v853
        %v968 = vpop.f32.mrb[0].mxu0
        %v969 = vadd.f32 0.0, %v968
        %v970 = vpop.f32.mrb[0].mxu0
        %v971 = vpop.f32.mrb[0].mxu0
        %v972 = vadd.f32 0.0, %v971
        %v973 = vpop.f32.mrb[0].mxu0
        %974 = vmatprep.mubr.bf16.mxu0 0
        %975 = vmatmul.mubr.bf16.gmra.mrb[0].mxu0 %v854
        %v976 = vpop.f32.mrb[0].mxu0
        %v977 = vadd.f32 0.0, %v976
        %v978 = vpop.f32.mrb[0].mxu0
        %v979 = vpop.f32.mrb[0].mxu0
        %v980 = vadd.f32 0.0, %v979
        %v981 = vpop.f32.mrb[0].mxu0
        %982 = vmatprep.mubr.bf16.mxu0 0
        %983 = vmatmul.mubr.bf16.gmra.mrb[0].mxu0 %v855
        %v984 = vpop.f32.mrb[0].mxu0
        %v985 = vadd.f32 0.0, %v984
        %v986 = vpop.f32.mrb[0].mxu0
        %v987 = vpop.f32.mrb[0].mxu0
        %v988 = vadd.f32 0.0, %v987
        %v989 = vpop.f32.mrb[0].mxu0
        %990 = vmatprep.mubr.bf16.mxu0 0
        %991 = vmatmul.mubr.bf16.gmra.mrb[0].mxu0 %v856
        %v992 = vpop.f32.mrb[0].mxu0
        %v993 = vadd.f32 0.0, %v992
        %v994 = vpop.f32.mrb[0].mxu0
        %v995 = vpop.f32.mrb[0].mxu0
        %v996 = vadd.f32 0.0, %v995
        %v997 = vpop.f32.mrb[0].mxu0
        %998 = vmatprep.mubr.bf16.mxu0 0
        %999 = vmatmul.mubr.bf16.gmra.mrb[0].mxu0 %v857
        %v1000 = vpop.f32.mrb[0].mxu0
        %v1001 = vadd.f32 0.0, %v1000
        %v1002 = vpop.f32.mrb[0].mxu0
        %v1003 = vpop.f32.mrb[0].mxu0
        %v1004 = vadd.f32 0.0, %v1003
        %v1005 = vpop.f32.mrb[0].mxu0
        %1006 = vmatprep.mubr.bf16.mxu0 0
        %1007 = vmatmul.mubr.bf16.gmra.mrb[0].mxu0 %v858
        %v1008 = vpop.f32.mrb[0].mxu0
        %v1009 = vadd.f32 0.0, %v1008
        %v1010 = vpop.f32.mrb[0].mxu0
        %v1011 = vpop.f32.mrb[0].mxu0
        %v1012 = vadd.f32 0.0, %v1011
        %v1013 = vpop.f32.mrb[0].mxu0
        %1014 = vmatprep.mubr.bf16.mxu0 0
        %1015 = vmatmul.mubr.bf16.gmra.mrb[0].mxu0 %v859
        %v1016 = vpop.f32.mrb[0].mxu0
        %v1017 = vadd.f32 0.0, %v1016
        %v1018 = vpop.f32.mrb[0].mxu0
        %v1019 = vpop.f32.mrb[0].mxu0
        %v1020 = vadd.f32 0.0, %v1019
        %v1021 = vpop.f32.mrb[0].mxu0
        %1022 = vmatprep.mubr.bf16.mxu0 0
        %1023 = vmatmul.mubr.bf16.gmra.mrb[0].mxu0 %v860
        %v1024 = vpop.f32.mrb[0].mxu0
        %v1025 = vadd.f32 0.0, %v1024
        %v1026 = vpop.f32.mrb[0].mxu0
        %v1027 = vpop.f32.mrb[0].mxu0
        %v1028 = vadd.f32 0.0, %v1027
        %v1029 = vpop.f32.mrb[0].mxu0
        %1030 = vdwg.mxu0
        %v1031 = vadd.f32 %v764, %v961
        %v1032 = vadd.f32 %v767, %v964
        %v1033 = vadd.f32 %v772, %v969
        %v1034 = vadd.f32 %v775, %v972
        %v1035 = vadd.f32 %v780, %v977
        %v1036 = vadd.f32 %v783, %v980
        %v1037 = vadd.f32 %v788, %v985
        %v1038 = vadd.f32 %v791, %v988
        %v1039 = vadd.f32 %v796, %v993
        %v1040 = vadd.f32 %v799, %v996
        %v1041 = vadd.f32 %v804, %v1001
        %v1042 = vadd.f32 %v807, %v1004
        %v1043 = vadd.f32 %v812, %v1009
        %v1044 = vadd.f32 %v815, %v1012
        %v1045 = vadd.f32 %v820, %v1017
        %v1046 = vadd.f32 %v823, %v1020
        %v1047 = vadd.f32 %v828, %v1025
        %v1048 = vadd.f32 %v831, %v1028
        %v1049 = vld [vmem:[#allocation2 + $0xf] sm:$0xff]
        %v1050 = vld [vmem:[#allocation2 + $0x17] sm:$0xff]
        %v1051 = vld [vmem:[#allocation2 + $0x1f] sm:$0xff]
        %v1052 = vld [vmem:[#allocation2 + $0x27] sm:$0xff]
        %v1053 = vld [vmem:[#allocation2 + $0x2f] sm:$0xff]
        %v1054 = vld [vmem:[#allocation2 + $0x37] sm:$0xff]
        %v1055 = vld [vmem:[#allocation2 + $0x3f] sm:$0xff]
        %v1056 = vld [vmem:[#allocation2 + $0x47] sm:$0xff]
        %v1057 = vld [vmem:[#allocation2 + $0x4f] sm:$0xff]
        %v1058 = vld [vmem:[#allocation2 + $0x57] sm:$0xff]
        %v1059 = vld [vmem:[#allocation2 + $0x5f] sm:$0xff]
        %v1060 = vld [vmem:[#allocation2 + $0x67] sm:$0xff]
        %v1061 = vld [vmem:[#allocation2 + $0x6f] sm:$0xff]
        %v1062 = vld [vmem:[#allocation2 + $0x77] sm:$0xff]
        %v1063 = vld [vmem:[#allocation2 + $0x7f] sm:$0xff]
        %v1064 = vld [vmem:[#allocation2 + $0x87] sm:$0xff]
        %v1065 = vld [vmem:[#allocation2 + $0x8f] sm:$0xff]
        %v1066 = vld [vmem:[#allocation2 + $0x97] sm:$0xff]
        %v1067 = vpack.c.bf16 %v1050, %v1049
        %v1068 = vpack.c.bf16 %v1052, %v1051
        %v1069 = vpack.c.bf16 %v1054, %v1053
        %v1070 = vpack.c.bf16 %v1056, %v1055
        %v1071 = vpack.c.bf16 %v1058, %v1057
        %v1072 = vpack.c.bf16 %v1060, %v1059
        %v1073 = vpack.c.bf16 %v1062, %v1061
        %v1074 = vpack.c.bf16 %v1064, %v1063
        %v1075 = vpack.c.bf16 %v1066, %v1065
        %s1076 = scalar_lea.vmem %s261, 192 [#allocation4]
        %v1077 = vld [vmem:[%s1076] sm:$0xf]
        %v1078 = vld [vmem:[%s1076 + $0x4] sm:$0xf]
        %v1079 = vld [vmem:[%s1076 + $0x8] sm:$0xf]
        %v1080 = vld [vmem:[%s1076 + $0xc] sm:$0xf]
        %v1081 = vld [vmem:[%s1076 + $0x10] sm:$0xf]
        %v1082 = vld [vmem:[%s1076 + $0x14] sm:$0xf]
        %v1083 = vld [vmem:[%s1076 + $0x18] sm:$0xf]
        %v1084 = vld [vmem:[%s1076 + $0x1c] sm:$0xf]
        %v1085 = vld [vmem:[%s1076 + $0x20] sm:$0xf]
        %v1086 = vld [vmem:[%s1076 + $0x24] sm:$0xf]
        %v1087 = vld [vmem:[%s1076 + $0x28] sm:$0xf]
        %v1088 = vld [vmem:[%s1076 + $0x2c] sm:$0xf]
        %v1089 = vld [vmem:[%s1076 + $0x30] sm:$0xf]
        %v1090 = vld [vmem:[%s1076 + $0x34] sm:$0xf]
        %v1091 = vld [vmem:[%s1076 + $0x38] sm:$0xf]
        %v1092 = vld [vmem:[%s1076 + $0x3c] sm:$0xf]
        %v1109 = vunpack.c.l.b16 %v1077
        %v1110 = vunpack.c.l.b16 %v1078
        %v1111 = vunpack.c.l.b16 %v1079
        %v1112 = vunpack.c.l.b16 %v1080
        %v1113 = vunpack.c.l.b16 %v1081
        %v1114 = vunpack.c.l.b16 %v1082
        %v1115 = vunpack.c.l.b16 %v1083
        %v1116 = vunpack.c.l.b16 %v1084
        %v1117 = vunpack.c.l.b16 %v1085
        %v1118 = vunpack.c.l.b16 %v1086
        %v1119 = vunpack.c.l.b16 %v1087
        %v1120 = vunpack.c.l.b16 %v1088
        %v1121 = vunpack.c.l.b16 %v1089
        %v1122 = vunpack.c.l.b16 %v1090
        %v1123 = vunpack.c.l.b16 %v1091
        %v1124 = vunpack.c.l.b16 %v1092
        %v1125 = vpack.c.b16 %v1110, %v1109
        %v1126 = vpack.c.b16 %v1112, %v1111
        %v1127 = vpack.c.b16 %v1114, %v1113
        %v1128 = vpack.c.b16 %v1116, %v1115
        %v1129 = vpack.c.b16 %v1118, %v1117
        %v1130 = vpack.c.b16 %v1120, %v1119
        %v1131 = vpack.c.b16 %v1122, %v1121
        %v1132 = vpack.c.b16 %v1124, %v1123
        %1141 = vmatprep.subr.bf16.mxu0 0
        %1142 = vmatpush1.bf16.msra.mxu0 %v1125
        %1143 = vmatprep.subr.bf16.mxu0 0
        %1144 = vmatpush1.bf16.msra.mxu0 %v1126
        %1145 = vmatprep.subr.bf16.mxu0 0
        %1146 = vmatpush1.bf16.msra.mxu0 %v1127
        %1147 = vmatprep.subr.bf16.mxu0 0
        %1148 = vmatpush1.bf16.msra.mxu0 %v1128
        %1149 = vmatprep.subr.bf16.mxu0 0
        %1150 = vmatpush1.bf16.msra.mxu0 %v1129
        %1151 = vmatprep.subr.bf16.mxu0 0
        %1152 = vmatpush1.bf16.msra.mxu0 %v1130
        %1153 = vmatprep.subr.bf16.mxu0 0
        %1154 = vmatpush1.bf16.msra.mxu0 %v1131
        %1155 = vmatprep.subr.bf16.mxu0 0
        %1156 = vmatpush1.bf16.msra.mxu0 %v1132
        %1157 = vmatprep.subr.bf16.mxu0 0
        %1158 = vmatpush1.bf16.msra.mxu0 0
        %1159 = vmatprep.subr.bf16.mxu0 0
        %1160 = vmatpush1.bf16.msra.mxu0 0
        %1161 = vmatprep.subr.bf16.mxu0 0
        %1162 = vmatpush1.bf16.msra.mxu0 0
        %1163 = vmatprep.subr.bf16.mxu0 0
        %1164 = vmatpush1.bf16.msra.mxu0 0
        %1165 = vmatprep.subr.bf16.mxu0 0
        %1166 = vmatpush1.bf16.msra.mxu0 0
        %1167 = vmatprep.subr.bf16.mxu0 0
        %1168 = vmatpush1.bf16.msra.mxu0 0
        %1169 = vmatprep.subr.bf16.mxu0 0
        %1170 = vmatpush1.bf16.msra.mxu0 0
        %1171 = vmatprep.subr.bf16.mxu0 0
        %1172 = vmatpush1.bf16.msra.mxu0 0
        %1173 = vmatprep.mubr.bf16.mxu0 0
        %1174 = vmatmul.mubr.bf16.gmra.mrb[0].mxu0 %v1067
        %v1175 = vpop.f32.mrb[0].mxu0
        %v1176 = vadd.f32 0.0, %v1175
        %v1177 = vpop.f32.mrb[0].mxu0
        %v1178 = vpop.f32.mrb[0].mxu0
        %v1179 = vadd.f32 0.0, %v1178
        %v1180 = vpop.f32.mrb[0].mxu0
        %1181 = vmatprep.mubr.bf16.mxu0 0
        %1182 = vmatmul.mubr.bf16.gmra.mrb[0].mxu0 %v1068
        %v1183 = vpop.f32.mrb[0].mxu0
        %v1184 = vadd.f32 0.0, %v1183
        %v1185 = vpop.f32.mrb[0].mxu0
        %v1186 = vpop.f32.mrb[0].mxu0
        %v1187 = vadd.f32 0.0, %v1186
        %v1188 = vpop.f32.mrb[0].mxu0
        %1189 = vmatprep.mubr.bf16.mxu0 0
        %1190 = vmatmul.mubr.bf16.gmra.mrb[0].mxu0 %v1069
        %v1191 = vpop.f32.mrb[0].mxu0
        %v1192 = vadd.f32 0.0, %v1191
        %v1193 = vpop.f32.mrb[0].mxu0
        %v1194 = vpop.f32.mrb[0].mxu0
        %v1195 = vadd.f32 0.0, %v1194
        %v1196 = vpop.f32.mrb[0].mxu0
        %1197 = vmatprep.mubr.bf16.mxu0 0
        %1198 = vmatmul.mubr.bf16.gmra.mrb[0].mxu0 %v1070
        %v1199 = vpop.f32.mrb[0].mxu0
        %v1200 = vadd.f32 0.0, %v1199
        %v1201 = vpop.f32.mrb[0].mxu0
        %v1202 = vpop.f32.mrb[0].mxu0
        %v1203 = vadd.f32 0.0, %v1202
        %v1204 = vpop.f32.mrb[0].mxu0
        %1205 = vmatprep.mubr.bf16.mxu0 0
        %1206 = vmatmul.mubr.bf16.gmra.mrb[0].mxu0 %v1071
        %v1207 = vpop.f32.mrb[0].mxu0
        %v1208 = vadd.f32 0.0, %v1207
        %v1209 = vpop.f32.mrb[0].mxu0
        %v1210 = vpop.f32.mrb[0].mxu0
        %v1211 = vadd.f32 0.0, %v1210
        %v1212 = vpop.f32.mrb[0].mxu0
        %1213 = vmatprep.mubr.bf16.mxu0 0
        %1214 = vmatmul.mubr.bf16.gmra.mrb[0].mxu0 %v1072
        %v1215 = vpop.f32.mrb[0].mxu0
        %v1216 = vadd.f32 0.0, %v1215
        %v1217 = vpop.f32.mrb[0].mxu0
        %v1218 = vpop.f32.mrb[0].mxu0
        %v1219 = vadd.f32 0.0, %v1218
        %v1220 = vpop.f32.mrb[0].mxu0
        %1221 = vmatprep.mubr.bf16.mxu0 0
        %1222 = vmatmul.mubr.bf16.gmra.mrb[0].mxu0 %v1073
        %v1223 = vpop.f32.mrb[0].mxu0
        %v1224 = vadd.f32 0.0, %v1223
        %v1225 = vpop.f32.mrb[0].mxu0
        %v1226 = vpop.f32.mrb[0].mxu0
        %v1227 = vadd.f32 0.0, %v1226
        %v1228 = vpop.f32.mrb[0].mxu0
        %1229 = vmatprep.mubr.bf16.mxu0 0
        %1230 = vmatmul.mubr.bf16.gmra.mrb[0].mxu0 %v1074
        %v1231 = vpop.f32.mrb[0].mxu0
        %v1232 = vadd.f32 0.0, %v1231
        %v1233 = vpop.f32.mrb[0].mxu0
        %v1234 = vpop.f32.mrb[0].mxu0
        %v1235 = vadd.f32 0.0, %v1234
        %v1236 = vpop.f32.mrb[0].mxu0
        %1237 = vmatprep.mubr.bf16.mxu0 0
        %1238 = vmatmul.mubr.bf16.gmra.mrb[0].mxu0 %v1075
        %v1239 = vpop.f32.mrb[0].mxu0
        %v1240 = vadd.f32 0.0, %v1239
        %v1241 = vpop.f32.mrb[0].mxu0
        %v1242 = vpop.f32.mrb[0].mxu0
        %v1243 = vadd.f32 0.0, %v1242
        %v1244 = vpop.f32.mrb[0].mxu0
        %1245 = vdwg.mxu0
        %v1246 = vadd.f32 %v1031, %v1176
        %v1247 = vadd.f32 %v1032, %v1179
        %v1248 = vadd.f32 %v1033, %v1184
        %v1249 = vadd.f32 %v1034, %v1187
        %v1250 = vadd.f32 %v1035, %v1192
        %v1251 = vadd.f32 %v1036, %v1195
        %v1252 = vadd.f32 %v1037, %v1200
        %v1253 = vadd.f32 %v1038, %v1203
        %v1254 = vadd.f32 %v1039, %v1208
        %v1255 = vadd.f32 %v1040, %v1211
        %v1256 = vadd.f32 %v1041, %v1216
        %v1257 = vadd.f32 %v1042, %v1219
        %v1258 = vadd.f32 %v1043, %v1224
        %v1259 = vadd.f32 %v1044, %v1227
        %v1260 = vadd.f32 %v1045, %v1232
        %v1261 = vadd.f32 %v1046, %v1235
        %v1262 = vadd.f32 %v1047, %v1240
        %v1263 = vadd.f32 %v1048, %v1243
        %v1264 = vld [vmem:[#allocation2 + $0x10] sm:$0xff]
        %v1265 = vld [vmem:[#allocation2 + $0x18] sm:$0xff]
        %v1266 = vld [vmem:[#allocation2 + $0x20] sm:$0xff]
        %v1267 = vld [vmem:[#allocation2 + $0x28] sm:$0xff]
        %v1268 = vld [vmem:[#allocation2 + $0x30] sm:$0xff]
        %v1269 = vld [vmem:[#allocation2 + $0x38] sm:$0xff]
        %v1270 = vld [vmem:[#allocation2 + $0x40] sm:$0xff]
        %v1271 = vld [vmem:[#allocation2 + $0x48] sm:$0xff]
        %v1272 = vld [vmem:[#allocation2 + $0x50] sm:$0xff]
        %v1273 = vld [vmem:[#allocation2 + $0x58] sm:$0xff]
        %v1274 = vld [vmem:[#allocation2 + $0x60] sm:$0xff]
        %v1275 = vld [vmem:[#allocation2 + $0x68] sm:$0xff]
        %v1276 = vld [vmem:[#allocation2 + $0x70] sm:$0xff]
        %v1277 = vld [vmem:[#allocation2 + $0x78] sm:$0xff]
        %v1278 = vld [vmem:[#allocation2 + $0x80] sm:$0xff]
        %v1279 = vld [vmem:[#allocation2 + $0x88] sm:$0xff]
        %v1280 = vld [vmem:[#allocation2 + $0x90] sm:$0xff]
        %v1281 = vld [vmem:[#allocation2 + $0x98] sm:$0xff]
        %v1282 = vpack.c.bf16 %v1265, %v1264
        %v1283 = vpack.c.bf16 %v1267, %v1266
        %v1284 = vpack.c.bf16 %v1269, %v1268
        %v1285 = vpack.c.bf16 %v1271, %v1270
        %v1286 = vpack.c.bf16 %v1273, %v1272
        %v1287 = vpack.c.bf16 %v1275, %v1274
        %v1288 = vpack.c.bf16 %v1277, %v1276
        %v1289 = vpack.c.bf16 %v1279, %v1278
        %v1290 = vpack.c.bf16 %v1281, %v1280
        %s1291 = scalar_lea.vmem %s261, 256 [#allocation4]
        %v1292 = vld [vmem:[%s1291] sm:$0xf]
        %v1293 = vld [vmem:[%s1291 + $0x4] sm:$0xf]
        %v1294 = vld [vmem:[%s1291 + $0x8] sm:$0xf]
        %v1295 = vld [vmem:[%s1291 + $0xc] sm:$0xf]
        %v1296 = vld [vmem:[%s1291 + $0x10] sm:$0xf]
        %v1297 = vld [vmem:[%s1291 + $0x14] sm:$0xf]
        %v1298 = vld [vmem:[%s1291 + $0x18] sm:$0xf]
        %v1299 = vld [vmem:[%s1291 + $0x1c] sm:$0xf]
        %v1300 = vld [vmem:[%s1291 + $0x20] sm:$0xf]
        %v1301 = vld [vmem:[%s1291 + $0x24] sm:$0xf]
        %v1302 = vld [vmem:[%s1291 + $0x28] sm:$0xf]
        %v1303 = vld [vmem:[%s1291 + $0x2c] sm:$0xf]
        %v1304 = vld [vmem:[%s1291 + $0x30] sm:$0xf]
        %v1305 = vld [vmem:[%s1291 + $0x34] sm:$0xf]
        %v1306 = vld [vmem:[%s1291 + $0x38] sm:$0xf]
        %v1307 = vld [vmem:[%s1291 + $0x3c] sm:$0xf]
        %v1324 = vunpack.c.l.b16 %v1292
        %v1325 = vunpack.c.l.b16 %v1293
        %v1326 = vunpack.c.l.b16 %v1294
        %v1327 = vunpack.c.l.b16 %v1295
        %v1328 = vunpack.c.l.b16 %v1296
        %v1329 = vunpack.c.l.b16 %v1297
        %v1330 = vunpack.c.l.b16 %v1298
        %v1331 = vunpack.c.l.b16 %v1299
        %v1332 = vunpack.c.l.b16 %v1300
        %v1333 = vunpack.c.l.b16 %v1301
        %v1334 = vunpack.c.l.b16 %v1302
        %v1335 = vunpack.c.l.b16 %v1303
        %v1336 = vunpack.c.l.b16 %v1304
        %v1337 = vunpack.c.l.b16 %v1305
        %v1338 = vunpack.c.l.b16 %v1306
        %v1339 = vunpack.c.l.b16 %v1307
        %v1340 = vpack.c.b16 %v1325, %v1324
        %v1341 = vpack.c.b16 %v1327, %v1326
        %v1342 = vpack.c.b16 %v1329, %v1328
        %v1343 = vpack.c.b16 %v1331, %v1330
        %v1344 = vpack.c.b16 %v1333, %v1332
        %v1345 = vpack.c.b16 %v1335, %v1334
        %v1346 = vpack.c.b16 %v1337, %v1336
        %v1347 = vpack.c.b16 %v1339, %v1338
        %1356 = vmatprep.subr.bf16.mxu0 0
        %1357 = vmatpush1.bf16.msra.mxu0 %v1340
        %1358 = vmatprep.subr.bf16.mxu0 0
        %1359 = vmatpush1.bf16.msra.mxu0 %v1341
        %1360 = vmatprep.subr.bf16.mxu0 0
        %1361 = vmatpush1.bf16.msra.mxu0 %v1342
        %1362 = vmatprep.subr.bf16.mxu0 0
        %1363 = vmatpush1.bf16.msra.mxu0 %v1343
        %1364 = vmatprep.subr.bf16.mxu0 0
        %1365 = vmatpush1.bf16.msra.mxu0 %v1344
        %1366 = vmatprep.subr.bf16.mxu0 0
        %1367 = vmatpush1.bf16.msra.mxu0 %v1345
        %1368 = vmatprep.subr.bf16.mxu0 0
        %1369 = vmatpush1.bf16.msra.mxu0 %v1346
        %1370 = vmatprep.subr.bf16.mxu0 0
        %1371 = vmatpush1.bf16.msra.mxu0 %v1347
        %1372 = vmatprep.subr.bf16.mxu0 0
        %1373 = vmatpush1.bf16.msra.mxu0 0
        %1374 = vmatprep.subr.bf16.mxu0 0
        %1375 = vmatpush1.bf16.msra.mxu0 0
        %1376 = vmatprep.subr.bf16.mxu0 0
        %1377 = vmatpush1.bf16.msra.mxu0 0
        %1378 = vmatprep.subr.bf16.mxu0 0
        %1379 = vmatpush1.bf16.msra.mxu0 0
        %1380 = vmatprep.subr.bf16.mxu0 0
        %1381 = vmatpush1.bf16.msra.mxu0 0
        %1382 = vmatprep.subr.bf16.mxu0 0
        %1383 = vmatpush1.bf16.msra.mxu0 0
        %1384 = vmatprep.subr.bf16.mxu0 0
        %1385 = vmatpush1.bf16.msra.mxu0 0
        %1386 = vmatprep.subr.bf16.mxu0 0
        %1387 = vmatpush1.bf16.msra.mxu0 0
        %1388 = vmatprep.mubr.bf16.mxu0 0
        %1389 = vmatmul.mubr.bf16.gmra.mrb[0].mxu0 %v1282
        %v1390 = vpop.f32.mrb[0].mxu0
        %v1391 = vadd.f32 0.0, %v1390
        %v1392 = vpop.f32.mrb[0].mxu0
        %v1393 = vpop.f32.mrb[0].mxu0
        %v1394 = vadd.f32 0.0, %v1393
        %v1395 = vpop.f32.mrb[0].mxu0
        %1396 = vmatprep.mubr.bf16.mxu0 0
        %1397 = vmatmul.mubr.bf16.gmra.mrb[0].mxu0 %v1283
        %v1398 = vpop.f32.mrb[0].mxu0
        %v1399 = vadd.f32 0.0, %v1398
        %v1400 = vpop.f32.mrb[0].mxu0
        %v1401 = vpop.f32.mrb[0].mxu0
        %v1402 = vadd.f32 0.0, %v1401
        %v1403 = vpop.f32.mrb[0].mxu0
        %1404 = vmatprep.mubr.bf16.mxu0 0
        %1405 = vmatmul.mubr.bf16.gmra.mrb[0].mxu0 %v1284
        %v1406 = vpop.f32.mrb[0].mxu0
        %v1407 = vadd.f32 0.0, %v1406
        %v1408 = vpop.f32.mrb[0].mxu0
        %v1409 = vpop.f32.mrb[0].mxu0
        %v1410 = vadd.f32 0.0, %v1409
        %v1411 = vpop.f32.mrb[0].mxu0
        %1412 = vmatprep.mubr.bf16.mxu0 0
        %1413 = vmatmul.mubr.bf16.gmra.mrb[0].mxu0 %v1285
        %v1414 = vpop.f32.mrb[0].mxu0
        %v1415 = vadd.f32 0.0, %v1414
        %v1416 = vpop.f32.mrb[0].mxu0
        %v1417 = vpop.f32.mrb[0].mxu0
        %v1418 = vadd.f32 0.0, %v1417
        %v1419 = vpop.f32.mrb[0].mxu0
        %1420 = vmatprep.mubr.bf16.mxu0 0
        %1421 = vmatmul.mubr.bf16.gmra.mrb[0].mxu0 %v1286
        %v1422 = vpop.f32.mrb[0].mxu0
        %v1423 = vadd.f32 0.0, %v1422
        %v1424 = vpop.f32.mrb[0].mxu0
        %v1425 = vpop.f32.mrb[0].mxu0
        %v1426 = vadd.f32 0.0, %v1425
        %v1427 = vpop.f32.mrb[0].mxu0
        %1428 = vmatprep.mubr.bf16.mxu0 0
        %1429 = vmatmul.mubr.bf16.gmra.mrb[0].mxu0 %v1287
        %v1430 = vpop.f32.mrb[0].mxu0
        %v1431 = vadd.f32 0.0, %v1430
        %v1432 = vpop.f32.mrb[0].mxu0
        %v1433 = vpop.f32.mrb[0].mxu0
        %v1434 = vadd.f32 0.0, %v1433
        %v1435 = vpop.f32.mrb[0].mxu0
        %1436 = vmatprep.mubr.bf16.mxu0 0
        %1437 = vmatmul.mubr.bf16.gmra.mrb[0].mxu0 %v1288
        %v1438 = vpop.f32.mrb[0].mxu0
        %v1439 = vadd.f32 0.0, %v1438
        %v1440 = vpop.f32.mrb[0].mxu0
        %v1441 = vpop.f32.mrb[0].mxu0
        %v1442 = vadd.f32 0.0, %v1441
        %v1443 = vpop.f32.mrb[0].mxu0
        %1444 = vmatprep.mubr.bf16.mxu0 0
        %1445 = vmatmul.mubr.bf16.gmra.mrb[0].mxu0 %v1289
        %v1446 = vpop.f32.mrb[0].mxu0
        %v1447 = vadd.f32 0.0, %v1446
        %v1448 = vpop.f32.mrb[0].mxu0
        %v1449 = vpop.f32.mrb[0].mxu0
        %v1450 = vadd.f32 0.0, %v1449
        %v1451 = vpop.f32.mrb[0].mxu0
        %1452 = vmatprep.mubr.bf16.mxu0 0
        %1453 = vmatmul.mubr.bf16.gmra.mrb[0].mxu0 %v1290
        %v1454 = vpop.f32.mrb[0].mxu0
        %v1455 = vadd.f32 0.0, %v1454
        %v1456 = vpop.f32.mrb[0].mxu0
        %v1457 = vpop.f32.mrb[0].mxu0
        %v1458 = vadd.f32 0.0, %v1457
        %v1459 = vpop.f32.mrb[0].mxu0
        %1460 = vdwg.mxu0
        %v1461 = vadd.f32 %v1246, %v1391
        %v1462 = vadd.f32 %v1247, %v1394
        %v1463 = vadd.f32 %v1248, %v1399
        %v1464 = vadd.f32 %v1249, %v1402
        %v1465 = vadd.f32 %v1250, %v1407
        %v1466 = vadd.f32 %v1251, %v1410
        %v1467 = vadd.f32 %v1252, %v1415
        %v1468 = vadd.f32 %v1253, %v1418
        %v1469 = vadd.f32 %v1254, %v1423
        %v1470 = vadd.f32 %v1255, %v1426
        %v1471 = vadd.f32 %v1256, %v1431
        %v1472 = vadd.f32 %v1257, %v1434
        %v1473 = vadd.f32 %v1258, %v1439
        %v1474 = vadd.f32 %v1259, %v1442
        %v1475 = vadd.f32 %v1260, %v1447
        %v1476 = vadd.f32 %v1261, %v1450
        %v1477 = vadd.f32 %v1262, %v1455
        %v1478 = vadd.f32 %v1263, %v1458
        %v1479 = vld [vmem:[#allocation2 + $0x11] sm:$0xff]
        %v1480 = vld [vmem:[#allocation2 + $0x19] sm:$0xff]
        %v1481 = vld [vmem:[#allocation2 + $0x21] sm:$0xff]
        %v1482 = vld [vmem:[#allocation2 + $0x29] sm:$0xff]
        %v1483 = vld [vmem:[#allocation2 + $0x31] sm:$0xff]
        %v1484 = vld [vmem:[#allocation2 + $0x39] sm:$0xff]
        %v1485 = vld [vmem:[#allocation2 + $0x41] sm:$0xff]
        %v1486 = vld [vmem:[#allocation2 + $0x49] sm:$0xff]
        %v1487 = vld [vmem:[#allocation2 + $0x51] sm:$0xff]
        %v1488 = vld [vmem:[#allocation2 + $0x59] sm:$0xff]
        %v1489 = vld [vmem:[#allocation2 + $0x61] sm:$0xff]
        %v1490 = vld [vmem:[#allocation2 + $0x69] sm:$0xff]
        %v1491 = vld [vmem:[#allocation2 + $0x71] sm:$0xff]
        %v1492 = vld [vmem:[#allocation2 + $0x79] sm:$0xff]
        %v1493 = vld [vmem:[#allocation2 + $0x81] sm:$0xff]
        %v1494 = vld [vmem:[#allocation2 + $0x89] sm:$0xff]
        %v1495 = vld [vmem:[#allocation2 + $0x91] sm:$0xff]
        %v1496 = vld [vmem:[#allocation2 + $0x99] sm:$0xff]
        %v1497 = vpack.c.bf16 %v1480, %v1479
        %v1498 = vpack.c.bf16 %v1482, %v1481
        %v1499 = vpack.c.bf16 %v1484, %v1483
        %v1500 = vpack.c.bf16 %v1486, %v1485
        %v1501 = vpack.c.bf16 %v1488, %v1487
        %v1502 = vpack.c.bf16 %v1490, %v1489
        %v1503 = vpack.c.bf16 %v1492, %v1491
        %v1504 = vpack.c.bf16 %v1494, %v1493
        %v1505 = vpack.c.bf16 %v1496, %v1495
        %s1506 = scalar_lea.vmem %s261, 320 [#allocation4]
        %v1507 = vld [vmem:[%s1506] sm:$0xf]
        %v1508 = vld [vmem:[%s1506 + $0x4] sm:$0xf]
        %v1509 = vld [vmem:[%s1506 + $0x8] sm:$0xf]
        %v1510 = vld [vmem:[%s1506 + $0xc] sm:$0xf]
        %v1511 = vld [vmem:[%s1506 + $0x10] sm:$0xf]
        %v1512 = vld [vmem:[%s1506 + $0x14] sm:$0xf]
        %v1513 = vld [vmem:[%s1506 + $0x18] sm:$0xf]
        %v1514 = vld [vmem:[%s1506 + $0x1c] sm:$0xf]
        %v1515 = vld [vmem:[%s1506 + $0x20] sm:$0xf]
        %v1516 = vld [vmem:[%s1506 + $0x24] sm:$0xf]
        %v1517 = vld [vmem:[%s1506 + $0x28] sm:$0xf]
        %v1518 = vld [vmem:[%s1506 + $0x2c] sm:$0xf]
        %v1519 = vld [vmem:[%s1506 + $0x30] sm:$0xf]
        %v1520 = vld [vmem:[%s1506 + $0x34] sm:$0xf]
        %v1521 = vld [vmem:[%s1506 + $0x38] sm:$0xf]
        %v1522 = vld [vmem:[%s1506 + $0x3c] sm:$0xf]
        %v1539 = vunpack.c.l.b16 %v1507
        %v1540 = vunpack.c.l.b16 %v1508
        %v1541 = vunpack.c.l.b16 %v1509
        %v1542 = vunpack.c.l.b16 %v1510
        %v1543 = vunpack.c.l.b16 %v1511
        %v1544 = vunpack.c.l.b16 %v1512
        %v1545 = vunpack.c.l.b16 %v1513
        %v1546 = vunpack.c.l.b16 %v1514
        %v1547 = vunpack.c.l.b16 %v1515
        %v1548 = vunpack.c.l.b16 %v1516
        %v1549 = vunpack.c.l.b16 %v1517
        %v1550 = vunpack.c.l.b16 %v1518
        %v1551 = vunpack.c.l.b16 %v1519
        %v1552 = vunpack.c.l.b16 %v1520
        %v1553 = vunpack.c.l.b16 %v1521
        %v1554 = vunpack.c.l.b16 %v1522
        %v1555 = vpack.c.b16 %v1540, %v1539
        %v1556 = vpack.c.b16 %v1542, %v1541
        %v1557 = vpack.c.b16 %v1544, %v1543
        %v1558 = vpack.c.b16 %v1546, %v1545
        %v1559 = vpack.c.b16 %v1548, %v1547
        %v1560 = vpack.c.b16 %v1550, %v1549
        %v1561 = vpack.c.b16 %v1552, %v1551
        %v1562 = vpack.c.b16 %v1554, %v1553
        %1571 = vmatprep.subr.bf16.mxu0 0
        %1572 = vmatpush1.bf16.msra.mxu0 %v1555
        %1573 = vmatprep.subr.bf16.mxu0 0
        %1574 = vmatpush1.bf16.msra.mxu0 %v1556
        %1575 = vmatprep.subr.bf16.mxu0 0
        %1576 = vmatpush1.bf16.msra.mxu0 %v1557
        %1577 = vmatprep.subr.bf16.mxu0 0
        %1578 = vmatpush1.bf16.msra.mxu0 %v1558
        %1579 = vmatprep.subr.bf16.mxu0 0
        %1580 = vmatpush1.bf16.msra.mxu0 %v1559
        %1581 = vmatprep.subr.bf16.mxu0 0
        %1582 = vmatpush1.bf16.msra.mxu0 %v1560
        %1583 = vmatprep.subr.bf16.mxu0 0
        %1584 = vmatpush1.bf16.msra.mxu0 %v1561
        %1585 = vmatprep.subr.bf16.mxu0 0
        %1586 = vmatpush1.bf16.msra.mxu0 %v1562
        %1587 = vmatprep.subr.bf16.mxu0 0
        %1588 = vmatpush1.bf16.msra.mxu0 0
        %1589 = vmatprep.subr.bf16.mxu0 0
        %1590 = vmatpush1.bf16.msra.mxu0 0
        %1591 = vmatprep.subr.bf16.mxu0 0
        %1592 = vmatpush1.bf16.msra.mxu0 0
        %1593 = vmatprep.subr.bf16.mxu0 0
        %1594 = vmatpush1.bf16.msra.mxu0 0
        %1595 = vmatprep.subr.bf16.mxu0 0
        %1596 = vmatpush1.bf16.msra.mxu0 0
        %1597 = vmatprep.subr.bf16.mxu0 0
        %1598 = vmatpush1.bf16.msra.mxu0 0
        %1599 = vmatprep.subr.bf16.mxu0 0
        %1600 = vmatpush1.bf16.msra.mxu0 0
        %1601 = vmatprep.subr.bf16.mxu0 0
        %1602 = vmatpush1.bf16.msra.mxu0 0
        %1603 = vmatprep.mubr.bf16.mxu0 0
        %1604 = vmatmul.mubr.bf16.gmra.mrb[0].mxu0 %v1497
        %v1605 = vpop.f32.mrb[0].mxu0
        %v1606 = vadd.f32 0.0, %v1605
        %v1607 = vpop.f32.mrb[0].mxu0
        %v1608 = vpop.f32.mrb[0].mxu0
        %v1609 = vadd.f32 0.0, %v1608
        %v1610 = vpop.f32.mrb[0].mxu0
        %1611 = vmatprep.mubr.bf16.mxu0 0
        %1612 = vmatmul.mubr.bf16.gmra.mrb[0].mxu0 %v1498
        %v1613 = vpop.f32.mrb[0].mxu0
        %v1614 = vadd.f32 0.0, %v1613
        %v1615 = vpop.f32.mrb[0].mxu0
        %v1616 = vpop.f32.mrb[0].mxu0
        %v1617 = vadd.f32 0.0, %v1616
        %v1618 = vpop.f32.mrb[0].mxu0
        %1619 = vmatprep.mubr.bf16.mxu0 0
        %1620 = vmatmul.mubr.bf16.gmra.mrb[0].mxu0 %v1499
        %v1621 = vpop.f32.mrb[0].mxu0
        %v1622 = vadd.f32 0.0, %v1621
        %v1623 = vpop.f32.mrb[0].mxu0
        %v1624 = vpop.f32.mrb[0].mxu0
        %v1625 = vadd.f32 0.0, %v1624
        %v1626 = vpop.f32.mrb[0].mxu0
        %1627 = vmatprep.mubr.bf16.mxu0 0
        %1628 = vmatmul.mubr.bf16.gmra.mrb[0].mxu0 %v1500
        %v1629 = vpop.f32.mrb[0].mxu0
        %v1630 = vadd.f32 0.0, %v1629
        %v1631 = vpop.f32.mrb[0].mxu0
        %v1632 = vpop.f32.mrb[0].mxu0
        %v1633 = vadd.f32 0.0, %v1632
        %v1634 = vpop.f32.mrb[0].mxu0
        %1635 = vmatprep.mubr.bf16.mxu0 0
        %1636 = vmatmul.mubr.bf16.gmra.mrb[0].mxu0 %v1501
        %v1637 = vpop.f32.mrb[0].mxu0
        %v1638 = vadd.f32 0.0, %v1637
        %v1639 = vpop.f32.mrb[0].mxu0
        %v1640 = vpop.f32.mrb[0].mxu0
        %v1641 = vadd.f32 0.0, %v1640
        %v1642 = vpop.f32.mrb[0].mxu0
        %1643 = vmatprep.mubr.bf16.mxu0 0
        %1644 = vmatmul.mubr.bf16.gmra.mrb[0].mxu0 %v1502
        %v1645 = vpop.f32.mrb[0].mxu0
        %v1646 = vadd.f32 0.0, %v1645
        %v1647 = vpop.f32.mrb[0].mxu0
        %v1648 = vpop.f32.mrb[0].mxu0
        %v1649 = vadd.f32 0.0, %v1648
        %v1650 = vpop.f32.mrb[0].mxu0
        %1651 = vmatprep.mubr.bf16.mxu0 0
        %1652 = vmatmul.mubr.bf16.gmra.mrb[0].mxu0 %v1503
        %v1653 = vpop.f32.mrb[0].mxu0
        %v1654 = vadd.f32 0.0, %v1653
        %v1655 = vpop.f32.mrb[0].mxu0
        %v1656 = vpop.f32.mrb[0].mxu0
        %v1657 = vadd.f32 0.0, %v1656
        %v1658 = vpop.f32.mrb[0].mxu0
        %1659 = vmatprep.mubr.bf16.mxu0 0
        %1660 = vmatmul.mubr.bf16.gmra.mrb[0].mxu0 %v1504
        %v1661 = vpop.f32.mrb[0].mxu0
        %v1662 = vadd.f32 0.0, %v1661
        %v1663 = vpop.f32.mrb[0].mxu0
        %v1664 = vpop.f32.mrb[0].mxu0
        %v1665 = vadd.f32 0.0, %v1664
        %v1666 = vpop.f32.mrb[0].mxu0
        %1667 = vmatprep.mubr.bf16.mxu0 0
        %1668 = vmatmul.mubr.bf16.gmra.mrb[0].mxu0 %v1505
        %v1669 = vpop.f32.mrb[0].mxu0
        %v1670 = vadd.f32 0.0, %v1669
        %v1671 = vpop.f32.mrb[0].mxu0
        %v1672 = vpop.f32.mrb[0].mxu0
        %v1673 = vadd.f32 0.0, %v1672
        %v1674 = vpop.f32.mrb[0].mxu0
        %1675 = vdwg.mxu0
        %v1676 = vadd.f32 %v1461, %v1606
        %v1677 = vadd.f32 %v1462, %v1609
        %v1678 = vadd.f32 %v1463, %v1614
        %v1679 = vadd.f32 %v1464, %v1617
        %v1680 = vadd.f32 %v1465, %v1622
        %v1681 = vadd.f32 %v1466, %v1625
        %v1682 = vadd.f32 %v1467, %v1630
        %v1683 = vadd.f32 %v1468, %v1633
        %v1684 = vadd.f32 %v1469, %v1638
        %v1685 = vadd.f32 %v1470, %v1641
        %v1686 = vadd.f32 %v1471, %v1646
        %v1687 = vadd.f32 %v1472, %v1649
        %v1688 = vadd.f32 %v1473, %v1654
        %v1689 = vadd.f32 %v1474, %v1657
        %v1690 = vadd.f32 %v1475, %v1662
        %v1691 = vadd.f32 %v1476, %v1665
        %v1692 = vadd.f32 %v1477, %v1670
        %v1693 = vadd.f32 %v1478, %v1673
        %v1694 = vld [vmem:[#allocation2 + $0x18] sm:$0xff]
        %v1695 = vld [vmem:[#allocation2 + $0x20] sm:$0xff]
        %v1696 = vld [vmem:[#allocation2 + $0x28] sm:$0xff]
        %v1697 = vld [vmem:[#allocation2 + $0x30] sm:$0xff]
        %v1698 = vld [vmem:[#allocation2 + $0x38] sm:$0xff]
        %v1699 = vld [vmem:[#allocation2 + $0x40] sm:$0xff]
        %v1700 = vld [vmem:[#allocation2 + $0x48] sm:$0xff]
        %v1701 = vld [vmem:[#allocation2 + $0x50] sm:$0xff]
        %v1702 = vld [vmem:[#allocation2 + $0x58] sm:$0xff]
        %v1703 = vld [vmem:[#allocation2 + $0x60] sm:$0xff]
        %v1704 = vld [vmem:[#allocation2 + $0x68] sm:$0xff]
        %v1705 = vld [vmem:[#allocation2 + $0x70] sm:$0xff]
        %v1706 = vld [vmem:[#allocation2 + $0x78] sm:$0xff]
        %v1707 = vld [vmem:[#allocation2 + $0x80] sm:$0xff]
        %v1708 = vld [vmem:[#allocation2 + $0x88] sm:$0xff]
        %v1709 = vld [vmem:[#allocation2 + $0x90] sm:$0xff]
        %v1710 = vld [vmem:[#allocation2 + $0x98] sm:$0xff]
        %v1711 = vld [vmem:[#allocation2 + $0xa0] sm:$0xff]
        %v1712 = vpack.c.bf16 %v1695, %v1694
        %v1713 = vpack.c.bf16 %v1697, %v1696
        %v1714 = vpack.c.bf16 %v1699, %v1698
        %v1715 = vpack.c.bf16 %v1701, %v1700
        %v1716 = vpack.c.bf16 %v1703, %v1702
        %v1717 = vpack.c.bf16 %v1705, %v1704
        %v1718 = vpack.c.bf16 %v1707, %v1706
        %v1719 = vpack.c.bf16 %v1709, %v1708
        %v1720 = vpack.c.bf16 %v1711, %v1710
        %s1721 = scalar_lea.vmem %s261, 384 [#allocation4]
        %v1722 = vld [vmem:[%s1721] sm:$0xf]
        %v1723 = vld [vmem:[%s1721 + $0x4] sm:$0xf]
        %v1724 = vld [vmem:[%s1721 + $0x8] sm:$0xf]
        %v1725 = vld [vmem:[%s1721 + $0xc] sm:$0xf]
        %v1726 = vld [vmem:[%s1721 + $0x10] sm:$0xf]
        %v1727 = vld [vmem:[%s1721 + $0x14] sm:$0xf]
        %v1728 = vld [vmem:[%s1721 + $0x18] sm:$0xf]
        %v1729 = vld [vmem:[%s1721 + $0x1c] sm:$0xf]
        %v1730 = vld [vmem:[%s1721 + $0x20] sm:$0xf]
        %v1731 = vld [vmem:[%s1721 + $0x24] sm:$0xf]
        %v1732 = vld [vmem:[%s1721 + $0x28] sm:$0xf]
        %v1733 = vld [vmem:[%s1721 + $0x2c] sm:$0xf]
        %v1734 = vld [vmem:[%s1721 + $0x30] sm:$0xf]
        %v1735 = vld [vmem:[%s1721 + $0x34] sm:$0xf]
        %v1736 = vld [vmem:[%s1721 + $0x38] sm:$0xf]
        %v1737 = vld [vmem:[%s1721 + $0x3c] sm:$0xf]
        %v1754 = vunpack.c.l.b16 %v1722
        %v1755 = vunpack.c.l.b16 %v1723
        %v1756 = vunpack.c.l.b16 %v1724
        %v1757 = vunpack.c.l.b16 %v1725
        %v1758 = vunpack.c.l.b16 %v1726
        %v1759 = vunpack.c.l.b16 %v1727
        %v1760 = vunpack.c.l.b16 %v1728
        %v1761 = vunpack.c.l.b16 %v1729
        %v1762 = vunpack.c.l.b16 %v1730
        %v1763 = vunpack.c.l.b16 %v1731
        %v1764 = vunpack.c.l.b16 %v1732
        %v1765 = vunpack.c.l.b16 %v1733
        %v1766 = vunpack.c.l.b16 %v1734
        %v1767 = vunpack.c.l.b16 %v1735
        %v1768 = vunpack.c.l.b16 %v1736
        %v1769 = vunpack.c.l.b16 %v1737
        %v1770 = vpack.c.b16 %v1755, %v1754
        %v1771 = vpack.c.b16 %v1757, %v1756
        %v1772 = vpack.c.b16 %v1759, %v1758
        %v1773 = vpack.c.b16 %v1761, %v1760
        %v1774 = vpack.c.b16 %v1763, %v1762
        %v1775 = vpack.c.b16 %v1765, %v1764
        %v1776 = vpack.c.b16 %v1767, %v1766
        %v1777 = vpack.c.b16 %v1769, %v1768
        %1786 = vmatprep.subr.bf16.mxu0 0
        %1787 = vmatpush1.bf16.msra.mxu0 %v1770
        %1788 = vmatprep.subr.bf16.mxu0 0
        %1789 = vmatpush1.bf16.msra.mxu0 %v1771
        %1790 = vmatprep.subr.bf16.mxu0 0
        %1791 = vmatpush1.bf16.msra.mxu0 %v1772
        %1792 = vmatprep.subr.bf16.mxu0 0
        %1793 = vmatpush1.bf16.msra.mxu0 %v1773
        %1794 = vmatprep.subr.bf16.mxu0 0
        %1795 = vmatpush1.bf16.msra.mxu0 %v1774
        %1796 = vmatprep.subr.bf16.mxu0 0
        %1797 = vmatpush1.bf16.msra.mxu0 %v1775
        %1798 = vmatprep.subr.bf16.mxu0 0
        %1799 = vmatpush1.bf16.msra.mxu0 %v1776
        %1800 = vmatprep.subr.bf16.mxu0 0
        %1801 = vmatpush1.bf16.msra.mxu0 %v1777
        %1802 = vmatprep.subr.bf16.mxu0 0
        %1803 = vmatpush1.bf16.msra.mxu0 0
        %1804 = vmatprep.subr.bf16.mxu0 0
        %1805 = vmatpush1.bf16.msra.mxu0 0
        %1806 = vmatprep.subr.bf16.mxu0 0
        %1807 = vmatpush1.bf16.msra.mxu0 0
        %1808 = vmatprep.subr.bf16.mxu0 0
        %1809 = vmatpush1.bf16.msra.mxu0 0
        %1810 = vmatprep.subr.bf16.mxu0 0
        %1811 = vmatpush1.bf16.msra.mxu0 0
        %1812 = vmatprep.subr.bf16.mxu0 0
        %1813 = vmatpush1.bf16.msra.mxu0 0
        %1814 = vmatprep.subr.bf16.mxu0 0
        %1815 = vmatpush1.bf16.msra.mxu0 0
        %1816 = vmatprep.subr.bf16.mxu0 0
        %1817 = vmatpush1.bf16.msra.mxu0 0
        %1818 = vmatprep.mubr.bf16.mxu0 0
        %1819 = vmatmul.mubr.bf16.gmra.mrb[0].mxu0 %v1712
        %v1820 = vpop.f32.mrb[0].mxu0
        %v1821 = vadd.f32 0.0, %v1820
        %v1822 = vpop.f32.mrb[0].mxu0
        %v1823 = vpop.f32.mrb[0].mxu0
        %v1824 = vadd.f32 0.0, %v1823
        %v1825 = vpop.f32.mrb[0].mxu0
        %1826 = vmatprep.mubr.bf16.mxu0 0
        %1827 = vmatmul.mubr.bf16.gmra.mrb[0].mxu0 %v1713
        %v1828 = vpop.f32.mrb[0].mxu0
        %v1829 = vadd.f32 0.0, %v1828
        %v1830 = vpop.f32.mrb[0].mxu0
        %v1831 = vpop.f32.mrb[0].mxu0
        %v1832 = vadd.f32 0.0, %v1831
        %v1833 = vpop.f32.mrb[0].mxu0
        %1834 = vmatprep.mubr.bf16.mxu0 0
        %1835 = vmatmul.mubr.bf16.gmra.mrb[0].mxu0 %v1714
        %v1836 = vpop.f32.mrb[0].mxu0
        %v1837 = vadd.f32 0.0, %v1836
        %v1838 = vpop.f32.mrb[0].mxu0
        %v1839 = vpop.f32.mrb[0].mxu0
        %v1840 = vadd.f32 0.0, %v1839
        %v1841 = vpop.f32.mrb[0].mxu0
        %1842 = vmatprep.mubr.bf16.mxu0 0
        %1843 = vmatmul.mubr.bf16.gmra.mrb[0].mxu0 %v1715
        %v1844 = vpop.f32.mrb[0].mxu0
        %v1845 = vadd.f32 0.0, %v1844
        %v1846 = vpop.f32.mrb[0].mxu0
        %v1847 = vpop.f32.mrb[0].mxu0
        %v1848 = vadd.f32 0.0, %v1847
        %v1849 = vpop.f32.mrb[0].mxu0
        %1850 = vmatprep.mubr.bf16.mxu0 0
        %1851 = vmatmul.mubr.bf16.gmra.mrb[0].mxu0 %v1716
        %v1852 = vpop.f32.mrb[0].mxu0
        %v1853 = vadd.f32 0.0, %v1852
        %v1854 = vpop.f32.mrb[0].mxu0
        %v1855 = vpop.f32.mrb[0].mxu0
        %v1856 = vadd.f32 0.0, %v1855
        %v1857 = vpop.f32.mrb[0].mxu0
        %1858 = vmatprep.mubr.bf16.mxu0 0
        %1859 = vmatmul.mubr.bf16.gmra.mrb[0].mxu0 %v1717
        %v1860 = vpop.f32.mrb[0].mxu0
        %v1861 = vadd.f32 0.0, %v1860
        %v1862 = vpop.f32.mrb[0].mxu0
        %v1863 = vpop.f32.mrb[0].mxu0
        %v1864 = vadd.f32 0.0, %v1863
        %v1865 = vpop.f32.mrb[0].mxu0
        %1866 = vmatprep.mubr.bf16.mxu0 0
        %1867 = vmatmul.mubr.bf16.gmra.mrb[0].mxu0 %v1718
        %v1868 = vpop.f32.mrb[0].mxu0
        %v1869 = vadd.f32 0.0, %v1868
        %v1870 = vpop.f32.mrb[0].mxu0
        %v1871 = vpop.f32.mrb[0].mxu0
        %v1872 = vadd.f32 0.0, %v1871
        %v1873 = vpop.f32.mrb[0].mxu0
        %1874 = vmatprep.mubr.bf16.mxu0 0
        %1875 = vmatmul.mubr.bf16.gmra.mrb[0].mxu0 %v1719
        %v1876 = vpop.f32.mrb[0].mxu0
        %v1877 = vadd.f32 0.0, %v1876
        %v1878 = vpop.f32.mrb[0].mxu0
        %v1879 = vpop.f32.mrb[0].mxu0
        %v1880 = vadd.f32 0.0, %v1879
        %v1881 = vpop.f32.mrb[0].mxu0
        %1882 = vmatprep.mubr.bf16.mxu0 0
        %1883 = vmatmul.mubr.bf16.gmra.mrb[0].mxu0 %v1720
        %v1884 = vpop.f32.mrb[0].mxu0
        %v1885 = vadd.f32 0.0, %v1884
        %v1886 = vpop.f32.mrb[0].mxu0
        %v1887 = vpop.f32.mrb[0].mxu0
        %v1888 = vadd.f32 0.0, %v1887
        %v1889 = vpop.f32.mrb[0].mxu0
        %1890 = vdwg.mxu0
        %v1891 = vadd.f32 %v1676, %v1821
        %v1892 = vadd.f32 %v1677, %v1824
        %v1893 = vadd.f32 %v1678, %v1829
        %v1894 = vadd.f32 %v1679, %v1832
        %v1895 = vadd.f32 %v1680, %v1837
        %v1896 = vadd.f32 %v1681, %v1840
        %v1897 = vadd.f32 %v1682, %v1845
        %v1898 = vadd.f32 %v1683, %v1848
        %v1899 = vadd.f32 %v1684, %v1853
        %v1900 = vadd.f32 %v1685, %v1856
        %v1901 = vadd.f32 %v1686, %v1861
        %v1902 = vadd.f32 %v1687, %v1864
        %v1903 = vadd.f32 %v1688, %v1869
        %v1904 = vadd.f32 %v1689, %v1872
        %v1905 = vadd.f32 %v1690, %v1877
        %v1906 = vadd.f32 %v1691, %v1880
        %v1907 = vadd.f32 %v1692, %v1885
        %v1908 = vadd.f32 %v1693, %v1888
        %v1909 = vld [vmem:[#allocation2 + $0x19] sm:$0xff]
        %v1910 = vld [vmem:[#allocation2 + $0x21] sm:$0xff]
        %v1911 = vld [vmem:[#allocation2 + $0x29] sm:$0xff]
        %v1912 = vld [vmem:[#allocation2 + $0x31] sm:$0xff]
        %v1913 = vld [vmem:[#allocation2 + $0x39] sm:$0xff]
        %v1914 = vld [vmem:[#allocation2 + $0x41] sm:$0xff]
        %v1915 = vld [vmem:[#allocation2 + $0x49] sm:$0xff]
        %v1916 = vld [vmem:[#allocation2 + $0x51] sm:$0xff]
        %v1917 = vld [vmem:[#allocation2 + $0x59] sm:$0xff]
        %v1918 = vld [vmem:[#allocation2 + $0x61] sm:$0xff]
        %v1919 = vld [vmem:[#allocation2 + $0x69] sm:$0xff]
        %v1920 = vld [vmem:[#allocation2 + $0x71] sm:$0xff]
        %v1921 = vld [vmem:[#allocation2 + $0x79] sm:$0xff]
        %v1922 = vld [vmem:[#allocation2 + $0x81] sm:$0xff]
        %v1923 = vld [vmem:[#allocation2 + $0x89] sm:$0xff]
        %v1924 = vld [vmem:[#allocation2 + $0x91] sm:$0xff]
        %v1925 = vld [vmem:[#allocation2 + $0x99] sm:$0xff]
        %v1926 = vld [vmem:[#allocation2 + $0xa1] sm:$0xff]
        %v1927 = vpack.c.bf16 %v1910, %v1909
        %v1928 = vpack.c.bf16 %v1912, %v1911
        %v1929 = vpack.c.bf16 %v1914, %v1913
        %v1930 = vpack.c.bf16 %v1916, %v1915
        %v1931 = vpack.c.bf16 %v1918, %v1917
        %v1932 = vpack.c.bf16 %v1920, %v1919
        %v1933 = vpack.c.bf16 %v1922, %v1921
        %v1934 = vpack.c.bf16 %v1924, %v1923
        %v1935 = vpack.c.bf16 %v1926, %v1925
        %s1936 = scalar_lea.vmem %s261, 448 [#allocation4]
        %v1937 = vld [vmem:[%s1936] sm:$0xf]
        %v1938 = vld [vmem:[%s1936 + $0x4] sm:$0xf]
        %v1939 = vld [vmem:[%s1936 + $0x8] sm:$0xf]
        %v1940 = vld [vmem:[%s1936 + $0xc] sm:$0xf]
        %v1941 = vld [vmem:[%s1936 + $0x10] sm:$0xf]
        %v1942 = vld [vmem:[%s1936 + $0x14] sm:$0xf]
        %v1943 = vld [vmem:[%s1936 + $0x18] sm:$0xf]
        %v1944 = vld [vmem:[%s1936 + $0x1c] sm:$0xf]
        %v1945 = vld [vmem:[%s1936 + $0x20] sm:$0xf]
        %v1946 = vld [vmem:[%s1936 + $0x24] sm:$0xf]
        %v1947 = vld [vmem:[%s1936 + $0x28] sm:$0xf]
        %v1948 = vld [vmem:[%s1936 + $0x2c] sm:$0xf]
        %v1949 = vld [vmem:[%s1936 + $0x30] sm:$0xf]
        %v1950 = vld [vmem:[%s1936 + $0x34] sm:$0xf]
        %v1951 = vld [vmem:[%s1936 + $0x38] sm:$0xf]
        %v1952 = vld [vmem:[%s1936 + $0x3c] sm:$0xf]
        %v1969 = vunpack.c.l.b16 %v1937
        %v1970 = vunpack.c.l.b16 %v1938
        %v1971 = vunpack.c.l.b16 %v1939
        %v1972 = vunpack.c.l.b16 %v1940
        %v1973 = vunpack.c.l.b16 %v1941
        %v1974 = vunpack.c.l.b16 %v1942
        %v1975 = vunpack.c.l.b16 %v1943
        %v1976 = vunpack.c.l.b16 %v1944
        %v1977 = vunpack.c.l.b16 %v1945
        %v1978 = vunpack.c.l.b16 %v1946
        %v1979 = vunpack.c.l.b16 %v1947
        %v1980 = vunpack.c.l.b16 %v1948
        %v1981 = vunpack.c.l.b16 %v1949
        %v1982 = vunpack.c.l.b16 %v1950
        %v1983 = vunpack.c.l.b16 %v1951
        %v1984 = vunpack.c.l.b16 %v1952
        %v1985 = vpack.c.b16 %v1970, %v1969
        %v1986 = vpack.c.b16 %v1972, %v1971
        %v1987 = vpack.c.b16 %v1974, %v1973
        %v1988 = vpack.c.b16 %v1976, %v1975
        %v1989 = vpack.c.b16 %v1978, %v1977
        %v1990 = vpack.c.b16 %v1980, %v1979
        %v1991 = vpack.c.b16 %v1982, %v1981
        %v1992 = vpack.c.b16 %v1984, %v1983
        %2001 = vmatprep.subr.bf16.mxu0 0
        %2002 = vmatpush1.bf16.msra.mxu0 %v1985
        %2003 = vmatprep.subr.bf16.mxu0 0
        %2004 = vmatpush1.bf16.msra.mxu0 %v1986
        %2005 = vmatprep.subr.bf16.mxu0 0
        %2006 = vmatpush1.bf16.msra.mxu0 %v1987
        %2007 = vmatprep.subr.bf16.mxu0 0
        %2008 = vmatpush1.bf16.msra.mxu0 %v1988
        %2009 = vmatprep.subr.bf16.mxu0 0
        %2010 = vmatpush1.bf16.msra.mxu0 %v1989
        %2011 = vmatprep.subr.bf16.mxu0 0
        %2012 = vmatpush1.bf16.msra.mxu0 %v1990
        %2013 = vmatprep.subr.bf16.mxu0 0
        %2014 = vmatpush1.bf16.msra.mxu0 %v1991
        %2015 = vmatprep.subr.bf16.mxu0 0
        %2016 = vmatpush1.bf16.msra.mxu0 %v1992
        %2017 = vmatprep.subr.bf16.mxu0 0
        %2018 = vmatpush1.bf16.msra.mxu0 0
        %2019 = vmatprep.subr.bf16.mxu0 0
        %2020 = vmatpush1.bf16.msra.mxu0 0
        %2021 = vmatprep.subr.bf16.mxu0 0
        %2022 = vmatpush1.bf16.msra.mxu0 0
        %2023 = vmatprep.subr.bf16.mxu0 0
        %2024 = vmatpush1.bf16.msra.mxu0 0
        %2025 = vmatprep.subr.bf16.mxu0 0
        %2026 = vmatpush1.bf16.msra.mxu0 0
        %2027 = vmatprep.subr.bf16.mxu0 0
        %2028 = vmatpush1.bf16.msra.mxu0 0
        %2029 = vmatprep.subr.bf16.mxu0 0
        %2030 = vmatpush1.bf16.msra.mxu0 0
        %2031 = vmatprep.subr.bf16.mxu0 0
        %2032 = vmatpush1.bf16.msra.mxu0 0
        %2033 = vmatprep.mubr.bf16.mxu0 0
        %2034 = vmatmul.mubr.bf16.gmra.mrb[0].mxu0 %v1927
        %v2035 = vpop.f32.mrb[0].mxu0
        %v2036 = vadd.f32 0.0, %v2035
        %v2037 = vpop.f32.mrb[0].mxu0
        %v2038 = vpop.f32.mrb[0].mxu0
        %v2039 = vadd.f32 0.0, %v2038
        %v2040 = vpop.f32.mrb[0].mxu0
        %2041 = vmatprep.mubr.bf16.mxu0 0
        %2042 = vmatmul.mubr.bf16.gmra.mrb[0].mxu0 %v1928
        %v2043 = vpop.f32.mrb[0].mxu0
        %v2044 = vadd.f32 0.0, %v2043
        %v2045 = vpop.f32.mrb[0].mxu0
        %v2046 = vpop.f32.mrb[0].mxu0
        %v2047 = vadd.f32 0.0, %v2046
        %v2048 = vpop.f32.mrb[0].mxu0
        %2049 = vmatprep.mubr.bf16.mxu0 0
        %2050 = vmatmul.mubr.bf16.gmra.mrb[0].mxu0 %v1929
        %v2051 = vpop.f32.mrb[0].mxu0
        %v2052 = vadd.f32 0.0, %v2051
        %v2053 = vpop.f32.mrb[0].mxu0
        %v2054 = vpop.f32.mrb[0].mxu0
        %v2055 = vadd.f32 0.0, %v2054
        %v2056 = vpop.f32.mrb[0].mxu0
        %2057 = vmatprep.mubr.bf16.mxu0 0
        %2058 = vmatmul.mubr.bf16.gmra.mrb[0].mxu0 %v1930
        %v2059 = vpop.f32.mrb[0].mxu0
        %v2060 = vadd.f32 0.0, %v2059
        %v2061 = vpop.f32.mrb[0].mxu0
        %v2062 = vpop.f32.mrb[0].mxu0
        %v2063 = vadd.f32 0.0, %v2062
        %v2064 = vpop.f32.mrb[0].mxu0
        %2065 = vmatprep.mubr.bf16.mxu0 0
        %2066 = vmatmul.mubr.bf16.gmra.mrb[0].mxu0 %v1931
        %v2067 = vpop.f32.mrb[0].mxu0
        %v2068 = vadd.f32 0.0, %v2067
        %v2069 = vpop.f32.mrb[0].mxu0
        %v2070 = vpop.f32.mrb[0].mxu0
        %v2071 = vadd.f32 0.0, %v2070
        %v2072 = vpop.f32.mrb[0].mxu0
        %2073 = vmatprep.mubr.bf16.mxu0 0
        %2074 = vmatmul.mubr.bf16.gmra.mrb[0].mxu0 %v1932
        %v2075 = vpop.f32.mrb[0].mxu0
        %v2076 = vadd.f32 0.0, %v2075
        %v2077 = vpop.f32.mrb[0].mxu0
        %v2078 = vpop.f32.mrb[0].mxu0
        %v2079 = vadd.f32 0.0, %v2078
        %v2080 = vpop.f32.mrb[0].mxu0
        %2081 = vmatprep.mubr.bf16.mxu0 0
        %2082 = vmatmul.mubr.bf16.gmra.mrb[0].mxu0 %v1933
        %v2083 = vpop.f32.mrb[0].mxu0
        %v2084 = vadd.f32 0.0, %v2083
        %v2085 = vpop.f32.mrb[0].mxu0
        %v2086 = vpop.f32.mrb[0].mxu0
        %v2087 = vadd.f32 0.0, %v2086
        %v2088 = vpop.f32.mrb[0].mxu0
        %2089 = vmatprep.mubr.bf16.mxu0 0
        %2090 = vmatmul.mubr.bf16.gmra.mrb[0].mxu0 %v1934
        %v2091 = vpop.f32.mrb[0].mxu0
        %v2092 = vadd.f32 0.0, %v2091
        %v2093 = vpop.f32.mrb[0].mxu0
        %v2094 = vpop.f32.mrb[0].mxu0
        %v2095 = vadd.f32 0.0, %v2094
        %v2096 = vpop.f32.mrb[0].mxu0
        %2097 = vmatprep.mubr.bf16.mxu0 0
        %2098 = vmatmul.mubr.bf16.gmra.mrb[0].mxu0 %v1935
        %v2099 = vpop.f32.mrb[0].mxu0
        %v2100 = vadd.f32 0.0, %v2099
        %v2101 = vpop.f32.mrb[0].mxu0
        %v2102 = vpop.f32.mrb[0].mxu0
        %v2103 = vadd.f32 0.0, %v2102
        %v2104 = vpop.f32.mrb[0].mxu0
        %2105 = vdwg.mxu0
        %v2106 = vadd.f32 %v1891, %v2036
        %v2107 = vadd.f32 %v1892, %v2039
        %v2108 = vadd.f32 %v1893, %v2044
        %v2109 = vadd.f32 %v1894, %v2047
        %v2110 = vadd.f32 %v1895, %v2052
        %v2111 = vadd.f32 %v1896, %v2055
        %v2112 = vadd.f32 %v1897, %v2060
        %v2113 = vadd.f32 %v1898, %v2063
        %v2114 = vadd.f32 %v1899, %v2068
        %v2115 = vadd.f32 %v1900, %v2071
        %v2116 = vadd.f32 %v1901, %v2076
        %v2117 = vadd.f32 %v1902, %v2079
        %v2118 = vadd.f32 %v1903, %v2084
        %v2119 = vadd.f32 %v1904, %v2087
        %v2120 = vadd.f32 %v1905, %v2092
        %v2121 = vadd.f32 %v1906, %v2095
        %v2122 = vadd.f32 %v1907, %v2100
        %v2123 = vadd.f32 %v1908, %v2103
        %v2124 = vld [vmem:[#allocation2 + $0x1a] sm:$0xff]
        %v2125 = vld [vmem:[#allocation2 + $0x22] sm:$0xff]
        %v2126 = vld [vmem:[#allocation2 + $0x2a] sm:$0xff]
        %v2127 = vld [vmem:[#allocation2 + $0x32] sm:$0xff]
        %v2128 = vld [vmem:[#allocation2 + $0x3a] sm:$0xff]
        %v2129 = vld [vmem:[#allocation2 + $0x42] sm:$0xff]
        %v2130 = vld [vmem:[#allocation2 + $0x4a] sm:$0xff]
        %v2131 = vld [vmem:[#allocation2 + $0x52] sm:$0xff]
        %v2132 = vld [vmem:[#allocation2 + $0x5a] sm:$0xff]
        %v2133 = vld [vmem:[#allocation2 + $0x62] sm:$0xff]
        %v2134 = vld [vmem:[#allocation2 + $0x6a] sm:$0xff]
        %v2135 = vld [vmem:[#allocation2 + $0x72] sm:$0xff]
        %v2136 = vld [vmem:[#allocation2 + $0x7a] sm:$0xff]
        %v2137 = vld [vmem:[#allocation2 + $0x82] sm:$0xff]
        %v2138 = vld [vmem:[#allocation2 + $0x8a] sm:$0xff]
        %v2139 = vld [vmem:[#allocation2 + $0x92] sm:$0xff]
        %v2140 = vld [vmem:[#allocation2 + $0x9a] sm:$0xff]
        %v2141 = vld [vmem:[#allocation2 + $0xa2] sm:$0xff]
        %v2142 = vpack.c.bf16 %v2125, %v2124
        %v2143 = vpack.c.bf16 %v2127, %v2126
        %v2144 = vpack.c.bf16 %v2129, %v2128
        %v2145 = vpack.c.bf16 %v2131, %v2130
        %v2146 = vpack.c.bf16 %v2133, %v2132
        %v2147 = vpack.c.bf16 %v2135, %v2134
        %v2148 = vpack.c.bf16 %v2137, %v2136
        %v2149 = vpack.c.bf16 %v2139, %v2138
        %v2150 = vpack.c.bf16 %v2141, %v2140
        %s2151 = scalar_lea.vmem %s261, 512 [#allocation4]
        %v2152 = vld [vmem:[%s2151] sm:$0xf]
        %v2153 = vld [vmem:[%s2151 + $0x4] sm:$0xf]
        %v2154 = vld [vmem:[%s2151 + $0x8] sm:$0xf]
        %v2155 = vld [vmem:[%s2151 + $0xc] sm:$0xf]
        %v2156 = vld [vmem:[%s2151 + $0x10] sm:$0xf]
        %v2157 = vld [vmem:[%s2151 + $0x14] sm:$0xf]
        %v2158 = vld [vmem:[%s2151 + $0x18] sm:$0xf]
        %v2159 = vld [vmem:[%s2151 + $0x1c] sm:$0xf]
        %v2160 = vld [vmem:[%s2151 + $0x20] sm:$0xf]
        %v2161 = vld [vmem:[%s2151 + $0x24] sm:$0xf]
        %v2162 = vld [vmem:[%s2151 + $0x28] sm:$0xf]
        %v2163 = vld [vmem:[%s2151 + $0x2c] sm:$0xf]
        %v2164 = vld [vmem:[%s2151 + $0x30] sm:$0xf]
        %v2165 = vld [vmem:[%s2151 + $0x34] sm:$0xf]
        %v2166 = vld [vmem:[%s2151 + $0x38] sm:$0xf]
        %v2167 = vld [vmem:[%s2151 + $0x3c] sm:$0xf]
        %v2184 = vunpack.c.l.b16 %v2152
        %v2185 = vunpack.c.l.b16 %v2153
        %v2186 = vunpack.c.l.b16 %v2154
        %v2187 = vunpack.c.l.b16 %v2155
        %v2188 = vunpack.c.l.b16 %v2156
        %v2189 = vunpack.c.l.b16 %v2157
        %v2190 = vunpack.c.l.b16 %v2158
        %v2191 = vunpack.c.l.b16 %v2159
        %v2192 = vunpack.c.l.b16 %v2160
        %v2193 = vunpack.c.l.b16 %v2161
        %v2194 = vunpack.c.l.b16 %v2162
        %v2195 = vunpack.c.l.b16 %v2163
        %v2196 = vunpack.c.l.b16 %v2164
        %v2197 = vunpack.c.l.b16 %v2165
        %v2198 = vunpack.c.l.b16 %v2166
        %v2199 = vunpack.c.l.b16 %v2167
        %v2200 = vpack.c.b16 %v2185, %v2184
        %v2201 = vpack.c.b16 %v2187, %v2186
        %v2202 = vpack.c.b16 %v2189, %v2188
        %v2203 = vpack.c.b16 %v2191, %v2190
        %v2204 = vpack.c.b16 %v2193, %v2192
        %v2205 = vpack.c.b16 %v2195, %v2194
        %v2206 = vpack.c.b16 %v2197, %v2196
        %v2207 = vpack.c.b16 %v2199, %v2198
        %2216 = vmatprep.subr.bf16.mxu0 0
        %2217 = vmatpush1.bf16.msra.mxu0 %v2200
        %2218 = vmatprep.subr.bf16.mxu0 0
        %2219 = vmatpush1.bf16.msra.mxu0 %v2201
        %2220 = vmatprep.subr.bf16.mxu0 0
        %2221 = vmatpush1.bf16.msra.mxu0 %v2202
        %2222 = vmatprep.subr.bf16.mxu0 0
        %2223 = vmatpush1.bf16.msra.mxu0 %v2203
        %2224 = vmatprep.subr.bf16.mxu0 0
        %2225 = vmatpush1.bf16.msra.mxu0 %v2204
        %2226 = vmatprep.subr.bf16.mxu0 0
        %2227 = vmatpush1.bf16.msra.mxu0 %v2205
        %2228 = vmatprep.subr.bf16.mxu0 0
        %2229 = vmatpush1.bf16.msra.mxu0 %v2206
        %2230 = vmatprep.subr.bf16.mxu0 0
        %2231 = vmatpush1.bf16.msra.mxu0 %v2207
        %2232 = vmatprep.subr.bf16.mxu0 0
        %2233 = vmatpush1.bf16.msra.mxu0 0
        %2234 = vmatprep.subr.bf16.mxu0 0
        %2235 = vmatpush1.bf16.msra.mxu0 0
        %2236 = vmatprep.subr.bf16.mxu0 0
        %2237 = vmatpush1.bf16.msra.mxu0 0
        %2238 = vmatprep.subr.bf16.mxu0 0
        %2239 = vmatpush1.bf16.msra.mxu0 0
        %2240 = vmatprep.subr.bf16.mxu0 0
        %2241 = vmatpush1.bf16.msra.mxu0 0
        %2242 = vmatprep.subr.bf16.mxu0 0
        %2243 = vmatpush1.bf16.msra.mxu0 0
        %2244 = vmatprep.subr.bf16.mxu0 0
        %2245 = vmatpush1.bf16.msra.mxu0 0
        %2246 = vmatprep.subr.bf16.mxu0 0
        %2247 = vmatpush1.bf16.msra.mxu0 0
        %2248 = vmatprep.mubr.bf16.mxu0 0
        %2249 = vmatmul.mubr.bf16.gmra.mrb[0].mxu0 %v2142
        %v2250 = vpop.f32.mrb[0].mxu0
        %v2251 = vadd.f32 0.0, %v2250
        %v2252 = vpop.f32.mrb[0].mxu0
        %v2253 = vpop.f32.mrb[0].mxu0
        %v2254 = vadd.f32 0.0, %v2253
        %v2255 = vpop.f32.mrb[0].mxu0
        %2256 = vmatprep.mubr.bf16.mxu0 0
        %2257 = vmatmul.mubr.bf16.gmra.mrb[0].mxu0 %v2143
        %v2258 = vpop.f32.mrb[0].mxu0
        %v2259 = vadd.f32 0.0, %v2258
        %v2260 = vpop.f32.mrb[0].mxu0
        %v2261 = vpop.f32.mrb[0].mxu0
        %v2262 = vadd.f32 0.0, %v2261
        %v2263 = vpop.f32.mrb[0].mxu0
        %2264 = vmatprep.mubr.bf16.mxu0 0
        %2265 = vmatmul.mubr.bf16.gmra.mrb[0].mxu0 %v2144
        %v2266 = vpop.f32.mrb[0].mxu0
        %v2267 = vadd.f32 0.0, %v2266
        %v2268 = vpop.f32.mrb[0].mxu0
        %v2269 = vpop.f32.mrb[0].mxu0
        %v2270 = vadd.f32 0.0, %v2269
        %v2271 = vpop.f32.mrb[0].mxu0
        %2272 = vmatprep.mubr.bf16.mxu0 0
        %2273 = vmatmul.mubr.bf16.gmra.mrb[0].mxu0 %v2145
        %v2274 = vpop.f32.mrb[0].mxu0
        %v2275 = vadd.f32 0.0, %v2274
        %v2276 = vpop.f32.mrb[0].mxu0
        %v2277 = vpop.f32.mrb[0].mxu0
        %v2278 = vadd.f32 0.0, %v2277
        %v2279 = vpop.f32.mrb[0].mxu0
        %2280 = vmatprep.mubr.bf16.mxu0 0
        %2281 = vmatmul.mubr.bf16.gmra.mrb[0].mxu0 %v2146
        %v2282 = vpop.f32.mrb[0].mxu0
        %v2283 = vadd.f32 0.0, %v2282
        %v2284 = vpop.f32.mrb[0].mxu0
        %v2285 = vpop.f32.mrb[0].mxu0
        %v2286 = vadd.f32 0.0, %v2285
        %v2287 = vpop.f32.mrb[0].mxu0
        %2288 = vmatprep.mubr.bf16.mxu0 0
        %2289 = vmatmul.mubr.bf16.gmra.mrb[0].mxu0 %v2147
        %v2290 = vpop.f32.mrb[0].mxu0
        %v2291 = vadd.f32 0.0, %v2290
        %v2292 = vpop.f32.mrb[0].mxu0
        %v2293 = vpop.f32.mrb[0].mxu0
        %v2294 = vadd.f32 0.0, %v2293
        %v2295 = vpop.f32.mrb[0].mxu0
        %2296 = vmatprep.mubr.bf16.mxu0 0
        %2297 = vmatmul.mubr.bf16.gmra.mrb[0].mxu0 %v2148
        %v2298 = vpop.f32.mrb[0].mxu0
        %v2299 = vadd.f32 0.0, %v2298
        %v2300 = vpop.f32.mrb[0].mxu0
        %v2301 = vpop.f32.mrb[0].mxu0
        %v2302 = vadd.f32 0.0, %v2301
        %v2303 = vpop.f32.mrb[0].mxu0
        %2304 = vmatprep.mubr.bf16.mxu0 0
        %2305 = vmatmul.mubr.bf16.gmra.mrb[0].mxu0 %v2149
        %v2306 = vpop.f32.mrb[0].mxu0
        %v2307 = vadd.f32 0.0, %v2306
        %v2308 = vpop.f32.mrb[0].mxu0
        %v2309 = vpop.f32.mrb[0].mxu0
        %v2310 = vadd.f32 0.0, %v2309
        %v2311 = vpop.f32.mrb[0].mxu0
        %2312 = vmatprep.mubr.bf16.mxu0 0
        %2313 = vmatmul.mubr.bf16.gmra.mrb[0].mxu0 %v2150
        %v2314 = vpop.f32.mrb[0].mxu0
        %v2315 = vadd.f32 0.0, %v2314
        %v2316 = vpop.f32.mrb[0].mxu0
        %v2317 = vpop.f32.mrb[0].mxu0
        %v2318 = vadd.f32 0.0, %v2317
        %v2319 = vpop.f32.mrb[0].mxu0
        %2320 = vdwg.mxu0
        %v2321 = vadd.f32 %v2106, %v2251
        %v2322 = vadd.f32 %v2107, %v2254
        %v2323 = vadd.f32 %v2108, %v2259
        %v2324 = vadd.f32 %v2109, %v2262
        %v2325 = vadd.f32 %v2110, %v2267
        %v2326 = vadd.f32 %v2111, %v2270
        %v2327 = vadd.f32 %v2112, %v2275
        %v2328 = vadd.f32 %v2113, %v2278
        %v2329 = vadd.f32 %v2114, %v2283
        %v2330 = vadd.f32 %v2115, %v2286
        %v2331 = vadd.f32 %v2116, %v2291
        %v2332 = vadd.f32 %v2117, %v2294
        %v2333 = vadd.f32 %v2118, %v2299
        %v2334 = vadd.f32 %v2119, %v2302
        %v2335 = vadd.f32 %v2120, %v2307
        %v2336 = vadd.f32 %v2121, %v2310
        %v2337 = vadd.f32 %v2122, %v2315
        %v2338 = vadd.f32 %v2123, %v2318
        %v2339 = vld [vmem:[%s300] sm:$0x7]
        %v2340 = vlaneseq
        %v2341 = vshrl.u32 %v2340, 7
        %v2342 = vsub.s32 2, %v2341
        %v2343 = vrot.slane %v2339, %v2342
        %v2344 = vadd.f32 %v2321, %v2343
        %v2345 = vadd.f32 %v2322, %v2343
        %v2346 = vadd.f32 %v2323, %v2343
        %v2347 = vadd.f32 %v2324, %v2343
        %v2348 = vadd.f32 %v2325, %v2343
        %v2349 = vadd.f32 %v2326, %v2343
        %v2350 = vadd.f32 %v2327, %v2343
        %v2351 = vadd.f32 %v2328, %v2343
        %v2352 = vadd.f32 %v2329, %v2343
        %v2353 = vadd.f32 %v2330, %v2343
        %v2354 = vadd.f32 %v2331, %v2343
        %v2355 = vadd.f32 %v2332, %v2343
        %v2356 = vadd.f32 %v2333, %v2343
        %v2357 = vadd.f32 %v2334, %v2343
        %v2358 = vadd.f32 %v2335, %v2343
        %v2359 = vadd.f32 %v2336, %v2343
        %v2360 = vadd.f32 %v2337, %v2343
        %v2361 = vadd.f32 %v2338, %v2343
        %v2362 = vmul.f32 %v2344, %v423
        %v2363 = vmul.f32 %v2345, %v424
        %v2364 = vmul.f32 %v2346, %v425
        %v2365 = vmul.f32 %v2347, %v426
        %v2366 = vmul.f32 %v2348, %v427
        %v2367 = vmul.f32 %v2349, %v428
        %v2368 = vmul.f32 %v2350, %v429
        %v2369 = vmul.f32 %v2351, %v430
        %v2370 = vmul.f32 %v2352, %v431
        %v2371 = vmul.f32 %v2353, %v432
        %v2372 = vmul.f32 %v2354, %v433
        %v2373 = vmul.f32 %v2355, %v434
        %v2374 = vmul.f32 %v2356, %v435
        %v2375 = vmul.f32 %v2357, %v436
        %v2376 = vmul.f32 %v2358, %v437
        %v2377 = vmul.f32 %v2359, %v438
        %v2378 = vmul.f32 %v2360, %v439
        %v2379 = vmul.f32 %v2361, %v440
        %v2380 = vadd.f32 %v2362, %v2363
        %v2381 = vadd.f32 %v2380, %v2364
        %v2382 = vadd.f32 %v2381, %v2365
        %v2383 = vadd.f32 %v2382, %v2366
        %v2384 = vadd.f32 %v2383, %v2367
        %v2385 = vadd.f32 %v2384, %v2368
        %v2386 = vadd.f32 %v2385, %v2369
        %v2387 = vadd.f32 %v2386, %v2370
        %v2388 = vadd.f32 %v2387, %v2371
        %v2389 = vadd.f32 %v2388, %v2372
        %v2390 = vadd.f32 %v2389, %v2373
        %v2391 = vadd.f32 %v2390, %v2374
        %v2392 = vadd.f32 %v2391, %v2375
        %v2393 = vadd.f32 %v2392, %v2376
        %v2394 = vadd.f32 %v2393, %v2377
        %v2395 = vadd.f32 %v2394, %v2378
        %v2396 = vadd.f32 %v2395, %v2379
        %v2397 = vrot.slane %v2396, 4
        %v2398 = vadd.f32 %v2396, %v2397
        %v2399 = vrot.slane %v2398, 2
        %v2400 = vadd.f32 %v2398, %v2399
        %v2401 = vrot.slane %v2400, 1
        %v2402 = vadd.f32 %v2400, %v2401
        %v2403 = vmul.f32 %v2402, 0.011904762
        %v2404 = vsub.f32 %v2344, %v2403
        %v2405 = vsub.f32 %v2345, %v2403
        %v2406 = vsub.f32 %v2346, %v2403
        %v2407 = vsub.f32 %v2347, %v2403
        %v2408 = vsub.f32 %v2348, %v2403
        %v2409 = vsub.f32 %v2349, %v2403
        %v2410 = vsub.f32 %v2350, %v2403
        %v2411 = vsub.f32 %v2351, %v2403
        %v2412 = vsub.f32 %v2352, %v2403
        %v2413 = vsub.f32 %v2353, %v2403
        %v2414 = vsub.f32 %v2354, %v2403
        %v2415 = vsub.f32 %v2355, %v2403
        %v2416 = vsub.f32 %v2356, %v2403
        %v2417 = vsub.f32 %v2357, %v2403
        %v2418 = vsub.f32 %v2358, %v2403
        %v2419 = vsub.f32 %v2359, %v2403
        %v2420 = vsub.f32 %v2360, %v2403
        %v2421 = vsub.f32 %v2361, %v2403
        %v2422 = vmul.f32 %v2404, %v423
        %v2423 = vmul.f32 %v2405, %v424
        %v2424 = vmul.f32 %v2406, %v425
        %v2425 = vmul.f32 %v2407, %v426
        %v2426 = vmul.f32 %v2408, %v427
        %v2427 = vmul.f32 %v2409, %v428
        %v2428 = vmul.f32 %v2410, %v429
        %v2429 = vmul.f32 %v2411, %v430
        %v2430 = vmul.f32 %v2412, %v431
        %v2431 = vmul.f32 %v2413, %v432
        %v2432 = vmul.f32 %v2414, %v433
        %v2433 = vmul.f32 %v2415, %v434
        %v2434 = vmul.f32 %v2416, %v435
        %v2435 = vmul.f32 %v2417, %v436
        %v2436 = vmul.f32 %v2418, %v437
        %v2437 = vmul.f32 %v2419, %v438
        %v2438 = vmul.f32 %v2420, %v439
        %v2439 = vmul.f32 %v2421, %v440
        %v2440 = vmul.f32 %v2422, %v2422
        %v2441 = vmul.f32 %v2423, %v2423
        %v2442 = vmul.f32 %v2424, %v2424
        %v2443 = vmul.f32 %v2425, %v2425
        %v2444 = vmul.f32 %v2426, %v2426
        %v2445 = vmul.f32 %v2427, %v2427
        %v2446 = vmul.f32 %v2428, %v2428
        %v2447 = vmul.f32 %v2429, %v2429
        %v2448 = vmul.f32 %v2430, %v2430
        %v2449 = vmul.f32 %v2431, %v2431
        %v2450 = vmul.f32 %v2432, %v2432
        %v2451 = vmul.f32 %v2433, %v2433
        %v2452 = vmul.f32 %v2434, %v2434
        %v2453 = vmul.f32 %v2435, %v2435
        %v2454 = vmul.f32 %v2436, %v2436
        %v2455 = vmul.f32 %v2437, %v2437
        %v2456 = vmul.f32 %v2438, %v2438
        %v2457 = vmul.f32 %v2439, %v2439
        %v2458 = vadd.f32 %v2440, %v2441
        %v2459 = vadd.f32 %v2458, %v2442
        %v2460 = vadd.f32 %v2459, %v2443
        %v2461 = vadd.f32 %v2460, %v2444
        %v2462 = vadd.f32 %v2461, %v2445
        %v2463 = vadd.f32 %v2462, %v2446
        %v2464 = vadd.f32 %v2463, %v2447
        %v2465 = vadd.f32 %v2464, %v2448
        %v2466 = vadd.f32 %v2465, %v2449
        %v2467 = vadd.f32 %v2466, %v2450
        %v2468 = vadd.f32 %v2467, %v2451
        %v2469 = vadd.f32 %v2468, %v2452
        %v2470 = vadd.f32 %v2469, %v2453
        %v2471 = vadd.f32 %v2470, %v2454
        %v2472 = vadd.f32 %v2471, %v2455
        %v2473 = vadd.f32 %v2472, %v2456
        %v2474 = vadd.f32 %v2473, %v2457
        %v2475 = vrot.slane %v2474, 4
        %v2476 = vadd.f32 %v2474, %v2475
        %v2477 = vrot.slane %v2476, 2
        %v2478 = vadd.f32 %v2476, %v2477
        %v2479 = vrot.slane %v2478, 1
        %v2480 = vadd.f32 %v2478, %v2479
        %v2481 = vmul.f32 %v2480, 0.011904762
        %v2482 = vadd.f32 %v2481, 1e-05
        %v2483 = vrsqrt.pop %v2482
        %v2484 = vmul.f32 %v2339, %v2483
        %v2485 = vlaneseq
        %v2486 = vshrl.u32 %v2485, 7
        %v2487 = vsub.s32 0, %v2486
        %v2488 = vrot.slane %v2484, %v2487
        %v2489 = vmul.f32 %v2404, %v2488
        %v2490 = vmul.f32 %v2405, %v2488
        %v2491 = vmul.f32 %v2406, %v2488
        %v2492 = vmul.f32 %v2407, %v2488
        %v2493 = vmul.f32 %v2408, %v2488
        %v2494 = vmul.f32 %v2409, %v2488
        %v2495 = vmul.f32 %v2410, %v2488
        %v2496 = vmul.f32 %v2411, %v2488
        %v2497 = vmul.f32 %v2412, %v2488
        %v2498 = vmul.f32 %v2413, %v2488
        %v2499 = vmul.f32 %v2414, %v2488
        %v2500 = vmul.f32 %v2415, %v2488
        %v2501 = vmul.f32 %v2416, %v2488
        %v2502 = vmul.f32 %v2417, %v2488
        %v2503 = vmul.f32 %v2418, %v2488
        %v2504 = vmul.f32 %v2419, %v2488
        %v2505 = vmul.f32 %v2420, %v2488
        %v2506 = vmul.f32 %v2421, %v2488
        %v2507 = vlaneseq
        %v2508 = vshrl.u32 %v2507, 7
        %v2509 = vsub.s32 1, %v2508
        %v2510 = vrot.slane %v2339, %v2509
        %v2511 = vadd.f32 %v2489, %v2510
        %v2512 = vadd.f32 %v2490, %v2510
        %v2513 = vadd.f32 %v2491, %v2510
        %v2514 = vadd.f32 %v2492, %v2510
        %v2515 = vadd.f32 %v2493, %v2510
        %v2516 = vadd.f32 %v2494, %v2510
        %v2517 = vadd.f32 %v2495, %v2510
        %v2518 = vadd.f32 %v2496, %v2510
        %v2519 = vadd.f32 %v2497, %v2510
        %v2520 = vadd.f32 %v2498, %v2510
        %v2521 = vadd.f32 %v2499, %v2510
        %v2522 = vadd.f32 %v2500, %v2510
        %v2523 = vadd.f32 %v2501, %v2510
        %v2524 = vadd.f32 %v2502, %v2510
        %v2525 = vadd.f32 %v2503, %v2510
        %v2526 = vadd.f32 %v2504, %v2510
        %v2527 = vadd.f32 %v2505, %v2510
        %v2528 = vadd.f32 %v2506, %v2510
        %p2529 = scmp.ge.s32.totalorder %s21, 2
        %p2530 = scmp.eq.s32.totalorder %s382, 0
        %p2531 = pnand %p2529, %p2530
        %p2532 = pneg %p2531
        %s2533 = scalar_select %p2532, 1.0, 0.0
        %v2534 = vld [vmem:[#allocation3] sm:$0xff]
        %v2535 = vld [vmem:[#allocation3 + $0x8] sm:$0xff]
        %v2536 = vld [vmem:[#allocation3 + $0x10] sm:$0xff]
        %v2537 = vld [vmem:[#allocation3 + $0x18] sm:$0xff]
        %v2538 = vld [vmem:[#allocation3 + $0x20] sm:$0xff]
        %v2539 = vld [vmem:[#allocation3 + $0x28] sm:$0xff]
        %v2540 = vld [vmem:[#allocation3 + $0x30] sm:$0xff]
        %v2541 = vld [vmem:[#allocation3 + $0x38] sm:$0xff]
        %v2542 = vld [vmem:[#allocation3 + $0x40] sm:$0xff]
        %v2543 = vld [vmem:[#allocation3 + $0x48] sm:$0xff]
        %v2544 = vld [vmem:[#allocation3 + $0x50] sm:$0xff]
        %v2545 = vld [vmem:[#allocation3 + $0x58] sm:$0xff]
        %v2546 = vld [vmem:[#allocation3 + $0x60] sm:$0xff]
        %v2547 = vld [vmem:[#allocation3 + $0x68] sm:$0xff]
        %v2548 = vld [vmem:[#allocation3 + $0x70] sm:$0xff]
        %v2549 = vld [vmem:[#allocation3 + $0x78] sm:$0xff]
        %v2550 = vld [vmem:[#allocation3 + $0x80] sm:$0xff]
        %v2551 = vld [vmem:[#allocation3 + $0x88] sm:$0xff]
        %v2552 = vstv %s2533
        %v2553 = vmul.f32 %v2552, %v2534
        %v2554 = vmul.f32 %v2552, %v2535
        %v2555 = vmul.f32 %v2552, %v2536
        %v2556 = vmul.f32 %v2552, %v2537
        %v2557 = vmul.f32 %v2552, %v2538
        %v2558 = vmul.f32 %v2552, %v2539
        %v2559 = vmul.f32 %v2552, %v2540
        %v2560 = vmul.f32 %v2552, %v2541
        %v2561 = vmul.f32 %v2552, %v2542
        %v2562 = vmul.f32 %v2552, %v2543
        %v2563 = vmul.f32 %v2552, %v2544
        %v2564 = vmul.f32 %v2552, %v2545
        %v2565 = vmul.f32 %v2552, %v2546
        %v2566 = vmul.f32 %v2552, %v2547
        %v2567 = vmul.f32 %v2552, %v2548
        %v2568 = vmul.f32 %v2552, %v2549
        %v2569 = vmul.f32 %v2552, %v2550
        %v2570 = vmul.f32 %v2552, %v2551
        %v2571 = vadd.f32 %v2511, %v2553
        %v2572 = vadd.f32 %v2512, %v2554
        %v2573 = vadd.f32 %v2513, %v2555
        %v2574 = vadd.f32 %v2514, %v2556
        %v2575 = vadd.f32 %v2515, %v2557
        %v2576 = vadd.f32 %v2516, %v2558
        %v2577 = vadd.f32 %v2517, %v2559
        %v2578 = vadd.f32 %v2518, %v2560
        %v2579 = vadd.f32 %v2519, %v2561
        %v2580 = vadd.f32 %v2520, %v2562
        %v2581 = vadd.f32 %v2521, %v2563
        %v2582 = vadd.f32 %v2522, %v2564
        %v2583 = vadd.f32 %v2523, %v2565
        %v2584 = vadd.f32 %v2524, %v2566
        %v2585 = vadd.f32 %v2525, %v2567
        %v2586 = vadd.f32 %v2526, %v2568
        %v2587 = vadd.f32 %v2527, %v2569
        %v2588 = vadd.f32 %v2528, %v2570
        %v2589 = vmax.f32 %v2571, 0.0
        %v2590 = vmax.f32 %v2572, 0.0
        %v2591 = vmax.f32 %v2573, 0.0
        %v2592 = vmax.f32 %v2574, 0.0
        %v2593 = vmax.f32 %v2575, 0.0
        %v2594 = vmax.f32 %v2576, 0.0
        %v2595 = vmax.f32 %v2577, 0.0
        %v2596 = vmax.f32 %v2578, 0.0
        %v2597 = vmax.f32 %v2579, 0.0
        %v2598 = vmax.f32 %v2580, 0.0
        %v2599 = vmax.f32 %v2581, 0.0
        %v2600 = vmax.f32 %v2582, 0.0
        %v2601 = vmax.f32 %v2583, 0.0
        %v2602 = vmax.f32 %v2584, 0.0
        %v2603 = vmax.f32 %v2585, 0.0
        %v2604 = vmax.f32 %v2586, 0.0
        %v2605 = vmax.f32 %v2587, 0.0
        %v2606 = vmax.f32 %v2588, 0.0
        %v2607 = vmul.f32 %v2589, %v423
        %v2608 = vmul.f32 %v2590, %v424
        %v2609 = vmul.f32 %v2591, %v425
        %v2610 = vmul.f32 %v2592, %v426
        %v2611 = vmul.f32 %v2593, %v427
        %v2612 = vmul.f32 %v2594, %v428
        %v2613 = vmul.f32 %v2595, %v429
        %v2614 = vmul.f32 %v2596, %v430
        %v2615 = vmul.f32 %v2597, %v431
        %v2616 = vmul.f32 %v2598, %v432
        %v2617 = vmul.f32 %v2599, %v433
        %v2618 = vmul.f32 %v2600, %v434
        %v2619 = vmul.f32 %v2601, %v435
        %v2620 = vmul.f32 %v2602, %v436
        %v2621 = vmul.f32 %v2603, %v437
        %v2622 = vmul.f32 %v2604, %v438
        %v2623 = vmul.f32 %v2605, %v439
        %v2624 = vmul.f32 %v2606, %v440
        %2625 = vst [vmem:[#allocation2 + $0x10] sm:$0xff] %v2607
        %2626 = vst [vmem:[#allocation2 + $0x18] sm:$0xff] %v2608
        %2627 = vst [vmem:[#allocation2 + $0x20] sm:$0xff] %v2609
        %2628 = vst [vmem:[#allocation2 + $0x28] sm:$0xff] %v2610
        %2629 = vst [vmem:[#allocation2 + $0x30] sm:$0xff] %v2611
        %2630 = vst [vmem:[#allocation2 + $0x38] sm:$0xff] %v2612
        %2631 = vst [vmem:[#allocation2 + $0x40] sm:$0xff] %v2613
        %2632 = vst [vmem:[#allocation2 + $0x48] sm:$0xff] %v2614
        %2633 = vst [vmem:[#allocation2 + $0x50] sm:$0xff] %v2615
        %2634 = vst [vmem:[#allocation2 + $0x58] sm:$0xff] %v2616
        %2635 = vst [vmem:[#allocation2 + $0x60] sm:$0xff] %v2617
        %2636 = vst [vmem:[#allocation2 + $0x68] sm:$0xff] %v2618
        %2637 = vst [vmem:[#allocation2 + $0x70] sm:$0xff] %v2619
        %2638 = vst [vmem:[#allocation2 + $0x78] sm:$0xff] %v2620
        %2639 = vst [vmem:[#allocation2 + $0x80] sm:$0xff] %v2621
        %2640 = vst [vmem:[#allocation2 + $0x88] sm:$0xff] %v2622
        %2641 = vst [vmem:[#allocation2 + $0x90] sm:$0xff] %v2623
        %2642 = vst [vmem:[#allocation2 + $0x98] sm:$0xff] %v2624
        %p2643 = scmp.eq.s32.totalorder %s21, 38
        // Predicated region
        $region65: #{connect4_forward.2} parent=43 // pred_check
          %p2644 = pneg %p2643
        $region66: #{connect4_forward.2} parent=43 // pred_check_branch
          %2646 = sbr.rel (%p2644) target = $region68
        $region67: #{connect4_forward.2} parent=43 // pred_region
          %v2647 = vld [vmem:[#allocation2 + $0x10] sm:$0xff]
          %v2648 = vld [vmem:[#allocation2 + $0x18] sm:$0xff]
          %v2649 = vld [vmem:[#allocation2 + $0x20] sm:$0xff]
          %v2650 = vld [vmem:[#allocation2 + $0x28] sm:$0xff]
          %v2651 = vld [vmem:[#allocation2 + $0x30] sm:$0xff]
          %v2652 = vld [vmem:[#allocation2 + $0x38] sm:$0xff]
          %v2653 = vld [vmem:[#allocation2 + $0x40] sm:$0xff]
          %v2654 = vld [vmem:[#allocation2 + $0x48] sm:$0xff]
          %v2655 = vld [vmem:[#allocation2 + $0x50] sm:$0xff]
          %v2656 = vld [vmem:[#allocation2 + $0x58] sm:$0xff]
          %v2657 = vld [vmem:[#allocation2 + $0x60] sm:$0xff]
          %v2658 = vld [vmem:[#allocation2 + $0x68] sm:$0xff]
          %v2659 = vld [vmem:[#allocation2 + $0x70] sm:$0xff]
          %v2660 = vld [vmem:[#allocation2 + $0x78] sm:$0xff]
          %v2661 = vld [vmem:[#allocation2 + $0x80] sm:$0xff]
          %v2662 = vld [vmem:[#allocation2 + $0x88] sm:$0xff]
          %v2663 = vld [vmem:[#allocation2 + $0x90] sm:$0xff]
          %v2664 = vld [vmem:[#allocation2 + $0x98] sm:$0xff]
          %v2665 = vpack.c.bf16 %v2648, %v2647
          %v2666 = vpack.c.bf16 %v2650, %v2649
          %v2667 = vpack.c.bf16 %v2652, %v2651
          %v2668 = vpack.c.bf16 %v2654, %v2653
          %v2669 = vpack.c.bf16 %v2656, %v2655
          %v2670 = vpack.c.bf16 %v2658, %v2657
          %v2671 = vpack.c.bf16 %v2660, %v2659
          %v2672 = vpack.c.bf16 %v2662, %v2661
          %v2673 = vpack.c.bf16 %v2664, %v2663
          %v2674 = vld [vmem:[#allocation6] sm:$0xf]
          %v2675 = vld [vmem:[#allocation6 + $0x4] sm:$0xf]
          %v2676 = vld [vmem:[#allocation6 + $0x8] sm:$0xf]
          %v2677 = vld [vmem:[#allocation6 + $0xc] sm:$0xf]
          %v2678 = vld [vmem:[#allocation6 + $0x10] sm:$0xf]
          %v2679 = vld [vmem:[#allocation6 + $0x14] sm:$0xf]
          %v2680 = vld [vmem:[#allocation6 + $0x18] sm:$0xf]
          %v2681 = vld [vmem:[#allocation6 + $0x1c] sm:$0xf]
          %v2682 = vld [vmem:[#allocation6 + $0x20] sm:$0xf]
          %v2683 = vld [vmem:[#allocation6 + $0x24] sm:$0xf]
          %v2684 = vld [vmem:[#allocation6 + $0x28] sm:$0xf]
          %v2685 = vld [vmem:[#allocation6 + $0x2c] sm:$0xf]
          %v2686 = vld [vmem:[#allocation6 + $0x30] sm:$0xf]
          %v2687 = vld [vmem:[#allocation6 + $0x34] sm:$0xf]
          %v2688 = vld [vmem:[#allocation6 + $0x38] sm:$0xf]
          %v2689 = vld [vmem:[#allocation6 + $0x3c] sm:$0xf]
          %v2690 = vld [vmem:[#allocation8] sm:$0x7]
          %v2691 = vlaneseq
          %v2692 = vshrl.u32 %v2691, 7
          %v2693 = vsub.s32 2, %v2692
          %v2694 = vrot.slane %v2690, %v2693
          %v2711 = vunpack.c.l.b16 %v2674
          %v2712 = vunpack.c.l.b16 %v2675
          %v2713 = vunpack.c.l.b16 %v2676
          %v2714 = vunpack.c.l.b16 %v2677
          %v2715 = vunpack.c.l.b16 %v2678
          %v2716 = vunpack.c.l.b16 %v2679
          %v2717 = vunpack.c.l.b16 %v2680
          %v2718 = vunpack.c.l.b16 %v2681
          %v2719 = vunpack.c.l.b16 %v2682
          %v2720 = vunpack.c.l.b16 %v2683
          %v2721 = vunpack.c.l.b16 %v2684
          %v2722 = vunpack.c.l.b16 %v2685
          %v2723 = vunpack.c.l.b16 %v2686
          %v2724 = vunpack.c.l.b16 %v2687
          %v2725 = vunpack.c.l.b16 %v2688
          %v2726 = vunpack.c.l.b16 %v2689
          %v2727 = vpack.c.b16 %v2712, %v2711
          %v2728 = vpack.c.b16 %v2714, %v2713
          %v2729 = vpack.c.b16 %v2716, %v2715
          %v2730 = vpack.c.b16 %v2718, %v2717
          %v2731 = vpack.c.b16 %v2720, %v2719
          %v2732 = vpack.c.b16 %v2722, %v2721
          %v2733 = vpack.c.b16 %v2724, %v2723
          %v2734 = vpack.c.b16 %v2726, %v2725
          %2743 = vmatprep.subr.bf16.mxu0 0
          %2744 = vmatpush1.bf16.msra.mxu0 %v2727
          %2745 = vmatprep.subr.bf16.mxu0 0
          %2746 = vmatpush1.bf16.msra.mxu0 %v2728
          %2747 = vmatprep.subr.bf16.mxu0 0
          %2748 = vmatpush1.bf16.msra.mxu0 %v2729
          %2749 = vmatprep.subr.bf16.mxu0 0
          %2750 = vmatpush1.bf16.msra.mxu0 %v2730
          %2751 = vmatprep.subr.bf16.mxu0 0
          %2752 = vmatpush1.bf16.msra.mxu0 %v2731
          %2753 = vmatprep.subr.bf16.mxu0 0
          %2754 = vmatpush1.bf16.msra.mxu0 %v2732
          %2755 = vmatprep.subr.bf16.mxu0 0
          %2756 = vmatpush1.bf16.msra.mxu0 %v2733
          %2757 = vmatprep.subr.bf16.mxu0 0
          %2758 = vmatpush1.bf16.msra.mxu0 %v2734
          %2759 = vmatprep.subr.bf16.mxu0 0
          %2760 = vmatpush1.bf16.msra.mxu0 0
          %2761 = vmatprep.subr.bf16.mxu0 0
          %2762 = vmatpush1.bf16.msra.mxu0 0
          %2763 = vmatprep.subr.bf16.mxu0 0
          %2764 = vmatpush1.bf16.msra.mxu0 0
          %2765 = vmatprep.subr.bf16.mxu0 0
          %2766 = vmatpush1.bf16.msra.mxu0 0
          %2767 = vmatprep.subr.bf16.mxu0 0
          %2768 = vmatpush1.bf16.msra.mxu0 0
          %2769 = vmatprep.subr.bf16.mxu0 0
          %2770 = vmatpush1.bf16.msra.mxu0 0
          %2771 = vmatprep.subr.bf16.mxu0 0
          %2772 = vmatpush1.bf16.msra.mxu0 0
          %2773 = vmatprep.subr.bf16.mxu0 0
          %2774 = vmatpush1.bf16.msra.mxu0 0
          %2775 = vmatprep.mubr.bf16.mxu0 0
          %2776 = vmatmul.mubr.bf16.gmra.mrb[0].mxu0 %v2665
          %v2777 = vpop.f32.mrb[0].mxu0
          %v2778 = vadd.f32 %v2694, %v2777
          %v2779 = vpop.f32.mrb[0].mxu0
          %v2780 = vpop.f32.mrb[0].mxu0
          %v2781 = vadd.f32 %v2694, %v2780
          %v2782 = vpop.f32.mrb[0].mxu0
          %2783 = vmatprep.mubr.bf16.mxu0 0
          %2784 = vmatmul.mubr.bf16.gmra.mrb[0].mxu0 %v2666
          %v2785 = vpop.f32.mrb[0].mxu0
          %v2786 = vadd.f32 %v2694, %v2785
          %v2787 = vpop.f32.mrb[0].mxu0
          %v2788 = vpop.f32.mrb[0].mxu0
          %v2789 = vadd.f32 %v2694, %v2788
          %v2790 = vpop.f32.mrb[0].mxu0
          %2791 = vmatprep.mubr.bf16.mxu0 0
          %2792 = vmatmul.mubr.bf16.gmra.mrb[0].mxu0 %v2667
          %v2793 = vpop.f32.mrb[0].mxu0
          %v2794 = vadd.f32 %v2694, %v2793
          %v2795 = vpop.f32.mrb[0].mxu0
          %v2796 = vpop.f32.mrb[0].mxu0
          %v2797 = vadd.f32 %v2694, %v2796
          %v2798 = vpop.f32.mrb[0].mxu0
          %2799 = vmatprep.mubr.bf16.mxu0 0
          %2800 = vmatmul.mubr.bf16.gmra.mrb[0].mxu0 %v2668
          %v2801 = vpop.f32.mrb[0].mxu0
          %v2802 = vadd.f32 %v2694, %v2801
          %v2803 = vpop.f32.mrb[0].mxu0
          %v2804 = vpop.f32.mrb[0].mxu0
          %v2805 = vadd.f32 %v2694, %v2804
          %v2806 = vpop.f32.mrb[0].mxu0
          %2807 = vmatprep.mubr.bf16.mxu0 0
          %2808 = vmatmul.mubr.bf16.gmra.mrb[0].mxu0 %v2669
          %v2809 = vpop.f32.mrb[0].mxu0
          %v2810 = vadd.f32 %v2694, %v2809
          %v2811 = vpop.f32.mrb[0].mxu0
          %v2812 = vpop.f32.mrb[0].mxu0
          %v2813 = vadd.f32 %v2694, %v2812
          %v2814 = vpop.f32.mrb[0].mxu0
          %2815 = vmatprep.mubr.bf16.mxu0 0
          %2816 = vmatmul.mubr.bf16.gmra.mrb[0].mxu0 %v2670
          %v2817 = vpop.f32.mrb[0].mxu0
          %v2818 = vadd.f32 %v2694, %v2817
          %v2819 = vpop.f32.mrb[0].mxu0
          %v2820 = vpop.f32.mrb[0].mxu0
          %v2821 = vadd.f32 %v2694, %v2820
          %v2822 = vpop.f32.mrb[0].mxu0
          %2823 = vmatprep.mubr.bf16.mxu0 0
          %2824 = vmatmul.mubr.bf16.gmra.mrb[0].mxu0 %v2671
          %v2825 = vpop.f32.mrb[0].mxu0
          %v2826 = vadd.f32 %v2694, %v2825
          %v2827 = vpop.f32.mrb[0].mxu0
          %v2828 = vpop.f32.mrb[0].mxu0
          %v2829 = vadd.f32 %v2694, %v2828
          %v2830 = vpop.f32.mrb[0].mxu0
          %2831 = vmatprep.mubr.bf16.mxu0 0
          %2832 = vmatmul.mubr.bf16.gmra.mrb[0].mxu0 %v2672
          %v2833 = vpop.f32.mrb[0].mxu0
          %v2834 = vadd.f32 %v2694, %v2833
          %v2835 = vpop.f32.mrb[0].mxu0
          %v2836 = vpop.f32.mrb[0].mxu0
          %v2837 = vadd.f32 %v2694, %v2836
          %v2838 = vpop.f32.mrb[0].mxu0
          %2839 = vmatprep.mubr.bf16.mxu0 0
          %2840 = vmatmul.mubr.bf16.gmra.mrb[0].mxu0 %v2673
          %v2841 = vpop.f32.mrb[0].mxu0
          %v2842 = vadd.f32 %v2694, %v2841
          %v2843 = vpop.f32.mrb[0].mxu0
          %v2844 = vpop.f32.mrb[0].mxu0
          %v2845 = vadd.f32 %v2694, %v2844
          %v2846 = vpop.f32.mrb[0].mxu0
          %2847 = vdwg.mxu0
          %v2848 = vmul.f32 %v2778, %v423
          %v2849 = vmul.f32 %v2781, %v424
          %v2850 = vmul.f32 %v2786, %v425
          %v2851 = vmul.f32 %v2789, %v426
          %v2852 = vmul.f32 %v2794, %v427
          %v2853 = vmul.f32 %v2797, %v428
          %v2854 = vmul.f32 %v2802, %v429
          %v2855 = vmul.f32 %v2805, %v430
          %v2856 = vmul.f32 %v2810, %v431
          %v2857 = vmul.f32 %v2813, %v432
          %v2858 = vmul.f32 %v2818, %v433
          %v2859 = vmul.f32 %v2821, %v434
          %v2860 = vmul.f32 %v2826, %v435
          %v2861 = vmul.f32 %v2829, %v436
          %v2862 = vmul.f32 %v2834, %v437
          %v2863 = vmul.f32 %v2837, %v438
          %v2864 = vmul.f32 %v2842, %v439
          %v2865 = vmul.f32 %v2845, %v440
          %v2866 = vadd.f32 %v2848, %v2849
          %v2867 = vadd.f32 %v2866, %v2850
          %v2868 = vadd.f32 %v2867, %v2851
          %v2869 = vadd.f32 %v2868, %v2852
          %v2870 = vadd.f32 %v2869, %v2853
          %v2871 = vadd.f32 %v2870, %v2854
          %v2872 = vadd.f32 %v2871, %v2855
          %v2873 = vadd.f32 %v2872, %v2856
          %v2874 = vadd.f32 %v2873, %v2857
          %v2875 = vadd.f32 %v2874, %v2858
          %v2876 = vadd.f32 %v2875, %v2859
          %v2877 = vadd.f32 %v2876, %v2860
          %v2878 = vadd.f32 %v2877, %v2861
          %v2879 = vadd.f32 %v2878, %v2862
          %v2880 = vadd.f32 %v2879, %v2863
          %v2881 = vadd.f32 %v2880, %v2864
          %v2882 = vadd.f32 %v2881, %v2865
          %v2883 = vrot.slane %v2882, 4
          %v2884 = vadd.f32 %v2882, %v2883
          %v2885 = vrot.slane %v2884, 2
          %v2886 = vadd.f32 %v2884, %v2885
          %v2887 = vrot.slane %v2886, 1
          %v2888 = vadd.f32 %v2886, %v2887
          %v2889 = vmul.f32 %v2888, 0.011904762
          %v2890 = vsub.f32 %v2778, %v2889
          %v2891 = vsub.f32 %v2781, %v2889
          %v2892 = vsub.f32 %v2786, %v2889
          %v2893 = vsub.f32 %v2789, %v2889
          %v2894 = vsub.f32 %v2794, %v2889
          %v2895 = vsub.f32 %v2797, %v2889
          %v2896 = vsub.f32 %v2802, %v2889
          %v2897 = vsub.f32 %v2805, %v2889
          %v2898 = vsub.f32 %v2810, %v2889
          %v2899 = vsub.f32 %v2813, %v2889
          %v2900 = vsub.f32 %v2818, %v2889
          %v2901 = vsub.f32 %v2821, %v2889
          %v2902 = vsub.f32 %v2826, %v2889
          %v2903 = vsub.f32 %v2829, %v2889
          %v2904 = vsub.f32 %v2834, %v2889
          %v2905 = vsub.f32 %v2837, %v2889
          %v2906 = vsub.f32 %v2842, %v2889
          %v2907 = vsub.f32 %v2845, %v2889
          %v2908 = vmul.f32 %v2890, %v423
          %v2909 = vmul.f32 %v2891, %v424
          %v2910 = vmul.f32 %v2892, %v425
          %v2911 = vmul.f32 %v2893, %v426
          %v2912 = vmul.f32 %v2894, %v427
          %v2913 = vmul.f32 %v2895, %v428
          %v2914 = vmul.f32 %v2896, %v429
          %v2915 = vmul.f32 %v2897, %v430
          %v2916 = vmul.f32 %v2898, %v431
          %v2917 = vmul.f32 %v2899, %v432
          %v2918 = vmul.f32 %v2900, %v433
          %v2919 = vmul.f32 %v2901, %v434
          %v2920 = vmul.f32 %v2902, %v435
          %v2921 = vmul.f32 %v2903, %v436
          %v2922 = vmul.f32 %v2904, %v437
          %v2923 = vmul.f32 %v2905, %v438
          %v2924 = vmul.f32 %v2906, %v439
          %v2925 = vmul.f32 %v2907, %v440
          %v2926 = vmul.f32 %v2908, %v2908
          %v2927 = vmul.f32 %v2909, %v2909
          %v2928 = vmul.f32 %v2910, %v2910
          %v2929 = vmul.f32 %v2911, %v2911
          %v2930 = vmul.f32 %v2912, %v2912
          %v2931 = vmul.f32 %v2913, %v2913
          %v2932 = vmul.f32 %v2914, %v2914
          %v2933 = vmul.f32 %v2915, %v2915
          %v2934 = vmul.f32 %v2916, %v2916
          %v2935 = vmul.f32 %v2917, %v2917
          %v2936 = vmul.f32 %v2918, %v2918
          %v2937 = vmul.f32 %v2919, %v2919
          %v2938 = vmul.f32 %v2920, %v2920
          %v2939 = vmul.f32 %v2921, %v2921
          %v2940 = vmul.f32 %v2922, %v2922
          %v2941 = vmul.f32 %v2923, %v2923
          %v2942 = vmul.f32 %v2924, %v2924
          %v2943 = vmul.f32 %v2925, %v2925
          %v2944 = vadd.f32 %v2926, %v2927
          %v2945 = vadd.f32 %v2944, %v2928
          %v2946 = vadd.f32 %v2945, %v2929
          %v2947 = vadd.f32 %v2946, %v2930
          %v2948 = vadd.f32 %v2947, %v2931
          %v2949 = vadd.f32 %v2948, %v2932
          %v2950 = vadd.f32 %v2949, %v2933
          %v2951 = vadd.f32 %v2950, %v2934
          %v2952 = vadd.f32 %v2951, %v2935
          %v2953 = vadd.f32 %v2952, %v2936
          %v2954 = vadd.f32 %v2953, %v2937
          %v2955 = vadd.f32 %v2954, %v2938
          %v2956 = vadd.f32 %v2955, %v2939
          %v2957 = vadd.f32 %v2956, %v2940
          %v2958 = vadd.f32 %v2957, %v2941
          %v2959 = vadd.f32 %v2958, %v2942
          %v2960 = vadd.f32 %v2959, %v2943
          %v2961 = vrot.slane %v2960, 4
          %v2962 = vadd.f32 %v2960, %v2961
          %v2963 = vrot.slane %v2962, 2
          %v2964 = vadd.f32 %v2962, %v2963
          %v2965 = vrot.slane %v2964, 1
          %v2966 = vadd.f32 %v2964, %v2965
          %v2967 = vmul.f32 %v2966, 0.011904762
          %v2968 = vadd.f32 %v2967, 1e-05
          %v2969 = vrsqrt.pop %v2968
          %v2970 = vmul.f32 %v2690, %v2969
          %v2971 = vlaneseq
          %v2972 = vshrl.u32 %v2971, 7
          %v2973 = vsub.s32 0, %v2972
          %v2974 = vrot.slane %v2970, %v2973
          %v2975 = vmul.f32 %v2890, %v2974
          %v2976 = vmul.f32 %v2891, %v2974
          %v2977 = vmul.f32 %v2892, %v2974
          %v2978 = vmul.f32 %v2893, %v2974
          %v2979 = vmul.f32 %v2894, %v2974
          %v2980 = vmul.f32 %v2895, %v2974
          %v2981 = vmul.f32 %v2896, %v2974
          %v2982 = vmul.f32 %v2897, %v2974
          %v2983 = vmul.f32 %v2898, %v2974
          %v2984 = vmul.f32 %v2899, %v2974
          %v2985 = vmul.f32 %v2900, %v2974
          %v2986 = vmul.f32 %v2901, %v2974
          %v2987 = vmul.f32 %v2902, %v2974
          %v2988 = vmul.f32 %v2903, %v2974
          %v2989 = vmul.f32 %v2904, %v2974
          %v2990 = vmul.f32 %v2905, %v2974
          %v2991 = vmul.f32 %v2906, %v2974
          %v2992 = vmul.f32 %v2907, %v2974
          %v2993 = vlaneseq
          %v2994 = vshrl.u32 %v2993, 7
          %v2995 = vsub.s32 1, %v2994
          %v2996 = vrot.slane %v2690, %v2995
          %v2997 = vadd.f32 %v2975, %v2996
          %v2998 = vadd.f32 %v2976, %v2996
          %v2999 = vadd.f32 %v2977, %v2996
          %v3000 = vadd.f32 %v2978, %v2996
          %v3001 = vadd.f32 %v2979, %v2996
          %v3002 = vadd.f32 %v2980, %v2996
          %v3003 = vadd.f32 %v2981, %v2996
          %v3004 = vadd.f32 %v2982, %v2996
          %v3005 = vadd.f32 %v2983, %v2996
          %v3006 = vadd.f32 %v2984, %v2996
          %v3007 = vadd.f32 %v2985, %v2996
          %v3008 = vadd.f32 %v2986, %v2996
          %v3009 = vadd.f32 %v2987, %v2996
          %v3010 = vadd.f32 %v2988, %v2996
          %v3011 = vadd.f32 %v2989, %v2996
          %v3012 = vadd.f32 %v2990, %v2996
          %v3013 = vadd.f32 %v2991, %v2996
          %v3014 = vadd.f32 %v2992, %v2996
          %v3015 = vmax.f32 %v2997, 0.0
          %v3016 = vmax.f32 %v2998, 0.0
          %v3017 = vmax.f32 %v2999, 0.0
          %v3018 = vmax.f32 %v3000, 0.0
          %v3019 = vmax.f32 %v3001, 0.0
          %v3020 = vmax.f32 %v3002, 0.0
          %v3021 = vmax.f32 %v3003, 0.0
          %v3022 = vmax.f32 %v3004, 0.0
          %v3023 = vmax.f32 %v3005, 0.0
          %v3024 = vmax.f32 %v3006, 0.0
          %v3025 = vmax.f32 %v3007, 0.0
          %v3026 = vmax.f32 %v3008, 0.0
          %v3027 = vmax.f32 %v3009, 0.0
          %v3028 = vmax.f32 %v3010, 0.0
          %v3029 = vmax.f32 %v3011, 0.0
          %v3030 = vmax.f32 %v3012, 0.0
          %v3031 = vmax.f32 %v3013, 0.0
          %v3032 = vmax.f32 %v3014, 0.0
          %v3033 = vmul.f32 %v3015, %v423
          %v3034 = vmul.f32 %v3016, %v424
          %v3035 = vmul.f32 %v3017, %v425
          %v3036 = vmul.f32 %v3018, %v426
          %v3037 = vmul.f32 %v3019, %v427
          %v3038 = vmul.f32 %v3020, %v428
          %v3039 = vmul.f32 %v3021, %v429
          %v3040 = vmul.f32 %v3022, %v430
          %v3041 = vmul.f32 %v3023, %v431
          %v3042 = vmul.f32 %v3024, %v432
          %v3043 = vmul.f32 %v3025, %v433
          %v3044 = vmul.f32 %v3026, %v434
          %v3045 = vmul.f32 %v3027, %v435
          %v3046 = vmul.f32 %v3028, %v436
          %v3047 = vmul.f32 %v3029, %v437
          %v3048 = vmul.f32 %v3030, %v438
          %v3049 = vmul.f32 %v3031, %v439
          %v3050 = vmul.f32 %v3032, %v440
          %3051 = vst [vmem:[%s6] sm:$0xff] %v3033
          %3052 = vst [vmem:[%s6 + $0x8] sm:$0xff] %v3034
          %3053 = vst [vmem:[%s6 + $0x10] sm:$0xff] %v3035
          %3054 = vst [vmem:[%s6 + $0x18] sm:$0xff] %v3036
          %3055 = vst [vmem:[%s6 + $0x20] sm:$0xff] %v3037
          %3056 = vst [vmem:[%s6 + $0x28] sm:$0xff] %v3038
          %3057 = vst [vmem:[%s6 + $0x30] sm:$0xff] %v3039
          %3058 = vst [vmem:[%s6 + $0x38] sm:$0xff] %v3040
          %3059 = vst [vmem:[%s6 + $0x40] sm:$0xff] %v3041
          %3060 = vst [vmem:[%s6 + $0x48] sm:$0xff] %v3042
          %3061 = vst [vmem:[%s6 + $0x50] sm:$0xff] %v3043
          %3062 = vst [vmem:[%s6 + $0x58] sm:$0xff] %v3044
          %3063 = vst [vmem:[%s6 + $0x60] sm:$0xff] %v3045
          %3064 = vst [vmem:[%s6 + $0x68] sm:$0xff] %v3046
          %3065 = vst [vmem:[%s6 + $0x70] sm:$0xff] %v3047
          %3066 = vst [vmem:[%s6 + $0x78] sm:$0xff] %v3048
          %3067 = vst [vmem:[%s6 + $0x80] sm:$0xff] %v3049
          %3068 = vst [vmem:[%s6 + $0x88] sm:$0xff] %v3050
        $region68: #{connect4_forward.2} parent=43 // pred_fallthru
          _
        // Predicated region
        $region69: #{connect4_forward.2} parent=43 // pred_check
          %p3069 = pneg %p170
        $region70: #{connect4_forward.2} parent=43 // pred_check_branch
          %3071 = sbr.rel (%p3069) target = $region72
        $region71: #{connect4_forward.2} parent=43 // pred_region
          _
        $region72: #{connect4_forward.2} parent=43 // pred_fallthru
          _
        // Predicated region
        $region73: #{connect4_forward.2} parent=43 // pred_check
          %p3072 = pneg %p170
        $region74: #{connect4_forward.2} parent=43 // pred_check_branch
          %3074 = sbr.rel (%p3072) target = $region76
        $region75: #{connect4_forward.2} parent=43 // pred_region
          _
        $region76: #{connect4_forward.2} parent=43 // pred_fallthru
          _
      $region44: #{connect4_forward.2} parent=5 // pred_fallthru
        _
      %p3075 = scmp.le.s32.totalorder 2, %s16
      // Predicated region
      $region77: #{connect4_forward.2} parent=5 // pred_check
        %p3076 = pneg %p3075
      $region78: #{connect4_forward.2} parent=5 // pred_check_branch
        %3078 = sbr.rel (%p3076) target = $region80
      $region79: #{connect4_forward.2} parent=5 // pred_region
        %s3079 = ssub.s32 %s16, 2
      $region80: #{connect4_forward.2} parent=5 // pred_fallthru
        _
    $region6: #{connect4_forward.2} parent=1 // loop_footer
      %s20 = sadd.s32 1, %s16
    $region7: #{connect4_forward.2} parent=1 // loop_footer_branch
      %15 = sbr.rel target = $region3
    $region8: #{connect4_forward.2} parent=1 // loop_exit
      _
    %3080 = vsyncpa [#allocation5], 1
    %s3081 = scalar_lea.sflag [#allocation5], 1
    %3082 = vsyncpa %s3081, 1
    %3083 = vsyncpa [#allocation7], 1

</llo_original>
